<compile_context>
chip_gen: v7x
topology: tpu7x:2x2x1
jax: 0.10.0
libtpu: 0.0.40
codegen_flags: <defaults>
</compile_context>

<pallas_src>
import numpy as np
import jax
import jax.numpy as jnp
from jax.experimental import pallas as pl
from jax.experimental.pallas import tpu as pltpu

# ---------------- model hyper-parameters ----------------
INPUT_SIZE = 16
LATENT_SIZE = 4
N_HIDDEN = 10                                   # GLVM default n_hidden
MASK_EMBED_DEC = int(round(INPUT_SIZE / 2))     # decoder mask_embed_size
CONCAT_ENC = 2 * INPUT_SIZE                     # encoder input_size_concat ('regular')
CONCAT_DEC = INPUT_SIZE + MASK_EMBED_DEC        # decoder input_size_concat
LOGVAR_HIDDEN = 10                              # Linear(concat, 10) in linear_log_var
ADDED_STD = 1e-3                                # args.added_std

OUT_W = INPUT_SIZE + 3 * LATENT_SIZE            # packed output: recon | means | log_var | z
BATCH = 2048                                    # large batch amortizes the fixed kernel cost
TILE_B = 512                                    # rows per grid step (grid length 4 -> both v7x TCs busy)

# TODO(synk): torch.randn_like inside reparameterize cannot be bit-reproduced; the Gaussian
#             noise `eps` is generated on the host and fed to the kernel (pltpu.prng_* could
#             generate it in-kernel but would not match torch bit-for-bit).


def _round_up(n, k):
    return ((n + k - 1) // k) * k


# ------------------------------------ kernel ------------------------------------
def glvm_vae_kernel(xm_ref, eps_ref,
                    w_mu_ref, b_mu_ref, w_lv_ref, b_lv_ref,
                    w_dz_ref, w_dm_ref, b_d_ref,
                    out_ref):
    xm = xm_ref[...]                                              # (TB, 2I) = [x | m]

    # Encoder (pre-composed Identity-linear chain): 2 matmuls.
    means = jnp.dot(xm, w_mu_ref[...],
                    preferred_element_type=jnp.float32) + b_mu_ref[...]
    log_var = jnp.dot(xm, w_lv_ref[...],
                      preferred_element_type=jnp.float32) + b_lv_ref[...]

    # Reparameterize (only nonlinear step).
    std = jnp.exp(0.5 * log_var) + ADDED_STD
    z = means + eps_ref[...] * std

    # Decoder (pre-composed): z-branch + mask-branch (W_dm has zero rows for the x half of xm).
    recon = (jnp.dot(z, w_dz_ref[...], preferred_element_type=jnp.float32)
             + jnp.dot(xm, w_dm_ref[...], preferred_element_type=jnp.float32)
             + b_d_ref[...])

    # Single packed output tile -> one output DMA per grid step.
    out_ref[:, 0:INPUT_SIZE] = recon
    out_ref[:, INPUT_SIZE:INPUT_SIZE + LATENT_SIZE] = means
    out_ref[:, INPUT_SIZE + LATENT_SIZE:INPUT_SIZE + 2 * LATENT_SIZE] = log_var
    out_ref[:, INPUT_SIZE + 2 * LATENT_SIZE:OUT_W] = z


# ----------------------------------- wrapper -----------------------------------
@jax.jit
def glvm_vae_forward(x, m, eps, fused_params):
    """Matches GLVM_VAE.forward: returns (recon_mean, recon_var, means, log_var, z, None)."""
    B = x.shape[0]
    xm = jnp.concatenate([x, m], axis=1).astype(jnp.float32)      # (B, 2I)
    eps = eps.astype(jnp.float32)

    tile_b = TILE_B if B >= TILE_B else _round_up(B, 8)
    B_pad = _round_up(B, tile_b)
    if B_pad != B:
        xm = jnp.pad(xm, ((0, B_pad - B), (0, 0)))
        eps = jnp.pad(eps, ((0, B_pad - B), (0, 0)))

    w_mu, b_mu, w_lv, b_lv, w_dz, w_dm, b_d = fused_params

    def data_spec(width):
        return pl.BlockSpec((tile_b, width), lambda i: (i, 0))

    def const_spec(arr):
        # Full-array block with a constant index_map -> DMA'd once, resident across grid steps.
        return pl.BlockSpec(arr.shape, lambda i: (0, 0))

    out_packed = pl.pallas_call(
        glvm_vae_kernel,
        out_shape=jax.ShapeDtypeStruct((B_pad, OUT_W), jnp.float32),
        grid=(B_pad // tile_b,),
        in_specs=[
            data_spec(2 * INPUT_SIZE),           # xm
            data_spec(LATENT_SIZE),              # eps
            const_spec(w_mu), const_spec(b_mu),
            const_spec(w_lv), const_spec(b_lv),
            const_spec(w_dz), const_spec(w_dm), const_spec(b_d),
        ],
        out_specs=pl.BlockSpec((tile_b, OUT_W), lambda i: (i, 0)),
        compiler_params=pltpu.CompilerParams(dimension_semantics=("parallel",)),
    )(xm, eps, w_mu, b_mu, w_lv, b_lv, w_dz, w_dm, b_d)

    recon = out_packed[:B, 0:INPUT_SIZE]
    means = out_packed[:B, INPUT_SIZE:INPUT_SIZE + LATENT_SIZE]
    log_var = out_packed[:B, INPUT_SIZE + LATENT_SIZE:INPUT_SIZE + 2 * LATENT_SIZE]
    z = out_packed[:B, INPUT_SIZE + 2 * LATENT_SIZE:OUT_W]
    # (recon_mean, recon_var, means, log_var, z, None); recon_var is None (uncertainty=False)
    return recon, None, means, log_var, z, None


# ------------------- host-side pre-composition of the linear chains -------------------
def compose_params(p):
    """Fold the Identity-nonlinearity Linear chains into 7 fused arrays (done once)."""
    I = INPUT_SIZE
    # --- encoder ---
    e_exp_wx, e_exp_wm = p['e_exp_w'][:I], p['e_exp_w'][I:]
    Px = e_exp_wx @ p['e_r1_w'] @ p['e_r2_w']                                  # (I, 2I)
    Pm = p['e_me_w'] @ e_exp_wm @ p['e_r1_w'] @ p['e_r2_w']                    # (I, 2I)
    pb = ((p['e_me_b'] @ e_exp_wm + p['e_exp_b']) @ p['e_r1_w']
          + p['e_r1_b']) @ p['e_r2_w'] + p['e_r2_b']                           # (1, 2I)

    w_mu = jnp.concatenate([Px @ p['e_mu_w'], Pm @ p['e_mu_w']], axis=0)       # (2I, L)
    b_mu = pb @ p['e_mu_w'] + p['e_mu_b']                                      # (1, L)
    lv_chain = p['e_lv1_w'] @ p['e_lv2_w']
    w_lv = jnp.concatenate([Px @ lv_chain, Pm @ lv_chain], axis=0)             # (2I, L)
    b_lv = (pb @ p['e_lv1_w'] + p['e_lv1_b']) @ p['e_lv2_w'] + p['e_lv2_b']    # (1, L)

    # --- decoder ---
    d_exp_wx, d_exp_wm = p['d_exp_w'][:I], p['d_exp_w'][I:]
    tail = p['d_r1_w'] @ p['d_r2_w'] @ p['d_mu_w']                             # (H, I)
    w_dz = p['d_inc_w'] @ d_exp_wx @ tail                                      # (L, I)
    qm = p['d_me_w'] @ d_exp_wm @ tail                                         # (I, I)
    # Pad with zero rows for the x-half of xm so the kernel uses xm directly (no lane slice).
    w_dm = jnp.concatenate([jnp.zeros((I, I), jnp.float32), qm], axis=0)       # (2I, I)
    b0 = p['d_inc_b'] @ d_exp_wx + p['d_me_b'] @ d_exp_wm + p['d_exp_b']       # (1, H)
    b_d = (((b0 @ p['d_r1_w'] + p['d_r1_b']) @ p['d_r2_w'] + p['d_r2_b'])
           @ p['d_mu_w'] + p['d_mu_b'])                                        # (1, I)

    return (w_mu, b_mu, w_lv, b_lv, w_dz, w_dm, b_d)


# ------------------------- deterministic parameter init -------------------------
def init_params(key):
    def dense(k, fin, fout):
        kw, kb = jax.random.split(k)
        bound = 1.0 / np.sqrt(fin)
        w = jax.random.uniform(kw, (fin, fout), jnp.float32, -bound, bound)
        b = jax.random.uniform(kb, (1, fout), jnp.float32, -bound, bound)
        return w, b

    layers = [
        ('e_me', INPUT_SIZE, INPUT_SIZE),
        ('e_exp', CONCAT_ENC, N_HIDDEN),
        ('e_r1', N_HIDDEN, CONCAT_ENC),
        ('e_r2', CONCAT_ENC, CONCAT_ENC),
        ('e_mu', CONCAT_ENC, LATENT_SIZE),
        ('e_lv1', CONCAT_ENC, LOGVAR_HIDDEN),
        ('e_lv2', LOGVAR_HIDDEN, LATENT_SIZE),
        ('d_inc', LATENT_SIZE, INPUT_SIZE),
        ('d_me', INPUT_SIZE, MASK_EMBED_DEC),
        ('d_exp', CONCAT_DEC, N_HIDDEN),
        ('d_r1', N_HIDDEN, CONCAT_DEC),
        ('d_r2', CONCAT_DEC, CONCAT_DEC),
        ('d_mu', CONCAT_DEC, INPUT_SIZE),
    ]
    ks = jax.random.split(key, len(layers))
    p = {}
    for k, (name, fin, fout) in zip(ks, layers):
        w, b = dense(k, fin, fout)
        p[name + '_w'], p[name + '_b'] = w, b
    return p


# ------------------------------- pure-JAX reference ------------------------------
def reference_forward(x, m, eps, p):
    """Layer-by-layer forward mirroring the PyTorch module (nonlin = Identity)."""
    me = m @ p['e_me_w'] + p['e_me_b']
    h = jnp.concatenate([x, me], axis=1) @ p['e_exp_w'] + p['e_exp_b']
    h = h @ p['e_r1_w'] + p['e_r1_b']
    h = h @ p['e_r2_w'] + p['e_r2_b']
    means = h @ p['e_mu_w'] + p['e_mu_b']
    log_var = (h @ p['e_lv1_w'] + p['e_lv1_b']) @ p['e_lv2_w'] + p['e_lv2_b']
    std = jnp.exp(0.5 * log_var) + ADDED_STD
    z = means + eps * std
    dx = z @ p['d_inc_w'] + p['d_inc_b']
    dm = m @ p['d_me_w'] + p['d_me_b']
    dh = jnp.concatenate([dx, dm], axis=1) @ p['d_exp_w'] + p['d_exp_b']
    dh = dh @ p['d_r1_w'] + p['d_r1_b']
    dh = dh @ p['d_r2_w'] + p['d_r2_b']
    recon = dh @ p['d_mu_w'] + p['d_mu_b']
    return recon, means, log_var, z


# -------------------------------------- main --------------------------------------
if __name__ == "__main__":
    key = jax.random.PRNGKey(0)
    kx, km, keps, kp = jax.random.split(key, 4)
    x = jax.random.normal(kx, (BATCH, INPUT_SIZE), jnp.float32)
    m = (jax.random.uniform(km, (BATCH, INPUT_SIZE)) > 0.3).astype(jnp.float32)
    eps = jax.random.normal(keps, (BATCH, LATENT_SIZE), jnp.float32)

    params = init_params(kp)
    fused = compose_params(params)          # one-time weight folding (exact: nonlin = Identity)

    recon_mean, recon_var, means, log_var, z, _ = glvm_vae_forward(x, m, eps, fused)
    recon_mean, means, log_var, z = jax.block_until_ready((recon_mean, means, log_var, z))

    ref = reference_forward(x, m, eps, params)
    for got, want in zip((recon_mean, means, log_var, z), ref):
        np.testing.assert_allclose(np.asarray(got), np.asarray(want), rtol=2e-3, atol=2e-3)

    assert recon_var is None  # uncertainty=False path
    print("KERNEL_OK")
</pallas_src>

<mosaic_0001>
module attributes {stable_mosaic.version = 11 : i64} {
  func.func @glvm_vae_kernel(%arg0: i32, %arg1: memref<512x32xf32, #tpu.memory_space<vmem>>, %arg2: memref<512x4xf32, #tpu.memory_space<vmem>>, %arg3: memref<32x4xf32, #tpu.memory_space<vmem>>, %arg4: memref<1x4xf32, #tpu.memory_space<vmem>>, %arg5: memref<32x4xf32, #tpu.memory_space<vmem>>, %arg6: memref<1x4xf32, #tpu.memory_space<vmem>>, %arg7: memref<4x16xf32, #tpu.memory_space<vmem>>, %arg8: memref<32x16xf32, #tpu.memory_space<vmem>>, %arg9: memref<1x16xf32, #tpu.memory_space<vmem>>, %arg10: memref<512x28xf32, #tpu.memory_space<vmem>>) attributes {dimension_semantics = [#tpu.dimension_semantics<parallel>], iteration_bounds = array<i64: 4>, scalar_prefetch = 0 : i64, scratch_operands = 0 : i64, tpu.core_type = #tpu.core_type<tc>, window_params = [{transform_indices = @transform_0, window_bounds = array<i64: 512, 32>}, {transform_indices = @transform_1, window_bounds = array<i64: 512, 4>}, {pipeline_mode = #tpu.pipeline_mode<synchronous>, transform_indices = @transform_2, window_bounds = array<i64: 32, 4>}, {pipeline_mode = #tpu.pipeline_mode<synchronous>, transform_indices = @transform_3, window_bounds = array<i64: 1, 4>}, {pipeline_mode = #tpu.pipeline_mode<synchronous>, transform_indices = @transform_4, window_bounds = array<i64: 32, 4>}, {pipeline_mode = #tpu.pipeline_mode<synchronous>, transform_indices = @transform_5, window_bounds = array<i64: 1, 4>}, {pipeline_mode = #tpu.pipeline_mode<synchronous>, transform_indices = @transform_6, window_bounds = array<i64: 4, 16>}, {pipeline_mode = #tpu.pipeline_mode<synchronous>, transform_indices = @transform_7, window_bounds = array<i64: 32, 16>}, {pipeline_mode = #tpu.pipeline_mode<synchronous>, transform_indices = @transform_8, window_bounds = array<i64: 1, 16>}, {transform_indices = @transform_9, window_bounds = array<i64: 512, 28>}]} {
    %c0 = arith.constant 0 : index
    %c0_0 = arith.constant 0 : index
    %0 = vector.load %arg1[%c0, %c0_0] : memref<512x32xf32, #tpu.memory_space<vmem>>, vector<512x32xf32>
    %c0_1 = arith.constant 0 : index
    %c0_2 = arith.constant 0 : index
    %1 = vector.load %arg3[%c0_1, %c0_2] : memref<32x4xf32, #tpu.memory_space<vmem>>, vector<32x4xf32>
    %cst = arith.constant dense<0.000000e+00> : vector<512x4xf32>
    %2 = tpu.matmul %0, %1, %cst {dimension_numbers = #tpu.dot_dimension_numbers<[1], [0], [0], [1], [0, 0, 1, 1], [], []>} : vector<512x32xf32>, vector<32x4xf32>, vector<512x4xf32> -> vector<512x4xf32>
    %c0_3 = arith.constant 0 : index
    %c0_4 = arith.constant 0 : index
    %3 = vector.load %arg4[%c0_3, %c0_4] : memref<1x4xf32, #tpu.memory_space<vmem>>, vector<1x4xf32>
    %4 = vector.broadcast %3 : vector<1x4xf32> to vector<512x4xf32>
    %5 = arith.addf %2, %4 : vector<512x4xf32>
    %c0_5 = arith.constant 0 : index
    %c0_6 = arith.constant 0 : index
    %6 = vector.load %arg5[%c0_5, %c0_6] : memref<32x4xf32, #tpu.memory_space<vmem>>, vector<32x4xf32>
    %cst_7 = arith.constant dense<0.000000e+00> : vector<512x4xf32>
    %7 = tpu.matmul %0, %6, %cst_7 {dimension_numbers = #tpu.dot_dimension_numbers<[1], [0], [0], [1], [0, 0, 1, 1], [], []>} : vector<512x32xf32>, vector<32x4xf32>, vector<512x4xf32> -> vector<512x4xf32>
    %c0_8 = arith.constant 0 : index
    %c0_9 = arith.constant 0 : index
    %8 = vector.load %arg6[%c0_8, %c0_9] : memref<1x4xf32, #tpu.memory_space<vmem>>, vector<1x4xf32>
    %9 = vector.broadcast %8 : vector<1x4xf32> to vector<512x4xf32>
    %10 = arith.addf %7, %9 : vector<512x4xf32>
    %cst_10 = arith.constant 5.000000e-01 : f32
    %11 = vector.broadcast %cst_10 : f32 to vector<512x4xf32>
    %12 = arith.mulf %11, %10 : vector<512x4xf32>
    %13 = math.exp %12 : vector<512x4xf32>
    %cst_11 = arith.constant 1.000000e-03 : f32
    %14 = vector.broadcast %cst_11 : f32 to vector<512x4xf32>
    %15 = arith.addf %13, %14 : vector<512x4xf32>
    %c0_12 = arith.constant 0 : index
    %c0_13 = arith.constant 0 : index
    %16 = vector.load %arg2[%c0_12, %c0_13] : memref<512x4xf32, #tpu.memory_space<vmem>>, vector<512x4xf32>
    %17 = arith.mulf %16, %15 : vector<512x4xf32>
    %18 = arith.addf %5, %17 : vector<512x4xf32>
    %c0_14 = arith.constant 0 : index
    %c0_15 = arith.constant 0 : index
    %19 = vector.load %arg7[%c0_14, %c0_15] : memref<4x16xf32, #tpu.memory_space<vmem>>, vector<4x16xf32>
    %cst_16 = arith.constant dense<0.000000e+00> : vector<512x16xf32>
    %20 = tpu.matmul %18, %19, %cst_16 {dimension_numbers = #tpu.dot_dimension_numbers<[1], [0], [0], [1], [0, 0, 1, 1], [], []>} : vector<512x4xf32>, vector<4x16xf32>, vector<512x16xf32> -> vector<512x16xf32>
    %c0_17 = arith.constant 0 : index
    %c0_18 = arith.constant 0 : index
    %21 = vector.load %arg8[%c0_17, %c0_18] : memref<32x16xf32, #tpu.memory_space<vmem>>, vector<32x16xf32>
    %cst_19 = arith.constant dense<0.000000e+00> : vector<512x16xf32>
    %22 = tpu.matmul %0, %21, %cst_19 {dimension_numbers = #tpu.dot_dimension_numbers<[1], [0], [0], [1], [0, 0, 1, 1], [], []>} : vector<512x32xf32>, vector<32x16xf32>, vector<512x16xf32> -> vector<512x16xf32>
    %23 = arith.addf %20, %22 : vector<512x16xf32>
    %c0_20 = arith.constant 0 : index
    %c0_21 = arith.constant 0 : index
    %24 = vector.load %arg9[%c0_20, %c0_21] : memref<1x16xf32, #tpu.memory_space<vmem>>, vector<1x16xf32>
    %25 = vector.broadcast %24 : vector<1x16xf32> to vector<512x16xf32>
    %26 = arith.addf %23, %25 : vector<512x16xf32>
    %c0_22 = arith.constant 0 : index
    %c0_23 = arith.constant 0 : index
    %27 = vector.load %arg10[%c0_22, %c0_23] : memref<512x28xf32, #tpu.memory_space<vmem>>, vector<512x16xf32>
    tpu.vector_store %arg10[%c0_22, %c0_23], %26 {strides = array<i32>} : memref<512x28xf32, #tpu.memory_space<vmem>>, vector<512x16xf32>,
    %c0_24 = arith.constant 0 : index
    %c16 = arith.constant 16 : index
    %28 = vector.load %arg10[%c0_24, %c16] : memref<512x28xf32, #tpu.memory_space<vmem>>, vector<512x4xf32>
    tpu.vector_store %arg10[%c0_24, %c16], %5 {strides = array<i32>} : memref<512x28xf32, #tpu.memory_space<vmem>>, vector<512x4xf32>,
    %c0_25 = arith.constant 0 : index
    %c20 = arith.constant 20 : index
    %29 = vector.load %arg10[%c0_25, %c20] : memref<512x28xf32, #tpu.memory_space<vmem>>, vector<512x4xf32>
    tpu.vector_store %arg10[%c0_25, %c20], %10 {strides = array<i32>} : memref<512x28xf32, #tpu.memory_space<vmem>>, vector<512x4xf32>,
    %c0_26 = arith.constant 0 : index
    %c24 = arith.constant 24 : index
    %30 = vector.load %arg10[%c0_26, %c24] : memref<512x28xf32, #tpu.memory_space<vmem>>, vector<512x4xf32>
    tpu.vector_store %arg10[%c0_26, %c24], %18 {strides = array<i32>} : memref<512x28xf32, #tpu.memory_space<vmem>>, vector<512x4xf32>,
    return
  }
  func.func @transform_0(%arg0: i32) -> (i32, i32) {
    %c0_i32 = arith.constant 0 : i32
    %c0_i32_0 = arith.constant 0 : i32
    return %arg0, %c0_i32 : i32, i32
  }
  func.func @transform_1(%arg0: i32) -> (i32, i32) {
    %c0_i32 = arith.constant 0 : i32
    %c0_i32_0 = arith.constant 0 : i32
    return %arg0, %c0_i32 : i32, i32
  }
  func.func @transform_2(%arg0: i32) -> (i32, i32) {
    %c0_i32 = arith.constant 0 : i32
    %c0_i32_0 = arith.constant 0 : i32
    %c0_i32_1 = arith.constant 0 : i32
    return %c0_i32, %c0_i32_0 : i32, i32
  }
  func.func @transform_3(%arg0: i32) -> (i32, i32) {
    %c0_i32 = arith.constant 0 : i32
    %c0_i32_0 = arith.constant 0 : i32
    %c0_i32_1 = arith.constant 0 : i32
    return %c0_i32, %c0_i32_0 : i32, i32
  }
  func.func @transform_4(%arg0: i32) -> (i32, i32) {
    %c0_i32 = arith.constant 0 : i32
    %c0_i32_0 = arith.constant 0 : i32
    %c0_i32_1 = arith.constant 0 : i32
    return %c0_i32, %c0_i32_0 : i32, i32
  }
  func.func @transform_5(%arg0: i32) -> (i32, i32) {
    %c0_i32 = arith.constant 0 : i32
    %c0_i32_0 = arith.constant 0 : i32
    %c0_i32_1 = arith.constant 0 : i32
    return %c0_i32, %c0_i32_0 : i32, i32
  }
  func.func @transform_6(%arg0: i32) -> (i32, i32) {
    %c0_i32 = arith.constant 0 : i32
    %c0_i32_0 = arith.constant 0 : i32
    %c0_i32_1 = arith.constant 0 : i32
    return %c0_i32, %c0_i32_0 : i32, i32
  }
  func.func @transform_7(%arg0: i32) -> (i32, i32) {
    %c0_i32 = arith.constant 0 : i32
    %c0_i32_0 = arith.constant 0 : i32
    %c0_i32_1 = arith.constant 0 : i32
    return %c0_i32, %c0_i32_0 : i32, i32
  }
  func.func @transform_8(%arg0: i32) -> (i32, i32) {
    %c0_i32 = arith.constant 0 : i32
    %c0_i32_0 = arith.constant 0 : i32
    %c0_i32_1 = arith.constant 0 : i32
    return %c0_i32, %c0_i32_0 : i32, i32
  }
  func.func @transform_9(%arg0: i32) -> (i32, i32) {
    %c0_i32 = arith.constant 0 : i32
    %c0_i32_0 = arith.constant 0 : i32
    return %arg0, %c0_i32 : i32, i32
  }
}

</mosaic_0001>

<llo_original>
// kernel: glvm_vae_forward.1
$region0: #{glvm_vae_forward.1}
  #allocation0 [shape = 'u32[]', space=smem, size = 0x4, offset = 0x4, fixed_abs, tag = 'smem constant byte address 0x4 - core index']
  #allocation1 [shape = 'u32[144,128]{1,0:T(1,128)}', space=vmem, size = 0x12000, scoped, tag = 'internal scratch']
  %s0 = inlined_call_operand.vmem [shape: f32[2048,32], index: 0, kind: input, shape index: {}]
  %s1 = inlined_call_operand.vmem [shape: f32[2048,4], index: 1, kind: input, shape index: {}]
  %s2 = inlined_call_operand.vmem [shape: f32[32,4], index: 2, kind: input, shape index: {}]
  %s3 = inlined_call_operand.vmem [shape: f32[1,4], index: 3, kind: input, shape index: {}]
  %s4 = inlined_call_operand.vmem [shape: f32[32,4], index: 4, kind: input, shape index: {}]
  %s5 = inlined_call_operand.vmem [shape: f32[1,4], index: 5, kind: input, shape index: {}]
  %s6 = inlined_call_operand.vmem [shape: f32[4,16], index: 6, kind: input, shape index: {}]
  %s7 = inlined_call_operand.vmem [shape: f32[32,16], index: 7, kind: input, shape index: {}]
  %s8 = inlined_call_operand.vmem [shape: f32[1,16], index: 8, kind: input, shape index: {}]
  %s9 = inlined_call_operand.vmem [shape: f32[2048,28], index: 9, kind: output, shape index: {}]
  %s10 = sld [smem:[#allocation0]]
  $region69: #{glvm_vae_forward.1} parent=0
    _
  %s12 = ssub.s32 1, %s10
  %s13 = scalar_select 0, %s12, %s10
  loop: start=0, step=1, limit=6
  $region2: #{glvm_vae_forward.1} parent=0 // loop_pre_header
    _
  $region3: #{glvm_vae_forward.1} parent=0 // loop_header
    %s15 = sphi 0, %s19
    %p16 = scmp.ge.s32.totalorder %s15, 6
    %s25 = sphi 0, %s27
    %s28 = sphi 0, %s25
    %s29 = sphi 0, %s28
    %s45 = sphi 0, %s29
    %s51 = sphi 0, %s53
    %s54 = sphi 0, %s51
    %s55 = sphi 0, %s54
    %s71 = sphi 0, %s55
    %s75 = sphi 0, %s75
    %s77 = sphi 0, %s75
    %s78 = sphi 0, %s77
    %s92 = sphi 0, %s78
    %s96 = sphi 0, %s96
    %s98 = sphi 0, %s96
    %s99 = sphi 0, %s98
    %s113 = sphi 0, %s99
    %s117 = sphi 0, %s117
    %s119 = sphi 0, %s117
    %s120 = sphi 0, %s119
    %s134 = sphi 0, %s120
    %s138 = sphi 0, %s138
    %s140 = sphi 0, %s138
    %s141 = sphi 0, %s140
    %s155 = sphi 0, %s141
    %s159 = sphi 0, %s159
    %s161 = sphi 0, %s159
    %s162 = sphi 0, %s161
    %s176 = sphi 0, %s162
    %s180 = sphi 0, %s180
    %s182 = sphi 0, %s180
    %s183 = sphi 0, %s182
    %s197 = sphi 0, %s183
    %s201 = sphi 0, %s201
    %s203 = sphi 0, %s201
    %s204 = sphi 0, %s203
    %s218 = sphi 0, %s204
    %s224 = sphi 0, %s226
    %s227 = sphi 0, %s224
    %s228 = sphi 0, %s227
    %s244 = sphi 0, %s228
  $region4: #{glvm_vae_forward.1} parent=0 // loop_header_branch
    %18 = sbr.rel (%p16) target = $region8
  $region5: #{glvm_vae_forward.1} parent=0 // loop_body
    %s20 = ssub.s32 %s15, 1
    %s21 = ssub.s32 %s15, 2
    %s22 = sadd.s32 %s15, 1
    %s23 = ssub.s32 %s15, %s22
    %p24 = scmp.eq.s32.totalorder %s23, 0
    %s26 = sadd.s32 %s25, 1
    %s27 = scalar_select %p24, %s25, %s26
    %p30 = pneg %p24
    %p31 = scmp.eq.s32.totalorder %s15, 3
    %p32 = por %p30, %p31
    %p33 = scmp.ne.s32.totalorder %s25, %s28
    %p34 = scmp.eq.s32.totalorder %s15, 0
    %p35 = por %p33, %p34
    %p36 = scmp.ne.s32.totalorder %s25, %s28
    %p37 = scmp.eq.s32.totalorder %s20, 3
    %p38 = por %p36, %p37
    %p39 = scmp.ne.s32.totalorder %s28, %s29
    %p40 = scmp.eq.s32.totalorder %s20, 0
    %p41 = por %p39, %p40
    %p42 = scmp.ne.s32.totalorder %s28, %s29
    %p43 = scmp.eq.s32.totalorder %s21, 3
    %p44 = por %p42, %p43
    %p46 = scmp.ne.s32.totalorder %s29, %s45
    %p47 = scmp.eq.s32.totalorder %s21, 0
    %p48 = por %p46, %p47
    %s49 = ssub.s32 %s15, %s22
    %p50 = scmp.eq.s32.totalorder %s49, 0
    %s52 = sadd.s32 %s51, 1
    %s53 = scalar_select %p50, %s51, %s52
    %p56 = pneg %p50
    %p57 = scmp.eq.s32.totalorder %s15, 3
    %p58 = por %p56, %p57
    %p59 = scmp.ne.s32.totalorder %s51, %s54
    %p60 = scmp.eq.s32.totalorder %s15, 0
    %p61 = por %p59, %p60
    %p62 = scmp.ne.s32.totalorder %s51, %s54
    %p63 = scmp.eq.s32.totalorder %s20, 3
    %p64 = por %p62, %p63
    %p65 = scmp.ne.s32.totalorder %s54, %s55
    %p66 = scmp.eq.s32.totalorder %s20, 0
    %p67 = por %p65, %p66
    %p68 = scmp.ne.s32.totalorder %s54, %s55
    %p69 = scmp.eq.s32.totalorder %s21, 3
    %p70 = por %p68, %p69
    %p72 = scmp.ne.s32.totalorder %s55, %s71
    %p73 = scmp.eq.s32.totalorder %s21, 0
    %p74 = por %p72, %p73
    %s76 = sadd.s32 %s75, 1
    %p79 = scmp.eq.s32.totalorder %s15, 3
    %p80 = scmp.ne.s32.totalorder %s75, %s77
    %p81 = scmp.eq.s32.totalorder %s15, 0
    %p82 = por %p80, %p81
    %p83 = scmp.ne.s32.totalorder %s75, %s77
    %p84 = scmp.eq.s32.totalorder %s20, 3
    %p85 = por %p83, %p84
    %p86 = scmp.ne.s32.totalorder %s77, %s78
    %p87 = scmp.eq.s32.totalorder %s20, 0
    %p88 = por %p86, %p87
    %p89 = scmp.ne.s32.totalorder %s77, %s78
    %p90 = scmp.eq.s32.totalorder %s21, 3
    %p91 = por %p89, %p90
    %p93 = scmp.ne.s32.totalorder %s78, %s92
    %p94 = scmp.eq.s32.totalorder %s21, 0
    %p95 = por %p93, %p94
    %s97 = sadd.s32 %s96, 1
    %p100 = scmp.eq.s32.totalorder %s15, 3
    %p101 = scmp.ne.s32.totalorder %s96, %s98
    %p102 = scmp.eq.s32.totalorder %s15, 0
    %p103 = por %p101, %p102
    %p104 = scmp.ne.s32.totalorder %s96, %s98
    %p105 = scmp.eq.s32.totalorder %s20, 3
    %p106 = por %p104, %p105
    %p107 = scmp.ne.s32.totalorder %s98, %s99
    %p108 = scmp.eq.s32.totalorder %s20, 0
    %p109 = por %p107, %p108
    %p110 = scmp.ne.s32.totalorder %s98, %s99
    %p111 = scmp.eq.s32.totalorder %s21, 3
    %p112 = por %p110, %p111
    %p114 = scmp.ne.s32.totalorder %s99, %s113
    %p115 = scmp.eq.s32.totalorder %s21, 0
    %p116 = por %p114, %p115
    %s118 = sadd.s32 %s117, 1
    %p121 = scmp.eq.s32.totalorder %s15, 3
    %p122 = scmp.ne.s32.totalorder %s117, %s119
    %p123 = scmp.eq.s32.totalorder %s15, 0
    %p124 = por %p122, %p123
    %p125 = scmp.ne.s32.totalorder %s117, %s119
    %p126 = scmp.eq.s32.totalorder %s20, 3
    %p127 = por %p125, %p126
    %p128 = scmp.ne.s32.totalorder %s119, %s120
    %p129 = scmp.eq.s32.totalorder %s20, 0
    %p130 = por %p128, %p129
    %p131 = scmp.ne.s32.totalorder %s119, %s120
    %p132 = scmp.eq.s32.totalorder %s21, 3
    %p133 = por %p131, %p132
    %p135 = scmp.ne.s32.totalorder %s120, %s134
    %p136 = scmp.eq.s32.totalorder %s21, 0
    %p137 = por %p135, %p136
    %s139 = sadd.s32 %s138, 1
    %p142 = scmp.eq.s32.totalorder %s15, 3
    %p143 = scmp.ne.s32.totalorder %s138, %s140
    %p144 = scmp.eq.s32.totalorder %s15, 0
    %p145 = por %p143, %p144
    %p146 = scmp.ne.s32.totalorder %s138, %s140
    %p147 = scmp.eq.s32.totalorder %s20, 3
    %p148 = por %p146, %p147
    %p149 = scmp.ne.s32.totalorder %s140, %s141
    %p150 = scmp.eq.s32.totalorder %s20, 0
    %p151 = por %p149, %p150
    %p152 = scmp.ne.s32.totalorder %s140, %s141
    %p153 = scmp.eq.s32.totalorder %s21, 3
    %p154 = por %p152, %p153
    %p156 = scmp.ne.s32.totalorder %s141, %s155
    %p157 = scmp.eq.s32.totalorder %s21, 0
    %p158 = por %p156, %p157
    %s160 = sadd.s32 %s159, 1
    %p163 = scmp.eq.s32.totalorder %s15, 3
    %p164 = scmp.ne.s32.totalorder %s159, %s161
    %p165 = scmp.eq.s32.totalorder %s15, 0
    %p166 = por %p164, %p165
    %p167 = scmp.ne.s32.totalorder %s159, %s161
    %p168 = scmp.eq.s32.totalorder %s20, 3
    %p169 = por %p167, %p168
    %p170 = scmp.ne.s32.totalorder %s161, %s162
    %p171 = scmp.eq.s32.totalorder %s20, 0
    %p172 = por %p170, %p171
    %p173 = scmp.ne.s32.totalorder %s161, %s162
    %p174 = scmp.eq.s32.totalorder %s21, 3
    %p175 = por %p173, %p174
    %p177 = scmp.ne.s32.totalorder %s162, %s176
    %p178 = scmp.eq.s32.totalorder %s21, 0
    %p179 = por %p177, %p178
    %s181 = sadd.s32 %s180, 1
    %p184 = scmp.eq.s32.totalorder %s15, 3
    %p185 = scmp.ne.s32.totalorder %s180, %s182
    %p186 = scmp.eq.s32.totalorder %s15, 0
    %p187 = por %p185, %p186
    %p188 = scmp.ne.s32.totalorder %s180, %s182
    %p189 = scmp.eq.s32.totalorder %s20, 3
    %p190 = por %p188, %p189
    %p191 = scmp.ne.s32.totalorder %s182, %s183
    %p192 = scmp.eq.s32.totalorder %s20, 0
    %p193 = por %p191, %p192
    %p194 = scmp.ne.s32.totalorder %s182, %s183
    %p195 = scmp.eq.s32.totalorder %s21, 3
    %p196 = por %p194, %p195
    %p198 = scmp.ne.s32.totalorder %s183, %s197
    %p199 = scmp.eq.s32.totalorder %s21, 0
    %p200 = por %p198, %p199
    %s202 = sadd.s32 %s201, 1
    %p205 = scmp.eq.s32.totalorder %s15, 3
    %p206 = scmp.ne.s32.totalorder %s201, %s203
    %p207 = scmp.eq.s32.totalorder %s15, 0
    %p208 = por %p206, %p207
    %p209 = scmp.ne.s32.totalorder %s201, %s203
    %p210 = scmp.eq.s32.totalorder %s20, 3
    %p211 = por %p209, %p210
    %p212 = scmp.ne.s32.totalorder %s203, %s204
    %p213 = scmp.eq.s32.totalorder %s20, 0
    %p214 = por %p212, %p213
    %p215 = scmp.ne.s32.totalorder %s203, %s204
    %p216 = scmp.eq.s32.totalorder %s21, 3
    %p217 = por %p215, %p216
    %p219 = scmp.ne.s32.totalorder %s204, %s218
    %p220 = scmp.eq.s32.totalorder %s21, 0
    %p221 = por %p219, %p220
    %s222 = ssub.s32 %s15, %s22
    %p223 = scmp.eq.s32.totalorder %s222, 0
    %s225 = sadd.s32 %s224, 1
    %s226 = scalar_select %p223, %s224, %s225
    %p229 = pneg %p223
    %p230 = scmp.eq.s32.totalorder %s15, 3
    %p231 = por %p229, %p230
    %p232 = scmp.ne.s32.totalorder %s224, %s227
    %p233 = scmp.eq.s32.totalorder %s15, 0
    %p234 = por %p232, %p233
    %p235 = scmp.ne.s32.totalorder %s224, %s227
    %p236 = scmp.eq.s32.totalorder %s20, 3
    %p237 = por %p235, %p236
    %p238 = scmp.ne.s32.totalorder %s227, %s228
    %p239 = scmp.eq.s32.totalorder %s20, 0
    %p240 = por %p238, %p239
    %p241 = scmp.ne.s32.totalorder %s227, %s228
    %p242 = scmp.eq.s32.totalorder %s21, 3
    %p243 = por %p241, %p242
    %p245 = scmp.ne.s32.totalorder %s228, %s244
    %p246 = scmp.eq.s32.totalorder %s21, 0
    %p247 = por %p245, %p246
    %p248 = scmp.le.s32.totalorder 1, %s15
    %p249 = scmp.lt.s32.totalorder %s15, 5
    %p250 = pnand %p248, %p249
    %p251 = pneg %p250
    // Predicated region
    $region9: #{glvm_vae_forward.1} parent=5 // pred_check
      _
    $region10: #{glvm_vae_forward.1} parent=5 // pred_check_branch
      %253 = sbr.rel (%p250) target = $region12
    $region11: #{glvm_vae_forward.1} parent=5 // pred_region
      %s254 = ssub.s32 %s15, 1
      // Predicated region
      $region13: #{glvm_vae_forward.1} parent=11 // pred_check
        %p255 = pneg %p88
      $region14: #{glvm_vae_forward.1} parent=11 // pred_check_branch
        %257 = sbr.rel (%p255) target = $region16
      $region15: #{glvm_vae_forward.1} parent=11 // pred_region
        _
      $region16: #{glvm_vae_forward.1} parent=11 // pred_fallthru
        _
      // Predicated region
      $region17: #{glvm_vae_forward.1} parent=11 // pred_check
        %p258 = pneg %p109
      $region18: #{glvm_vae_forward.1} parent=11 // pred_check_branch
        %260 = sbr.rel (%p258) target = $region20
      $region19: #{glvm_vae_forward.1} parent=11 // pred_region
        _
      $region20: #{glvm_vae_forward.1} parent=11 // pred_fallthru
        _
      // Predicated region
      $region21: #{glvm_vae_forward.1} parent=11 // pred_check
        %p261 = pneg %p130
      $region22: #{glvm_vae_forward.1} parent=11 // pred_check_branch
        %263 = sbr.rel (%p261) target = $region24
      $region23: #{glvm_vae_forward.1} parent=11 // pred_region
        _
      $region24: #{glvm_vae_forward.1} parent=11 // pred_fallthru
        _
      // Predicated region
      $region25: #{glvm_vae_forward.1} parent=11 // pred_check
        %p264 = pneg %p151
      $region26: #{glvm_vae_forward.1} parent=11 // pred_check_branch
        %266 = sbr.rel (%p264) target = $region28
      $region27: #{glvm_vae_forward.1} parent=11 // pred_region
        _
      $region28: #{glvm_vae_forward.1} parent=11 // pred_fallthru
        _
      // Predicated region
      $region29: #{glvm_vae_forward.1} parent=11 // pred_check
        %p267 = pneg %p172
      $region30: #{glvm_vae_forward.1} parent=11 // pred_check_branch
        %269 = sbr.rel (%p267) target = $region32
      $region31: #{glvm_vae_forward.1} parent=11 // pred_region
        _
      $region32: #{glvm_vae_forward.1} parent=11 // pred_fallthru
        _
      // Predicated region
      $region33: #{glvm_vae_forward.1} parent=11 // pred_check
        %p270 = pneg %p193
      $region34: #{glvm_vae_forward.1} parent=11 // pred_check_branch
        %272 = sbr.rel (%p270) target = $region36
      $region35: #{glvm_vae_forward.1} parent=11 // pred_region
        _
      $region36: #{glvm_vae_forward.1} parent=11 // pred_fallthru
        _
      // Predicated region
      $region37: #{glvm_vae_forward.1} parent=11 // pred_check
        %p273 = pneg %p214
      $region38: #{glvm_vae_forward.1} parent=11 // pred_check_branch
        %275 = sbr.rel (%p273) target = $region40
      $region39: #{glvm_vae_forward.1} parent=11 // pred_region
        _
      $region40: #{glvm_vae_forward.1} parent=11 // pred_fallthru
        _
    $region12: #{glvm_vae_forward.1} parent=5 // pred_fallthru
      _
    %p276 = scmp.lt.s32.totalorder %s15, 4
    // Predicated region
    $region41: #{glvm_vae_forward.1} parent=5 // pred_check
      %p277 = pneg %p276
    $region42: #{glvm_vae_forward.1} parent=5 // pred_check_branch
      %279 = sbr.rel (%p277) target = $region44
    $region43: #{glvm_vae_forward.1} parent=5 // pred_region
      // Predicated region
      $region45: #{glvm_vae_forward.1} parent=43 // pred_check
        %p280 = pneg %p35
      $region46: #{glvm_vae_forward.1} parent=43 // pred_check_branch
        %282 = sbr.rel (%p280) target = $region48
      $region47: #{glvm_vae_forward.1} parent=43 // pred_region
        %s283 = smul.u32 64, %s15
        %p284 = scmp.lt.s32.totalorder %s283, 255
        %s285 = scalar_select %p284, %s283, 255
        %s286 = smul.addr %s285, 8
        %s287 = scalar_lea.vmem %s0, %s286
        %s288 = smul.u32 64, %s15
      $region48: #{glvm_vae_forward.1} parent=43 // pred_fallthru
        _
      // Predicated region
      $region49: #{glvm_vae_forward.1} parent=43 // pred_check
        %p289 = pneg %p61
      $region50: #{glvm_vae_forward.1} parent=43 // pred_check_branch
        %291 = sbr.rel (%p289) target = $region52
      $region51: #{glvm_vae_forward.1} parent=43 // pred_region
        %s292 = smul.u32 64, %s15
        %p293 = scmp.lt.s32.totalorder %s292, 255
        %s294 = scalar_select %p293, %s292, 255
        %s295 = smul.addr %s294, 8
        %s296 = scalar_lea.vmem %s1, %s295
        %s297 = smul.u32 64, %s15
      $region52: #{glvm_vae_forward.1} parent=43 // pred_fallthru
        _
    $region44: #{glvm_vae_forward.1} parent=5 // pred_fallthru
      _
    %p298 = scmp.le.s32.totalorder 1, %s15
    %p299 = scmp.lt.s32.totalorder %s15, 5
    %p300 = pnand %p298, %p299
    %p301 = pneg %p300
    // Predicated region
    $region53: #{glvm_vae_forward.1} parent=5 // pred_check
      _
    $region54: #{glvm_vae_forward.1} parent=5 // pred_check_branch
      %303 = sbr.rel (%p300) target = $region56
    $region55: #{glvm_vae_forward.1} parent=5 // pred_region
      %s304 = ssub.s32 %s15, 1
      %s305 = smul.u32 64, %s20
      %p306 = scmp.lt.s32.totalorder %s305, 255
      %s307 = scalar_select %p306, %s305, 255
      %s308 = smul.addr %s307, 8
      %s309 = scalar_lea.vmem %s0, %s308
      %p310 = pneg %p41
      %p311 = pneg %p38
      %s312 = smul.u32 64, %s20
      %p313 = scmp.lt.s32.totalorder %s312, 255
      %s314 = scalar_select %p313, %s312, 255
      %s315 = smul.addr %s314, 8
      %s316 = scalar_lea.vmem %s1, %s315
      %p317 = pneg %p67
      %p318 = pneg %p64
      %p319 = pneg %p88
      %p320 = pneg %p85
      %p321 = pneg %p109
      %p322 = pneg %p106
      %p323 = pneg %p130
      %p324 = pneg %p127
      %p325 = pneg %p151
      %p326 = pneg %p148
      %p327 = pneg %p172
      %p328 = pneg %p169
      %p329 = pneg %p193
      %p330 = pneg %p190
      %p331 = pneg %p214
      %p332 = pneg %p211
      %p333 = pneg %p240
      %p334 = pneg %p237
      %s335 = smul.u32 64, %s20
      %p336 = scmp.lt.s32.totalorder %s335, 255
      %s337 = scalar_select %p336, %s335, 255
      %s338 = smul.addr %s337, 8
      %s339 = scalar_lea.vmem %s9, %s338
      %s340 = smul.u32 64, %s20
      %p341 = scmp.lt.s32.totalorder %s340, 255
      %s342 = scalar_select %p341, %s340, 255
      %s343 = smul.addr %s342, 8
      %s344 = scalar_lea.vmem %s0, %s343
      %s345 = smul.u32 64, %s20
      %s346 = smul.u32 64, %s20
      %p347 = scmp.lt.s32.totalorder %s346, 255
      %s348 = scalar_select %p347, %s346, 255
      %s349 = smul.addr %s348, 8
      %s350 = scalar_lea.vmem %s1, %s349
      %s351 = smul.u32 64, %s20
      %s352 = smul.u32 64, %s20
      %p353 = scmp.lt.s32.totalorder %s352, 255
      %s354 = scalar_select %p353, %s352, 255
      %s355 = smul.addr %s354, 8
      %s356 = scalar_lea.vmem %s9, %s355
      %s357 = smul.u32 64, %s20
      %v358 = vld [vmem:[%s344] sm:$0xff]
      %v359 = vld [vmem:[%s344 + $0x8] sm:$0xff]
      %v360 = vld [vmem:[%s344 + $0x10] sm:$0xff]
      %v361 = vld [vmem:[%s344 + $0x18] sm:$0xff]
      %v362 = vld [vmem:[%s344 + $0x20] sm:$0xff]
      %v363 = vld [vmem:[%s344 + $0x28] sm:$0xff]
      %v364 = vld [vmem:[%s344 + $0x30] sm:$0xff]
      %v365 = vld [vmem:[%s344 + $0x38] sm:$0xff]
      %v366 = vld [vmem:[%s344 + $0x40] sm:$0xff]
      %v367 = vld [vmem:[%s344 + $0x48] sm:$0xff]
      %v368 = vld [vmem:[%s344 + $0x50] sm:$0xff]
      %v369 = vld [vmem:[%s344 + $0x58] sm:$0xff]
      %v370 = vld [vmem:[%s344 + $0x60] sm:$0xff]
      %v371 = vld [vmem:[%s344 + $0x68] sm:$0xff]
      %v372 = vld [vmem:[%s344 + $0x70] sm:$0xff]
      %v373 = vld [vmem:[%s344 + $0x78] sm:$0xff]
      %v374 = vld [vmem:[%s344 + $0x80] sm:$0xff]
      %v375 = vld [vmem:[%s344 + $0x88] sm:$0xff]
      %v376 = vld [vmem:[%s344 + $0x90] sm:$0xff]
      %v377 = vld [vmem:[%s344 + $0x98] sm:$0xff]
      %v378 = vld [vmem:[%s344 + $0xa0] sm:$0xff]
      %v379 = vld [vmem:[%s344 + $0xa8] sm:$0xff]
      %v380 = vld [vmem:[%s344 + $0xb0] sm:$0xff]
      %v381 = vld [vmem:[%s344 + $0xb8] sm:$0xff]
      %v382 = vld [vmem:[%s344 + $0xc0] sm:$0xff]
      %v383 = vld [vmem:[%s344 + $0xc8] sm:$0xff]
      %v384 = vld [vmem:[%s344 + $0xd0] sm:$0xff]
      %v385 = vld [vmem:[%s344 + $0xd8] sm:$0xff]
      %v386 = vld [vmem:[%s344 + $0xe0] sm:$0xff]
      %v387 = vld [vmem:[%s344 + $0xe8] sm:$0xff]
      %v388 = vld [vmem:[%s344 + $0xf0] sm:$0xff]
      %v389 = vld [vmem:[%s344 + $0xf8] sm:$0xff]
      %v390 = vld [vmem:[%s344 + $0x100] sm:$0xff]
      %v391 = vld [vmem:[%s344 + $0x108] sm:$0xff]
      %v392 = vld [vmem:[%s344 + $0x110] sm:$0xff]
      %v393 = vld [vmem:[%s344 + $0x118] sm:$0xff]
      %v394 = vld [vmem:[%s344 + $0x120] sm:$0xff]
      %v395 = vld [vmem:[%s344 + $0x128] sm:$0xff]
      %v396 = vld [vmem:[%s344 + $0x130] sm:$0xff]
      %v397 = vld [vmem:[%s344 + $0x138] sm:$0xff]
      %v398 = vld [vmem:[%s344 + $0x140] sm:$0xff]
      %v399 = vld [vmem:[%s344 + $0x148] sm:$0xff]
      %v400 = vld [vmem:[%s344 + $0x150] sm:$0xff]
      %v401 = vld [vmem:[%s344 + $0x158] sm:$0xff]
      %v402 = vld [vmem:[%s344 + $0x160] sm:$0xff]
      %v403 = vld [vmem:[%s344 + $0x168] sm:$0xff]
      %v404 = vld [vmem:[%s344 + $0x170] sm:$0xff]
      %v405 = vld [vmem:[%s344 + $0x178] sm:$0xff]
      %v406 = vld [vmem:[%s344 + $0x180] sm:$0xff]
      %v407 = vld [vmem:[%s344 + $0x188] sm:$0xff]
      %v408 = vld [vmem:[%s344 + $0x190] sm:$0xff]
      %v409 = vld [vmem:[%s344 + $0x198] sm:$0xff]
      %v410 = vld [vmem:[%s344 + $0x1a0] sm:$0xff]
      %v411 = vld [vmem:[%s344 + $0x1a8] sm:$0xff]
      %v412 = vld [vmem:[%s344 + $0x1b0] sm:$0xff]
      %v413 = vld [vmem:[%s344 + $0x1b8] sm:$0xff]
      %v414 = vld [vmem:[%s344 + $0x1c0] sm:$0xff]
      %v415 = vld [vmem:[%s344 + $0x1c8] sm:$0xff]
      %v416 = vld [vmem:[%s344 + $0x1d0] sm:$0xff]
      %v417 = vld [vmem:[%s344 + $0x1d8] sm:$0xff]
      %v418 = vld [vmem:[%s344 + $0x1e0] sm:$0xff]
      %v419 = vld [vmem:[%s344 + $0x1e8] sm:$0xff]
      %v420 = vld [vmem:[%s344 + $0x1f0] sm:$0xff]
      %v421 = vld [vmem:[%s344 + $0x1f8] sm:$0xff]
      %v422 = vld [vmem:[%s2] sm:$0xff]
      %v423 = vld [vmem:[%s2 + $0x8] sm:$0xff]
      %v424 = vld [vmem:[%s2 + $0x10] sm:$0xff]
      %v425 = vld [vmem:[%s2 + $0x18] sm:$0xff]
      %v426 = vld [vmem:[%s3] sm:$0x1]
      %v428 = vlaneseq
      %v429 = vshrl.u32 %v428, 7
      %v430 = vsub.s32 0, %v429
      %v431 = vrot.slane %v426, %v430
      %vm433 = vcmask 261120
      %v435 = vsel %vm433, %v358, 0
      %v438 = vsel %vm433, %v359, 0
      %v441 = vsel %vm433, %v360, 0
      %v444 = vsel %vm433, %v361, 0
      %v447 = vsel %vm433, %v362, 0
      %v450 = vsel %vm433, %v363, 0
      %v453 = vsel %vm433, %v364, 0
      %v456 = vsel %vm433, %v365, 0
      %v459 = vsel %vm433, %v366, 0
      %v462 = vsel %vm433, %v367, 0
      %v465 = vsel %vm433, %v368, 0
      %v468 = vsel %vm433, %v369, 0
      %v471 = vsel %vm433, %v370, 0
      %v474 = vsel %vm433, %v371, 0
      %v477 = vsel %vm433, %v372, 0
      %v480 = vsel %vm433, %v373, 0
      %v483 = vsel %vm433, %v374, 0
      %v486 = vsel %vm433, %v375, 0
      %v489 = vsel %vm433, %v376, 0
      %v492 = vsel %vm433, %v377, 0
      %v495 = vsel %vm433, %v378, 0
      %v498 = vsel %vm433, %v379, 0
      %v501 = vsel %vm433, %v380, 0
      %v504 = vsel %vm433, %v381, 0
      %v507 = vsel %vm433, %v382, 0
      %v510 = vsel %vm433, %v383, 0
      %v513 = vsel %vm433, %v384, 0
      %v516 = vsel %vm433, %v385, 0
      %v519 = vsel %vm433, %v386, 0
      %v522 = vsel %vm433, %v387, 0
      %v525 = vsel %vm433, %v388, 0
      %v528 = vsel %vm433, %v389, 0
      %v531 = vsel %vm433, %v390, 0
      %v534 = vsel %vm433, %v391, 0
      %v537 = vsel %vm433, %v392, 0
      %v540 = vsel %vm433, %v393, 0
      %v543 = vsel %vm433, %v394, 0
      %v546 = vsel %vm433, %v395, 0
      %v549 = vsel %vm433, %v396, 0
      %v552 = vsel %vm433, %v397, 0
      %v555 = vsel %vm433, %v398, 0
      %v558 = vsel %vm433, %v399, 0
      %v561 = vsel %vm433, %v400, 0
      %v564 = vsel %vm433, %v401, 0
      %v567 = vsel %vm433, %v402, 0
      %v570 = vsel %vm433, %v403, 0
      %v573 = vsel %vm433, %v404, 0
      %v576 = vsel %vm433, %v405, 0
      %v579 = vsel %vm433, %v406, 0
      %v582 = vsel %vm433, %v407, 0
      %v585 = vsel %vm433, %v408, 0
      %v588 = vsel %vm433, %v409, 0
      %v591 = vsel %vm433, %v410, 0
      %v594 = vsel %vm433, %v411, 0
      %v597 = vsel %vm433, %v412, 0
      %v600 = vsel %vm433, %v413, 0
      %v603 = vsel %vm433, %v414, 0
      %v606 = vsel %vm433, %v415, 0
      %v609 = vsel %vm433, %v416, 0
      %v612 = vsel %vm433, %v417, 0
      %v615 = vsel %vm433, %v418, 0
      %v618 = vsel %vm433, %v419, 0
      %v621 = vsel %vm433, %v420, 0
      %v624 = vsel %vm433, %v421, 0
      %626 = vmatprep.subr.mxu0 0.0
      %627 = vmatpush1.msra.mxu0 %v422
      %628 = vmatprep.subr.mxu0 0.0
      %629 = vmatpush1.msra.mxu0 %v423
      %630 = vmatprep.subr.mxu0 0.0
      %631 = vmatpush1.msra.mxu0 %v424
      %632 = vmatprep.subr.mxu0 0.0
      %633 = vmatpush1.msra.mxu0 %v425
      %634 = vmatprep.subr.mxu0 0.0
      %635 = vmatpush1.msra.mxu0 0.0
      %636 = vmatprep.subr.mxu0 0.0
      %637 = vmatpush1.msra.mxu0 0.0
      %638 = vmatprep.subr.mxu0 0.0
      %639 = vmatpush1.msra.mxu0 0.0
      %640 = vmatprep.subr.mxu0 0.0
      %641 = vmatpush1.msra.mxu0 0.0
      %642 = vmatprep.subr.mxu0 0.0
      %643 = vmatpush1.msra.mxu0 0.0
      %644 = vmatprep.subr.mxu0 0.0
      %645 = vmatpush1.msra.mxu0 0.0
      %646 = vmatprep.subr.mxu0 0.0
      %647 = vmatpush1.msra.mxu0 0.0
      %648 = vmatprep.subr.mxu0 0.0
      %649 = vmatpush1.msra.mxu0 0.0
      %650 = vmatprep.subr.mxu0 0.0
      %651 = vmatpush1.msra.mxu0 0.0
      %652 = vmatprep.subr.mxu0 0.0
      %653 = vmatpush1.msra.mxu0 0.0
      %654 = vmatprep.subr.mxu0 0.0
      %655 = vmatpush1.msra.mxu0 0.0
      %656 = vmatprep.subr.mxu0 0.0
      %657 = vmatpush1.msra.mxu0 0.0
      %658 = vmatprep.subr.mxu0 0.0
      %659 = vmatpush1.msra.mxu0 0.0
      %660 = vmatprep.subr.mxu0 0.0
      %661 = vmatpush1.msra.mxu0 0.0
      %662 = vmatprep.subr.mxu0 0.0
      %663 = vmatpush1.msra.mxu0 0.0
      %664 = vmatprep.subr.mxu0 0.0
      %665 = vmatpush1.msra.mxu0 0.0
      %666 = vmatprep.subr.mxu0 0.0
      %667 = vmatpush1.msra.mxu0 0.0
      %668 = vmatprep.subr.mxu0 0.0
      %669 = vmatpush1.msra.mxu0 0.0
      %670 = vmatprep.subr.mxu0 0.0
      %671 = vmatpush1.msra.mxu0 0.0
      %672 = vmatprep.subr.mxu0 0.0
      %673 = vmatpush1.msra.mxu0 0.0
      %674 = vmatprep.subr.mxu0 0.0
      %675 = vmatpush1.msra.mxu0 0.0
      %676 = vmatprep.subr.mxu0 0.0
      %677 = vmatpush1.msra.mxu0 0.0
      %678 = vmatprep.subr.mxu0 0.0
      %679 = vmatpush1.msra.mxu0 0.0
      %680 = vmatprep.subr.mxu0 0.0
      %681 = vmatpush1.msra.mxu0 0.0
      %682 = vmatprep.subr.mxu0 0.0
      %683 = vmatpush1.msra.mxu0 0.0
      %684 = vmatprep.subr.mxu0 0.0
      %685 = vmatpush1.msra.mxu0 0.0
      %686 = vmatprep.subr.mxu0 0.0
      %687 = vmatpush1.msra.mxu0 0.0
      %688 = vmatprep.subr.mxu0 0.0
      %689 = vmatpush1.msra.mxu0 0.0
      %690 = vmatprep.mubr.f32.mxu0 0.0
      %691 = vmatmul.mubr.f32.gmra.mrb[0].mxu0 %v435
      %v692 = vpop.f32.mrb[0].mxu0
      %v693 = vadd.f32 %v431, %v692
      %v694 = vpop.f32.mrb[0].mxu0
      %695 = vmatprep.mubr.f32.mxu0 0.0
      %696 = vmatmul.mubr.f32.gmra.mrb[0].mxu0 %v438
      %v697 = vpop.f32.mrb[0].mxu0
      %v698 = vadd.f32 %v431, %v697
      %v699 = vpop.f32.mrb[0].mxu0
      %700 = vmatprep.mubr.f32.mxu0 0.0
      %701 = vmatmul.mubr.f32.gmra.mrb[0].mxu0 %v441
      %v702 = vpop.f32.mrb[0].mxu0
      %v703 = vadd.f32 %v431, %v702
      %v704 = vpop.f32.mrb[0].mxu0
      %705 = vmatprep.mubr.f32.mxu0 0.0
      %706 = vmatmul.mubr.f32.gmra.mrb[0].mxu0 %v444
      %v707 = vpop.f32.mrb[0].mxu0
      %v708 = vadd.f32 %v431, %v707
      %v709 = vpop.f32.mrb[0].mxu0
      %710 = vmatprep.mubr.f32.mxu0 0.0
      %711 = vmatmul.mubr.f32.gmra.mrb[0].mxu0 %v447
      %v712 = vpop.f32.mrb[0].mxu0
      %v713 = vadd.f32 %v431, %v712
      %v714 = vpop.f32.mrb[0].mxu0
      %715 = vmatprep.mubr.f32.mxu0 0.0
      %716 = vmatmul.mubr.f32.gmra.mrb[0].mxu0 %v450
      %v717 = vpop.f32.mrb[0].mxu0
      %v718 = vadd.f32 %v431, %v717
      %v719 = vpop.f32.mrb[0].mxu0
      %720 = vmatprep.mubr.f32.mxu0 0.0
      %721 = vmatmul.mubr.f32.gmra.mrb[0].mxu0 %v453
      %v722 = vpop.f32.mrb[0].mxu0
      %v723 = vadd.f32 %v431, %v722
      %v724 = vpop.f32.mrb[0].mxu0
      %725 = vmatprep.mubr.f32.mxu0 0.0
      %726 = vmatmul.mubr.f32.gmra.mrb[0].mxu0 %v456
      %v727 = vpop.f32.mrb[0].mxu0
      %v728 = vadd.f32 %v431, %v727
      %v729 = vpop.f32.mrb[0].mxu0
      %730 = vmatprep.mubr.f32.mxu0 0.0
      %731 = vmatmul.mubr.f32.gmra.mrb[0].mxu0 %v459
      %v732 = vpop.f32.mrb[0].mxu0
      %v733 = vadd.f32 %v431, %v732
      %v734 = vpop.f32.mrb[0].mxu0
      %735 = vmatprep.mubr.f32.mxu0 0.0
      %736 = vmatmul.mubr.f32.gmra.mrb[0].mxu0 %v462
      %v737 = vpop.f32.mrb[0].mxu0
      %v738 = vadd.f32 %v431, %v737
      %v739 = vpop.f32.mrb[0].mxu0
      %740 = vmatprep.mubr.f32.mxu0 0.0
      %741 = vmatmul.mubr.f32.gmra.mrb[0].mxu0 %v465
      %v742 = vpop.f32.mrb[0].mxu0
      %v743 = vadd.f32 %v431, %v742
      %v744 = vpop.f32.mrb[0].mxu0
      %745 = vmatprep.mubr.f32.mxu0 0.0
      %746 = vmatmul.mubr.f32.gmra.mrb[0].mxu0 %v468
      %v747 = vpop.f32.mrb[0].mxu0
      %v748 = vadd.f32 %v431, %v747
      %v749 = vpop.f32.mrb[0].mxu0
      %750 = vmatprep.mubr.f32.mxu0 0.0
      %751 = vmatmul.mubr.f32.gmra.mrb[0].mxu0 %v471
      %v752 = vpop.f32.mrb[0].mxu0
      %v753 = vadd.f32 %v431, %v752
      %v754 = vpop.f32.mrb[0].mxu0
      %755 = vmatprep.mubr.f32.mxu0 0.0
      %756 = vmatmul.mubr.f32.gmra.mrb[0].mxu0 %v474
      %v757 = vpop.f32.mrb[0].mxu0
      %v758 = vadd.f32 %v431, %v757
      %v759 = vpop.f32.mrb[0].mxu0
      %760 = vmatprep.mubr.f32.mxu0 0.0
      %761 = vmatmul.mubr.f32.gmra.mrb[0].mxu0 %v477
      %v762 = vpop.f32.mrb[0].mxu0
      %v763 = vadd.f32 %v431, %v762
      %v764 = vpop.f32.mrb[0].mxu0
      %765 = vmatprep.mubr.f32.mxu0 0.0
      %766 = vmatmul.mubr.f32.gmra.mrb[0].mxu0 %v480
      %v767 = vpop.f32.mrb[0].mxu0
      %v768 = vadd.f32 %v431, %v767
      %v769 = vpop.f32.mrb[0].mxu0
      %770 = vmatprep.mubr.f32.mxu0 0.0
      %771 = vmatmul.mubr.f32.gmra.mrb[0].mxu0 %v483
      %v772 = vpop.f32.mrb[0].mxu0
      %v773 = vadd.f32 %v431, %v772
      %v774 = vpop.f32.mrb[0].mxu0
      %775 = vmatprep.mubr.f32.mxu0 0.0
      %776 = vmatmul.mubr.f32.gmra.mrb[0].mxu0 %v486
      %v777 = vpop.f32.mrb[0].mxu0
      %v778 = vadd.f32 %v431, %v777
      %v779 = vpop.f32.mrb[0].mxu0
      %780 = vmatprep.mubr.f32.mxu0 0.0
      %781 = vmatmul.mubr.f32.gmra.mrb[0].mxu0 %v489
      %v782 = vpop.f32.mrb[0].mxu0
      %v783 = vadd.f32 %v431, %v782
      %v784 = vpop.f32.mrb[0].mxu0
      %785 = vmatprep.mubr.f32.mxu0 0.0
      %786 = vmatmul.mubr.f32.gmra.mrb[0].mxu0 %v492
      %v787 = vpop.f32.mrb[0].mxu0
      %v788 = vadd.f32 %v431, %v787
      %v789 = vpop.f32.mrb[0].mxu0
      %790 = vmatprep.mubr.f32.mxu0 0.0
      %791 = vmatmul.mubr.f32.gmra.mrb[0].mxu0 %v495
      %v792 = vpop.f32.mrb[0].mxu0
      %v793 = vadd.f32 %v431, %v792
      %v794 = vpop.f32.mrb[0].mxu0
      %795 = vmatprep.mubr.f32.mxu0 0.0
      %796 = vmatmul.mubr.f32.gmra.mrb[0].mxu0 %v498
      %v797 = vpop.f32.mrb[0].mxu0
      %v798 = vadd.f32 %v431, %v797
      %v799 = vpop.f32.mrb[0].mxu0
      %800 = vmatprep.mubr.f32.mxu0 0.0
      %801 = vmatmul.mubr.f32.gmra.mrb[0].mxu0 %v501
      %v802 = vpop.f32.mrb[0].mxu0
      %v803 = vadd.f32 %v431, %v802
      %v804 = vpop.f32.mrb[0].mxu0
      %805 = vmatprep.mubr.f32.mxu0 0.0
      %806 = vmatmul.mubr.f32.gmra.mrb[0].mxu0 %v504
      %v807 = vpop.f32.mrb[0].mxu0
      %v808 = vadd.f32 %v431, %v807
      %v809 = vpop.f32.mrb[0].mxu0
      %810 = vmatprep.mubr.f32.mxu0 0.0
      %811 = vmatmul.mubr.f32.gmra.mrb[0].mxu0 %v507
      %v812 = vpop.f32.mrb[0].mxu0
      %v813 = vadd.f32 %v431, %v812
      %v814 = vpop.f32.mrb[0].mxu0
      %815 = vmatprep.mubr.f32.mxu0 0.0
      %816 = vmatmul.mubr.f32.gmra.mrb[0].mxu0 %v510
      %v817 = vpop.f32.mrb[0].mxu0
      %v818 = vadd.f32 %v431, %v817
      %v819 = vpop.f32.mrb[0].mxu0
      %820 = vmatprep.mubr.f32.mxu0 0.0
      %821 = vmatmul.mubr.f32.gmra.mrb[0].mxu0 %v513
      %v822 = vpop.f32.mrb[0].mxu0
      %v823 = vadd.f32 %v431, %v822
      %v824 = vpop.f32.mrb[0].mxu0
      %825 = vmatprep.mubr.f32.mxu0 0.0
      %826 = vmatmul.mubr.f32.gmra.mrb[0].mxu0 %v516
      %v827 = vpop.f32.mrb[0].mxu0
      %v828 = vadd.f32 %v431, %v827
      %v829 = vpop.f32.mrb[0].mxu0
      %830 = vmatprep.mubr.f32.mxu0 0.0
      %831 = vmatmul.mubr.f32.gmra.mrb[0].mxu0 %v519
      %v832 = vpop.f32.mrb[0].mxu0
      %v833 = vadd.f32 %v431, %v832
      %v834 = vpop.f32.mrb[0].mxu0
      %835 = vmatprep.mubr.f32.mxu0 0.0
      %836 = vmatmul.mubr.f32.gmra.mrb[0].mxu0 %v522
      %v837 = vpop.f32.mrb[0].mxu0
      %v838 = vadd.f32 %v431, %v837
      %v839 = vpop.f32.mrb[0].mxu0
      %840 = vmatprep.mubr.f32.mxu0 0.0
      %841 = vmatmul.mubr.f32.gmra.mrb[0].mxu0 %v525
      %v842 = vpop.f32.mrb[0].mxu0
      %v843 = vadd.f32 %v431, %v842
      %v844 = vpop.f32.mrb[0].mxu0
      %845 = vmatprep.mubr.f32.mxu0 0.0
      %846 = vmatmul.mubr.f32.gmra.mrb[0].mxu0 %v528
      %v847 = vpop.f32.mrb[0].mxu0
      %v848 = vadd.f32 %v431, %v847
      %v849 = vpop.f32.mrb[0].mxu0
      %850 = vmatprep.mubr.f32.mxu0 0.0
      %851 = vmatmul.mubr.f32.gmra.mrb[0].mxu0 %v531
      %v852 = vpop.f32.mrb[0].mxu0
      %v853 = vadd.f32 %v431, %v852
      %v854 = vpop.f32.mrb[0].mxu0
      %855 = vmatprep.mubr.f32.mxu0 0.0
      %856 = vmatmul.mubr.f32.gmra.mrb[0].mxu0 %v534
      %v857 = vpop.f32.mrb[0].mxu0
      %v858 = vadd.f32 %v431, %v857
      %v859 = vpop.f32.mrb[0].mxu0
      %860 = vmatprep.mubr.f32.mxu0 0.0
      %861 = vmatmul.mubr.f32.gmra.mrb[0].mxu0 %v537
      %v862 = vpop.f32.mrb[0].mxu0
      %v863 = vadd.f32 %v431, %v862
      %v864 = vpop.f32.mrb[0].mxu0
      %865 = vmatprep.mubr.f32.mxu0 0.0
      %866 = vmatmul.mubr.f32.gmra.mrb[0].mxu0 %v540
      %v867 = vpop.f32.mrb[0].mxu0
      %v868 = vadd.f32 %v431, %v867
      %v869 = vpop.f32.mrb[0].mxu0
      %870 = vmatprep.mubr.f32.mxu0 0.0
      %871 = vmatmul.mubr.f32.gmra.mrb[0].mxu0 %v543
      %v872 = vpop.f32.mrb[0].mxu0
      %v873 = vadd.f32 %v431, %v872
      %v874 = vpop.f32.mrb[0].mxu0
      %875 = vmatprep.mubr.f32.mxu0 0.0
      %876 = vmatmul.mubr.f32.gmra.mrb[0].mxu0 %v546
      %v877 = vpop.f32.mrb[0].mxu0
      %v878 = vadd.f32 %v431, %v877
      %v879 = vpop.f32.mrb[0].mxu0
      %880 = vmatprep.mubr.f32.mxu0 0.0
      %881 = vmatmul.mubr.f32.gmra.mrb[0].mxu0 %v549
      %v882 = vpop.f32.mrb[0].mxu0
      %v883 = vadd.f32 %v431, %v882
      %v884 = vpop.f32.mrb[0].mxu0
      %885 = vmatprep.mubr.f32.mxu0 0.0
      %886 = vmatmul.mubr.f32.gmra.mrb[0].mxu0 %v552
      %v887 = vpop.f32.mrb[0].mxu0
      %v888 = vadd.f32 %v431, %v887
      %v889 = vpop.f32.mrb[0].mxu0
      %890 = vmatprep.mubr.f32.mxu0 0.0
      %891 = vmatmul.mubr.f32.gmra.mrb[0].mxu0 %v555
      %v892 = vpop.f32.mrb[0].mxu0
      %v893 = vadd.f32 %v431, %v892
      %v894 = vpop.f32.mrb[0].mxu0
      %895 = vmatprep.mubr.f32.mxu0 0.0
      %896 = vmatmul.mubr.f32.gmra.mrb[0].mxu0 %v558
      %v897 = vpop.f32.mrb[0].mxu0
      %v898 = vadd.f32 %v431, %v897
      %v899 = vpop.f32.mrb[0].mxu0
      %900 = vmatprep.mubr.f32.mxu0 0.0
      %901 = vmatmul.mubr.f32.gmra.mrb[0].mxu0 %v561
      %v902 = vpop.f32.mrb[0].mxu0
      %v903 = vadd.f32 %v431, %v902
      %v904 = vpop.f32.mrb[0].mxu0
      %905 = vmatprep.mubr.f32.mxu0 0.0
      %906 = vmatmul.mubr.f32.gmra.mrb[0].mxu0 %v564
      %v907 = vpop.f32.mrb[0].mxu0
      %v908 = vadd.f32 %v431, %v907
      %v909 = vpop.f32.mrb[0].mxu0
      %910 = vmatprep.mubr.f32.mxu0 0.0
      %911 = vmatmul.mubr.f32.gmra.mrb[0].mxu0 %v567
      %v912 = vpop.f32.mrb[0].mxu0
      %v913 = vadd.f32 %v431, %v912
      %v914 = vpop.f32.mrb[0].mxu0
      %915 = vmatprep.mubr.f32.mxu0 0.0
      %916 = vmatmul.mubr.f32.gmra.mrb[0].mxu0 %v570
      %v917 = vpop.f32.mrb[0].mxu0
      %v918 = vadd.f32 %v431, %v917
      %v919 = vpop.f32.mrb[0].mxu0
      %920 = vmatprep.mubr.f32.mxu0 0.0
      %921 = vmatmul.mubr.f32.gmra.mrb[0].mxu0 %v573
      %v922 = vpop.f32.mrb[0].mxu0
      %v923 = vadd.f32 %v431, %v922
      %v924 = vpop.f32.mrb[0].mxu0
      %925 = vmatprep.mubr.f32.mxu0 0.0
      %926 = vmatmul.mubr.f32.gmra.mrb[0].mxu0 %v576
      %v927 = vpop.f32.mrb[0].mxu0
      %v928 = vadd.f32 %v431, %v927
      %v929 = vpop.f32.mrb[0].mxu0
      %930 = vmatprep.mubr.f32.mxu0 0.0
      %931 = vmatmul.mubr.f32.gmra.mrb[0].mxu0 %v579
      %v932 = vpop.f32.mrb[0].mxu0
      %v933 = vadd.f32 %v431, %v932
      %v934 = vpop.f32.mrb[0].mxu0
      %935 = vmatprep.mubr.f32.mxu0 0.0
      %936 = vmatmul.mubr.f32.gmra.mrb[0].mxu0 %v582
      %v937 = vpop.f32.mrb[0].mxu0
      %v938 = vadd.f32 %v431, %v937
      %v939 = vpop.f32.mrb[0].mxu0
      %940 = vmatprep.mubr.f32.mxu0 0.0
      %941 = vmatmul.mubr.f32.gmra.mrb[0].mxu0 %v585
      %v942 = vpop.f32.mrb[0].mxu0
      %v943 = vadd.f32 %v431, %v942
      %v944 = vpop.f32.mrb[0].mxu0
      %945 = vmatprep.mubr.f32.mxu0 0.0
      %946 = vmatmul.mubr.f32.gmra.mrb[0].mxu0 %v588
      %v947 = vpop.f32.mrb[0].mxu0
      %v948 = vadd.f32 %v431, %v947
      %v949 = vpop.f32.mrb[0].mxu0
      %950 = vmatprep.mubr.f32.mxu0 0.0
      %951 = vmatmul.mubr.f32.gmra.mrb[0].mxu0 %v591
      %v952 = vpop.f32.mrb[0].mxu0
      %v953 = vadd.f32 %v431, %v952
      %v954 = vpop.f32.mrb[0].mxu0
      %955 = vmatprep.mubr.f32.mxu0 0.0
      %956 = vmatmul.mubr.f32.gmra.mrb[0].mxu0 %v594
      %v957 = vpop.f32.mrb[0].mxu0
      %v958 = vadd.f32 %v431, %v957
      %v959 = vpop.f32.mrb[0].mxu0
      %960 = vmatprep.mubr.f32.mxu0 0.0
      %961 = vmatmul.mubr.f32.gmra.mrb[0].mxu0 %v597
      %v962 = vpop.f32.mrb[0].mxu0
      %v963 = vadd.f32 %v431, %v962
      %v964 = vpop.f32.mrb[0].mxu0
      %965 = vmatprep.mubr.f32.mxu0 0.0
      %966 = vmatmul.mubr.f32.gmra.mrb[0].mxu0 %v600
      %v967 = vpop.f32.mrb[0].mxu0
      %v968 = vadd.f32 %v431, %v967
      %v969 = vpop.f32.mrb[0].mxu0
      %970 = vmatprep.mubr.f32.mxu0 0.0
      %971 = vmatmul.mubr.f32.gmra.mrb[0].mxu0 %v603
      %v972 = vpop.f32.mrb[0].mxu0
      %v973 = vadd.f32 %v431, %v972
      %v974 = vpop.f32.mrb[0].mxu0
      %975 = vmatprep.mubr.f32.mxu0 0.0
      %976 = vmatmul.mubr.f32.gmra.mrb[0].mxu0 %v606
      %v977 = vpop.f32.mrb[0].mxu0
      %v978 = vadd.f32 %v431, %v977
      %v979 = vpop.f32.mrb[0].mxu0
      %980 = vmatprep.mubr.f32.mxu0 0.0
      %981 = vmatmul.mubr.f32.gmra.mrb[0].mxu0 %v609
      %v982 = vpop.f32.mrb[0].mxu0
      %v983 = vadd.f32 %v431, %v982
      %v984 = vpop.f32.mrb[0].mxu0
      %985 = vmatprep.mubr.f32.mxu0 0.0
      %986 = vmatmul.mubr.f32.gmra.mrb[0].mxu0 %v612
      %v987 = vpop.f32.mrb[0].mxu0
      %v988 = vadd.f32 %v431, %v987
      %v989 = vpop.f32.mrb[0].mxu0
      %990 = vmatprep.mubr.f32.mxu0 0.0
      %991 = vmatmul.mubr.f32.gmra.mrb[0].mxu0 %v615
      %v992 = vpop.f32.mrb[0].mxu0
      %v993 = vadd.f32 %v431, %v992
      %v994 = vpop.f32.mrb[0].mxu0
      %995 = vmatprep.mubr.f32.mxu0 0.0
      %996 = vmatmul.mubr.f32.gmra.mrb[0].mxu0 %v618
      %v997 = vpop.f32.mrb[0].mxu0
      %v998 = vadd.f32 %v431, %v997
      %v999 = vpop.f32.mrb[0].mxu0
      %1000 = vmatprep.mubr.f32.mxu0 0.0
      %1001 = vmatmul.mubr.f32.gmra.mrb[0].mxu0 %v621
      %v1002 = vpop.f32.mrb[0].mxu0
      %v1003 = vadd.f32 %v431, %v1002
      %v1004 = vpop.f32.mrb[0].mxu0
      %1005 = vmatprep.mubr.f32.mxu0 0.0
      %1006 = vmatmul.mubr.f32.gmra.mrb[0].mxu0 %v624
      %v1007 = vpop.f32.mrb[0].mxu0
      %v1008 = vadd.f32 %v431, %v1007
      %v1009 = vpop.f32.mrb[0].mxu0
      %1010 = vdwg.mxu0
      %v1011 = vld [vmem:[%s4] sm:$0xff]
      %v1012 = vld [vmem:[%s4 + $0x8] sm:$0xff]
      %v1013 = vld [vmem:[%s4 + $0x10] sm:$0xff]
      %v1014 = vld [vmem:[%s4 + $0x18] sm:$0xff]
      %v1015 = vld [vmem:[%s5] sm:$0x1]
      %v1017 = vlaneseq
      %v1018 = vshrl.u32 %v1017, 7
      %v1019 = vsub.s32 0, %v1018
      %v1020 = vrot.slane %v1015, %v1019
      %1022 = vmatprep.subr.mxu0 0.0
      %1023 = vmatpush1.msra.mxu0 %v1011
      %1024 = vmatprep.subr.mxu0 0.0
      %1025 = vmatpush1.msra.mxu0 %v1012
      %1026 = vmatprep.subr.mxu0 0.0
      %1027 = vmatpush1.msra.mxu0 %v1013
      %1028 = vmatprep.subr.mxu0 0.0
      %1029 = vmatpush1.msra.mxu0 %v1014
      %1030 = vmatprep.subr.mxu0 0.0
      %1031 = vmatpush1.msra.mxu0 0.0
      %1032 = vmatprep.subr.mxu0 0.0
      %1033 = vmatpush1.msra.mxu0 0.0
      %1034 = vmatprep.subr.mxu0 0.0
      %1035 = vmatpush1.msra.mxu0 0.0
      %1036 = vmatprep.subr.mxu0 0.0
      %1037 = vmatpush1.msra.mxu0 0.0
      %1038 = vmatprep.subr.mxu0 0.0
      %1039 = vmatpush1.msra.mxu0 0.0
      %1040 = vmatprep.subr.mxu0 0.0
      %1041 = vmatpush1.msra.mxu0 0.0
      %1042 = vmatprep.subr.mxu0 0.0
      %1043 = vmatpush1.msra.mxu0 0.0
      %1044 = vmatprep.subr.mxu0 0.0
      %1045 = vmatpush1.msra.mxu0 0.0
      %1046 = vmatprep.subr.mxu0 0.0
      %1047 = vmatpush1.msra.mxu0 0.0
      %1048 = vmatprep.subr.mxu0 0.0
      %1049 = vmatpush1.msra.mxu0 0.0
      %1050 = vmatprep.subr.mxu0 0.0
      %1051 = vmatpush1.msra.mxu0 0.0
      %1052 = vmatprep.subr.mxu0 0.0
      %1053 = vmatpush1.msra.mxu0 0.0
      %1054 = vmatprep.subr.mxu0 0.0
      %1055 = vmatpush1.msra.mxu0 0.0
      %1056 = vmatprep.subr.mxu0 0.0
      %1057 = vmatpush1.msra.mxu0 0.0
      %1058 = vmatprep.subr.mxu0 0.0
      %1059 = vmatpush1.msra.mxu0 0.0
      %1060 = vmatprep.subr.mxu0 0.0
      %1061 = vmatpush1.msra.mxu0 0.0
      %1062 = vmatprep.subr.mxu0 0.0
      %1063 = vmatpush1.msra.mxu0 0.0
      %1064 = vmatprep.subr.mxu0 0.0
      %1065 = vmatpush1.msra.mxu0 0.0
      %1066 = vmatprep.subr.mxu0 0.0
      %1067 = vmatpush1.msra.mxu0 0.0
      %1068 = vmatprep.subr.mxu0 0.0
      %1069 = vmatpush1.msra.mxu0 0.0
      %1070 = vmatprep.subr.mxu0 0.0
      %1071 = vmatpush1.msra.mxu0 0.0
      %1072 = vmatprep.subr.mxu0 0.0
      %1073 = vmatpush1.msra.mxu0 0.0
      %1074 = vmatprep.subr.mxu0 0.0
      %1075 = vmatpush1.msra.mxu0 0.0
      %1076 = vmatprep.subr.mxu0 0.0
      %1077 = vmatpush1.msra.mxu0 0.0
      %1078 = vmatprep.subr.mxu0 0.0
      %1079 = vmatpush1.msra.mxu0 0.0
      %1080 = vmatprep.subr.mxu0 0.0
      %1081 = vmatpush1.msra.mxu0 0.0
      %1082 = vmatprep.subr.mxu0 0.0
      %1083 = vmatpush1.msra.mxu0 0.0
      %1084 = vmatprep.subr.mxu0 0.0
      %1085 = vmatpush1.msra.mxu0 0.0
      %1086 = vmatprep.mubr.f32.mxu0 0.0
      %1087 = vmatmul.mubr.f32.gmra.mrb[0].mxu0 %v435
      %v1088 = vpop.f32.mrb[0].mxu0
      %v1089 = vadd.f32 %v1020, %v1088
      %v1090 = vpop.f32.mrb[0].mxu0
      %1091 = vmatprep.mubr.f32.mxu0 0.0
      %1092 = vmatmul.mubr.f32.gmra.mrb[0].mxu0 %v438
      %v1093 = vpop.f32.mrb[0].mxu0
      %v1094 = vadd.f32 %v1020, %v1093
      %v1095 = vpop.f32.mrb[0].mxu0
      %1096 = vmatprep.mubr.f32.mxu0 0.0
      %1097 = vmatmul.mubr.f32.gmra.mrb[0].mxu0 %v441
      %v1098 = vpop.f32.mrb[0].mxu0
      %v1099 = vadd.f32 %v1020, %v1098
      %v1100 = vpop.f32.mrb[0].mxu0
      %1101 = vmatprep.mubr.f32.mxu0 0.0
      %1102 = vmatmul.mubr.f32.gmra.mrb[0].mxu0 %v444
      %v1103 = vpop.f32.mrb[0].mxu0
      %v1104 = vadd.f32 %v1020, %v1103
      %v1105 = vpop.f32.mrb[0].mxu0
      %1106 = vmatprep.mubr.f32.mxu0 0.0
      %1107 = vmatmul.mubr.f32.gmra.mrb[0].mxu0 %v447
      %v1108 = vpop.f32.mrb[0].mxu0
      %v1109 = vadd.f32 %v1020, %v1108
      %v1110 = vpop.f32.mrb[0].mxu0
      %1111 = vmatprep.mubr.f32.mxu0 0.0
      %1112 = vmatmul.mubr.f32.gmra.mrb[0].mxu0 %v450
      %v1113 = vpop.f32.mrb[0].mxu0
      %v1114 = vadd.f32 %v1020, %v1113
      %v1115 = vpop.f32.mrb[0].mxu0
      %1116 = vmatprep.mubr.f32.mxu0 0.0
      %1117 = vmatmul.mubr.f32.gmra.mrb[0].mxu0 %v453
      %v1118 = vpop.f32.mrb[0].mxu0
      %v1119 = vadd.f32 %v1020, %v1118
      %v1120 = vpop.f32.mrb[0].mxu0
      %1121 = vmatprep.mubr.f32.mxu0 0.0
      %1122 = vmatmul.mubr.f32.gmra.mrb[0].mxu0 %v456
      %v1123 = vpop.f32.mrb[0].mxu0
      %v1124 = vadd.f32 %v1020, %v1123
      %v1125 = vpop.f32.mrb[0].mxu0
      %1126 = vmatprep.mubr.f32.mxu0 0.0
      %1127 = vmatmul.mubr.f32.gmra.mrb[0].mxu0 %v459
      %v1128 = vpop.f32.mrb[0].mxu0
      %v1129 = vadd.f32 %v1020, %v1128
      %v1130 = vpop.f32.mrb[0].mxu0
      %1131 = vmatprep.mubr.f32.mxu0 0.0
      %1132 = vmatmul.mubr.f32.gmra.mrb[0].mxu0 %v462
      %v1133 = vpop.f32.mrb[0].mxu0
      %v1134 = vadd.f32 %v1020, %v1133
      %v1135 = vpop.f32.mrb[0].mxu0
      %1136 = vmatprep.mubr.f32.mxu0 0.0
      %1137 = vmatmul.mubr.f32.gmra.mrb[0].mxu0 %v465
      %v1138 = vpop.f32.mrb[0].mxu0
      %v1139 = vadd.f32 %v1020, %v1138
      %v1140 = vpop.f32.mrb[0].mxu0
      %1141 = vmatprep.mubr.f32.mxu0 0.0
      %1142 = vmatmul.mubr.f32.gmra.mrb[0].mxu0 %v468
      %v1143 = vpop.f32.mrb[0].mxu0
      %v1144 = vadd.f32 %v1020, %v1143
      %v1145 = vpop.f32.mrb[0].mxu0
      %1146 = vmatprep.mubr.f32.mxu0 0.0
      %1147 = vmatmul.mubr.f32.gmra.mrb[0].mxu0 %v471
      %v1148 = vpop.f32.mrb[0].mxu0
      %v1149 = vadd.f32 %v1020, %v1148
      %v1150 = vpop.f32.mrb[0].mxu0
      %1151 = vmatprep.mubr.f32.mxu0 0.0
      %1152 = vmatmul.mubr.f32.gmra.mrb[0].mxu0 %v474
      %v1153 = vpop.f32.mrb[0].mxu0
      %v1154 = vadd.f32 %v1020, %v1153
      %v1155 = vpop.f32.mrb[0].mxu0
      %1156 = vmatprep.mubr.f32.mxu0 0.0
      %1157 = vmatmul.mubr.f32.gmra.mrb[0].mxu0 %v477
      %v1158 = vpop.f32.mrb[0].mxu0
      %v1159 = vadd.f32 %v1020, %v1158
      %v1160 = vpop.f32.mrb[0].mxu0
      %1161 = vmatprep.mubr.f32.mxu0 0.0
      %1162 = vmatmul.mubr.f32.gmra.mrb[0].mxu0 %v480
      %v1163 = vpop.f32.mrb[0].mxu0
      %v1164 = vadd.f32 %v1020, %v1163
      %v1165 = vpop.f32.mrb[0].mxu0
      %1166 = vmatprep.mubr.f32.mxu0 0.0
      %1167 = vmatmul.mubr.f32.gmra.mrb[0].mxu0 %v483
      %v1168 = vpop.f32.mrb[0].mxu0
      %v1169 = vadd.f32 %v1020, %v1168
      %v1170 = vpop.f32.mrb[0].mxu0
      %1171 = vmatprep.mubr.f32.mxu0 0.0
      %1172 = vmatmul.mubr.f32.gmra.mrb[0].mxu0 %v486
      %v1173 = vpop.f32.mrb[0].mxu0
      %v1174 = vadd.f32 %v1020, %v1173
      %v1175 = vpop.f32.mrb[0].mxu0
      %1176 = vmatprep.mubr.f32.mxu0 0.0
      %1177 = vmatmul.mubr.f32.gmra.mrb[0].mxu0 %v489
      %v1178 = vpop.f32.mrb[0].mxu0
      %v1179 = vadd.f32 %v1020, %v1178
      %v1180 = vpop.f32.mrb[0].mxu0
      %1181 = vmatprep.mubr.f32.mxu0 0.0
      %1182 = vmatmul.mubr.f32.gmra.mrb[0].mxu0 %v492
      %v1183 = vpop.f32.mrb[0].mxu0
      %v1184 = vadd.f32 %v1020, %v1183
      %v1185 = vpop.f32.mrb[0].mxu0
      %1186 = vmatprep.mubr.f32.mxu0 0.0
      %1187 = vmatmul.mubr.f32.gmra.mrb[0].mxu0 %v495
      %v1188 = vpop.f32.mrb[0].mxu0
      %v1189 = vadd.f32 %v1020, %v1188
      %v1190 = vpop.f32.mrb[0].mxu0
      %1191 = vmatprep.mubr.f32.mxu0 0.0
      %1192 = vmatmul.mubr.f32.gmra.mrb[0].mxu0 %v498
      %v1193 = vpop.f32.mrb[0].mxu0
      %v1194 = vadd.f32 %v1020, %v1193
      %v1195 = vpop.f32.mrb[0].mxu0
      %1196 = vmatprep.mubr.f32.mxu0 0.0
      %1197 = vmatmul.mubr.f32.gmra.mrb[0].mxu0 %v501
      %v1198 = vpop.f32.mrb[0].mxu0
      %v1199 = vadd.f32 %v1020, %v1198
      %v1200 = vpop.f32.mrb[0].mxu0
      %1201 = vmatprep.mubr.f32.mxu0 0.0
      %1202 = vmatmul.mubr.f32.gmra.mrb[0].mxu0 %v504
      %v1203 = vpop.f32.mrb[0].mxu0
      %v1204 = vadd.f32 %v1020, %v1203
      %v1205 = vpop.f32.mrb[0].mxu0
      %1206 = vmatprep.mubr.f32.mxu0 0.0
      %1207 = vmatmul.mubr.f32.gmra.mrb[0].mxu0 %v507
      %v1208 = vpop.f32.mrb[0].mxu0
      %v1209 = vadd.f32 %v1020, %v1208
      %v1210 = vpop.f32.mrb[0].mxu0
      %1211 = vmatprep.mubr.f32.mxu0 0.0
      %1212 = vmatmul.mubr.f32.gmra.mrb[0].mxu0 %v510
      %v1213 = vpop.f32.mrb[0].mxu0
      %v1214 = vadd.f32 %v1020, %v1213
      %v1215 = vpop.f32.mrb[0].mxu0
      %1216 = vmatprep.mubr.f32.mxu0 0.0
      %1217 = vmatmul.mubr.f32.gmra.mrb[0].mxu0 %v513
      %v1218 = vpop.f32.mrb[0].mxu0
      %v1219 = vadd.f32 %v1020, %v1218
      %v1220 = vpop.f32.mrb[0].mxu0
      %1221 = vmatprep.mubr.f32.mxu0 0.0
      %1222 = vmatmul.mubr.f32.gmra.mrb[0].mxu0 %v516
      %v1223 = vpop.f32.mrb[0].mxu0
      %v1224 = vadd.f32 %v1020, %v1223
      %v1225 = vpop.f32.mrb[0].mxu0
      %1226 = vmatprep.mubr.f32.mxu0 0.0
      %1227 = vmatmul.mubr.f32.gmra.mrb[0].mxu0 %v519
      %v1228 = vpop.f32.mrb[0].mxu0
      %v1229 = vadd.f32 %v1020, %v1228
      %v1230 = vpop.f32.mrb[0].mxu0
      %1231 = vmatprep.mubr.f32.mxu0 0.0
      %1232 = vmatmul.mubr.f32.gmra.mrb[0].mxu0 %v522
      %v1233 = vpop.f32.mrb[0].mxu0
      %v1234 = vadd.f32 %v1020, %v1233
      %v1235 = vpop.f32.mrb[0].mxu0
      %1236 = vmatprep.mubr.f32.mxu0 0.0
      %1237 = vmatmul.mubr.f32.gmra.mrb[0].mxu0 %v525
      %v1238 = vpop.f32.mrb[0].mxu0
      %v1239 = vadd.f32 %v1020, %v1238
      %v1240 = vpop.f32.mrb[0].mxu0
      %1241 = vmatprep.mubr.f32.mxu0 0.0
      %1242 = vmatmul.mubr.f32.gmra.mrb[0].mxu0 %v528
      %v1243 = vpop.f32.mrb[0].mxu0
      %v1244 = vadd.f32 %v1020, %v1243
      %v1245 = vpop.f32.mrb[0].mxu0
      %1246 = vmatprep.mubr.f32.mxu0 0.0
      %1247 = vmatmul.mubr.f32.gmra.mrb[0].mxu0 %v531
      %v1248 = vpop.f32.mrb[0].mxu0
      %v1249 = vadd.f32 %v1020, %v1248
      %v1250 = vpop.f32.mrb[0].mxu0
      %1251 = vmatprep.mubr.f32.mxu0 0.0
      %1252 = vmatmul.mubr.f32.gmra.mrb[0].mxu0 %v534
      %v1253 = vpop.f32.mrb[0].mxu0
      %v1254 = vadd.f32 %v1020, %v1253
      %v1255 = vpop.f32.mrb[0].mxu0
      %1256 = vmatprep.mubr.f32.mxu0 0.0
      %1257 = vmatmul.mubr.f32.gmra.mrb[0].mxu0 %v537
      %v1258 = vpop.f32.mrb[0].mxu0
      %v1259 = vadd.f32 %v1020, %v1258
      %v1260 = vpop.f32.mrb[0].mxu0
      %1261 = vmatprep.mubr.f32.mxu0 0.0
      %1262 = vmatmul.mubr.f32.gmra.mrb[0].mxu0 %v540
      %v1263 = vpop.f32.mrb[0].mxu0
      %v1264 = vadd.f32 %v1020, %v1263
      %v1265 = vpop.f32.mrb[0].mxu0
      %1266 = vmatprep.mubr.f32.mxu0 0.0
      %1267 = vmatmul.mubr.f32.gmra.mrb[0].mxu0 %v543
      %v1268 = vpop.f32.mrb[0].mxu0
      %v1269 = vadd.f32 %v1020, %v1268
      %v1270 = vpop.f32.mrb[0].mxu0
      %1271 = vmatprep.mubr.f32.mxu0 0.0
      %1272 = vmatmul.mubr.f32.gmra.mrb[0].mxu0 %v546
      %v1273 = vpop.f32.mrb[0].mxu0
      %v1274 = vadd.f32 %v1020, %v1273
      %v1275 = vpop.f32.mrb[0].mxu0
      %1276 = vmatprep.mubr.f32.mxu0 0.0
      %1277 = vmatmul.mubr.f32.gmra.mrb[0].mxu0 %v549
      %v1278 = vpop.f32.mrb[0].mxu0
      %v1279 = vadd.f32 %v1020, %v1278
      %v1280 = vpop.f32.mrb[0].mxu0
      %1281 = vmatprep.mubr.f32.mxu0 0.0
      %1282 = vmatmul.mubr.f32.gmra.mrb[0].mxu0 %v552
      %v1283 = vpop.f32.mrb[0].mxu0
      %v1284 = vadd.f32 %v1020, %v1283
      %v1285 = vpop.f32.mrb[0].mxu0
      %1286 = vmatprep.mubr.f32.mxu0 0.0
      %1287 = vmatmul.mubr.f32.gmra.mrb[0].mxu0 %v555
      %v1288 = vpop.f32.mrb[0].mxu0
      %v1289 = vadd.f32 %v1020, %v1288
      %v1290 = vpop.f32.mrb[0].mxu0
      %1291 = vmatprep.mubr.f32.mxu0 0.0
      %1292 = vmatmul.mubr.f32.gmra.mrb[0].mxu0 %v558
      %v1293 = vpop.f32.mrb[0].mxu0
      %v1294 = vadd.f32 %v1020, %v1293
      %v1295 = vpop.f32.mrb[0].mxu0
      %1296 = vmatprep.mubr.f32.mxu0 0.0
      %1297 = vmatmul.mubr.f32.gmra.mrb[0].mxu0 %v561
      %v1298 = vpop.f32.mrb[0].mxu0
      %v1299 = vadd.f32 %v1020, %v1298
      %v1300 = vpop.f32.mrb[0].mxu0
      %1301 = vmatprep.mubr.f32.mxu0 0.0
      %1302 = vmatmul.mubr.f32.gmra.mrb[0].mxu0 %v564
      %v1303 = vpop.f32.mrb[0].mxu0
      %v1304 = vadd.f32 %v1020, %v1303
      %v1305 = vpop.f32.mrb[0].mxu0
      %1306 = vmatprep.mubr.f32.mxu0 0.0
      %1307 = vmatmul.mubr.f32.gmra.mrb[0].mxu0 %v567
      %v1308 = vpop.f32.mrb[0].mxu0
      %v1309 = vadd.f32 %v1020, %v1308
      %v1310 = vpop.f32.mrb[0].mxu0
      %1311 = vmatprep.mubr.f32.mxu0 0.0
      %1312 = vmatmul.mubr.f32.gmra.mrb[0].mxu0 %v570
      %v1313 = vpop.f32.mrb[0].mxu0
      %v1314 = vadd.f32 %v1020, %v1313
      %v1315 = vpop.f32.mrb[0].mxu0
      %1316 = vmatprep.mubr.f32.mxu0 0.0
      %1317 = vmatmul.mubr.f32.gmra.mrb[0].mxu0 %v573
      %v1318 = vpop.f32.mrb[0].mxu0
      %v1319 = vadd.f32 %v1020, %v1318
      %v1320 = vpop.f32.mrb[0].mxu0
      %1321 = vmatprep.mubr.f32.mxu0 0.0
      %1322 = vmatmul.mubr.f32.gmra.mrb[0].mxu0 %v576
      %v1323 = vpop.f32.mrb[0].mxu0
      %v1324 = vadd.f32 %v1020, %v1323
      %v1325 = vpop.f32.mrb[0].mxu0
      %1326 = vmatprep.mubr.f32.mxu0 0.0
      %1327 = vmatmul.mubr.f32.gmra.mrb[0].mxu0 %v579
      %v1328 = vpop.f32.mrb[0].mxu0
      %v1329 = vadd.f32 %v1020, %v1328
      %v1330 = vpop.f32.mrb[0].mxu0
      %1331 = vmatprep.mubr.f32.mxu0 0.0
      %1332 = vmatmul.mubr.f32.gmra.mrb[0].mxu0 %v582
      %v1333 = vpop.f32.mrb[0].mxu0
      %v1334 = vadd.f32 %v1020, %v1333
      %v1335 = vpop.f32.mrb[0].mxu0
      %1336 = vmatprep.mubr.f32.mxu0 0.0
      %1337 = vmatmul.mubr.f32.gmra.mrb[0].mxu0 %v585
      %v1338 = vpop.f32.mrb[0].mxu0
      %v1339 = vadd.f32 %v1020, %v1338
      %v1340 = vpop.f32.mrb[0].mxu0
      %1341 = vmatprep.mubr.f32.mxu0 0.0
      %1342 = vmatmul.mubr.f32.gmra.mrb[0].mxu0 %v588
      %v1343 = vpop.f32.mrb[0].mxu0
      %v1344 = vadd.f32 %v1020, %v1343
      %v1345 = vpop.f32.mrb[0].mxu0
      %1346 = vmatprep.mubr.f32.mxu0 0.0
      %1347 = vmatmul.mubr.f32.gmra.mrb[0].mxu0 %v591
      %v1348 = vpop.f32.mrb[0].mxu0
      %v1349 = vadd.f32 %v1020, %v1348
      %v1350 = vpop.f32.mrb[0].mxu0
      %1351 = vmatprep.mubr.f32.mxu0 0.0
      %1352 = vmatmul.mubr.f32.gmra.mrb[0].mxu0 %v594
      %v1353 = vpop.f32.mrb[0].mxu0
      %v1354 = vadd.f32 %v1020, %v1353
      %v1355 = vpop.f32.mrb[0].mxu0
      %1356 = vmatprep.mubr.f32.mxu0 0.0
      %1357 = vmatmul.mubr.f32.gmra.mrb[0].mxu0 %v597
      %v1358 = vpop.f32.mrb[0].mxu0
      %v1359 = vadd.f32 %v1020, %v1358
      %v1360 = vpop.f32.mrb[0].mxu0
      %1361 = vmatprep.mubr.f32.mxu0 0.0
      %1362 = vmatmul.mubr.f32.gmra.mrb[0].mxu0 %v600
      %v1363 = vpop.f32.mrb[0].mxu0
      %v1364 = vadd.f32 %v1020, %v1363
      %v1365 = vpop.f32.mrb[0].mxu0
      %1366 = vmatprep.mubr.f32.mxu0 0.0
      %1367 = vmatmul.mubr.f32.gmra.mrb[0].mxu0 %v603
      %v1368 = vpop.f32.mrb[0].mxu0
      %v1369 = vadd.f32 %v1020, %v1368
      %v1370 = vpop.f32.mrb[0].mxu0
      %1371 = vmatprep.mubr.f32.mxu0 0.0
      %1372 = vmatmul.mubr.f32.gmra.mrb[0].mxu0 %v606
      %v1373 = vpop.f32.mrb[0].mxu0
      %v1374 = vadd.f32 %v1020, %v1373
      %v1375 = vpop.f32.mrb[0].mxu0
      %1376 = vmatprep.mubr.f32.mxu0 0.0
      %1377 = vmatmul.mubr.f32.gmra.mrb[0].mxu0 %v609
      %v1378 = vpop.f32.mrb[0].mxu0
      %v1379 = vadd.f32 %v1020, %v1378
      %v1380 = vpop.f32.mrb[0].mxu0
      %1381 = vmatprep.mubr.f32.mxu0 0.0
      %1382 = vmatmul.mubr.f32.gmra.mrb[0].mxu0 %v612
      %v1383 = vpop.f32.mrb[0].mxu0
      %v1384 = vadd.f32 %v1020, %v1383
      %v1385 = vpop.f32.mrb[0].mxu0
      %1386 = vmatprep.mubr.f32.mxu0 0.0
      %1387 = vmatmul.mubr.f32.gmra.mrb[0].mxu0 %v615
      %v1388 = vpop.f32.mrb[0].mxu0
      %v1389 = vadd.f32 %v1020, %v1388
      %v1390 = vpop.f32.mrb[0].mxu0
      %1391 = vmatprep.mubr.f32.mxu0 0.0
      %1392 = vmatmul.mubr.f32.gmra.mrb[0].mxu0 %v618
      %v1393 = vpop.f32.mrb[0].mxu0
      %v1394 = vadd.f32 %v1020, %v1393
      %v1395 = vpop.f32.mrb[0].mxu0
      %1396 = vmatprep.mubr.f32.mxu0 0.0
      %1397 = vmatmul.mubr.f32.gmra.mrb[0].mxu0 %v621
      %v1398 = vpop.f32.mrb[0].mxu0
      %v1399 = vadd.f32 %v1020, %v1398
      %v1400 = vpop.f32.mrb[0].mxu0
      %1401 = vmatprep.mubr.f32.mxu0 0.0
      %1402 = vmatmul.mubr.f32.gmra.mrb[0].mxu0 %v624
      %v1403 = vpop.f32.mrb[0].mxu0
      %v1404 = vadd.f32 %v1020, %v1403
      %v1405 = vpop.f32.mrb[0].mxu0
      %1406 = vdwg.mxu0
      %v1407 = vmul.f32 %v1089, 0.5
      %v1408 = vmul.f32 %v1094, 0.5
      %v1409 = vmul.f32 %v1099, 0.5
      %v1410 = vmul.f32 %v1104, 0.5
      %v1411 = vmul.f32 %v1109, 0.5
      %v1412 = vmul.f32 %v1114, 0.5
      %v1413 = vmul.f32 %v1119, 0.5
      %v1414 = vmul.f32 %v1124, 0.5
      %v1415 = vmul.f32 %v1129, 0.5
      %v1416 = vmul.f32 %v1134, 0.5
      %v1417 = vmul.f32 %v1139, 0.5
      %v1418 = vmul.f32 %v1144, 0.5
      %v1419 = vmul.f32 %v1149, 0.5
      %v1420 = vmul.f32 %v1154, 0.5
      %v1421 = vmul.f32 %v1159, 0.5
      %v1422 = vmul.f32 %v1164, 0.5
      %v1423 = vmul.f32 %v1169, 0.5
      %v1424 = vmul.f32 %v1174, 0.5
      %v1425 = vmul.f32 %v1179, 0.5
      %v1426 = vmul.f32 %v1184, 0.5
      %v1427 = vmul.f32 %v1189, 0.5
      %v1428 = vmul.f32 %v1194, 0.5
      %v1429 = vmul.f32 %v1199, 0.5
      %v1430 = vmul.f32 %v1204, 0.5
      %v1431 = vmul.f32 %v1209, 0.5
      %v1432 = vmul.f32 %v1214, 0.5
      %v1433 = vmul.f32 %v1219, 0.5
      %v1434 = vmul.f32 %v1224, 0.5
      %v1435 = vmul.f32 %v1229, 0.5
      %v1436 = vmul.f32 %v1234, 0.5
      %v1437 = vmul.f32 %v1239, 0.5
      %v1438 = vmul.f32 %v1244, 0.5
      %v1439 = vmul.f32 %v1249, 0.5
      %v1440 = vmul.f32 %v1254, 0.5
      %v1441 = vmul.f32 %v1259, 0.5
      %v1442 = vmul.f32 %v1264, 0.5
      %v1443 = vmul.f32 %v1269, 0.5
      %v1444 = vmul.f32 %v1274, 0.5
      %v1445 = vmul.f32 %v1279, 0.5
      %v1446 = vmul.f32 %v1284, 0.5
      %v1447 = vmul.f32 %v1289, 0.5
      %v1448 = vmul.f32 %v1294, 0.5
      %v1449 = vmul.f32 %v1299, 0.5
      %v1450 = vmul.f32 %v1304, 0.5
      %v1451 = vmul.f32 %v1309, 0.5
      %v1452 = vmul.f32 %v1314, 0.5
      %v1453 = vmul.f32 %v1319, 0.5
      %v1454 = vmul.f32 %v1324, 0.5
      %v1455 = vmul.f32 %v1329, 0.5
      %v1456 = vmul.f32 %v1334, 0.5
      %v1457 = vmul.f32 %v1339, 0.5
      %v1458 = vmul.f32 %v1344, 0.5
      %v1459 = vmul.f32 %v1349, 0.5
      %v1460 = vmul.f32 %v1354, 0.5
      %v1461 = vmul.f32 %v1359, 0.5
      %v1462 = vmul.f32 %v1364, 0.5
      %v1463 = vmul.f32 %v1369, 0.5
      %v1464 = vmul.f32 %v1374, 0.5
      %v1465 = vmul.f32 %v1379, 0.5
      %v1466 = vmul.f32 %v1384, 0.5
      %v1467 = vmul.f32 %v1389, 0.5
      %v1468 = vmul.f32 %v1394, 0.5
      %v1469 = vmul.f32 %v1399, 0.5
      %v1470 = vmul.f32 %v1404, 0.5
      %v1471 = vmul.f32 %v1407, 1.442695
      %v1472 = vpow.pop %v1471
      %v1473 = vmul.f32 %v1408, 1.442695
      %v1474 = vpow.pop %v1473
      %v1475 = vmul.f32 %v1409, 1.442695
      %v1476 = vpow.pop %v1475
      %v1477 = vmul.f32 %v1410, 1.442695
      %v1478 = vpow.pop %v1477
      %v1479 = vmul.f32 %v1411, 1.442695
      %v1480 = vpow.pop %v1479
      %v1481 = vmul.f32 %v1412, 1.442695
      %v1482 = vpow.pop %v1481
      %v1483 = vmul.f32 %v1413, 1.442695
      %v1484 = vpow.pop %v1483
      %v1485 = vmul.f32 %v1414, 1.442695
      %v1486 = vpow.pop %v1485
      %v1487 = vmul.f32 %v1415, 1.442695
      %v1488 = vpow.pop %v1487
      %v1489 = vmul.f32 %v1416, 1.442695
      %v1490 = vpow.pop %v1489
      %v1491 = vmul.f32 %v1417, 1.442695
      %v1492 = vpow.pop %v1491
      %v1493 = vmul.f32 %v1418, 1.442695
      %v1494 = vpow.pop %v1493
      %v1495 = vmul.f32 %v1419, 1.442695
      %v1496 = vpow.pop %v1495
      %v1497 = vmul.f32 %v1420, 1.442695
      %v1498 = vpow.pop %v1497
      %v1499 = vmul.f32 %v1421, 1.442695
      %v1500 = vpow.pop %v1499
      %v1501 = vmul.f32 %v1422, 1.442695
      %v1502 = vpow.pop %v1501
      %v1503 = vmul.f32 %v1423, 1.442695
      %v1504 = vpow.pop %v1503
      %v1505 = vmul.f32 %v1424, 1.442695
      %v1506 = vpow.pop %v1505
      %v1507 = vmul.f32 %v1425, 1.442695
      %v1508 = vpow.pop %v1507
      %v1509 = vmul.f32 %v1426, 1.442695
      %v1510 = vpow.pop %v1509
      %v1511 = vmul.f32 %v1427, 1.442695
      %v1512 = vpow.pop %v1511
      %v1513 = vmul.f32 %v1428, 1.442695
      %v1514 = vpow.pop %v1513
      %v1515 = vmul.f32 %v1429, 1.442695
      %v1516 = vpow.pop %v1515
      %v1517 = vmul.f32 %v1430, 1.442695
      %v1518 = vpow.pop %v1517
      %v1519 = vmul.f32 %v1431, 1.442695
      %v1520 = vpow.pop %v1519
      %v1521 = vmul.f32 %v1432, 1.442695
      %v1522 = vpow.pop %v1521
      %v1523 = vmul.f32 %v1433, 1.442695
      %v1524 = vpow.pop %v1523
      %v1525 = vmul.f32 %v1434, 1.442695
      %v1526 = vpow.pop %v1525
      %v1527 = vmul.f32 %v1435, 1.442695
      %v1528 = vpow.pop %v1527
      %v1529 = vmul.f32 %v1436, 1.442695
      %v1530 = vpow.pop %v1529
      %v1531 = vmul.f32 %v1437, 1.442695
      %v1532 = vpow.pop %v1531
      %v1533 = vmul.f32 %v1438, 1.442695
      %v1534 = vpow.pop %v1533
      %v1535 = vmul.f32 %v1439, 1.442695
      %v1536 = vpow.pop %v1535
      %v1537 = vmul.f32 %v1440, 1.442695
      %v1538 = vpow.pop %v1537
      %v1539 = vmul.f32 %v1441, 1.442695
      %v1540 = vpow.pop %v1539
      %v1541 = vmul.f32 %v1442, 1.442695
      %v1542 = vpow.pop %v1541
      %v1543 = vmul.f32 %v1443, 1.442695
      %v1544 = vpow.pop %v1543
      %v1545 = vmul.f32 %v1444, 1.442695
      %v1546 = vpow.pop %v1545
      %v1547 = vmul.f32 %v1445, 1.442695
      %v1548 = vpow.pop %v1547
      %v1549 = vmul.f32 %v1446, 1.442695
      %v1550 = vpow.pop %v1549
      %v1551 = vmul.f32 %v1447, 1.442695
      %v1552 = vpow.pop %v1551
      %v1553 = vmul.f32 %v1448, 1.442695
      %v1554 = vpow.pop %v1553
      %v1555 = vmul.f32 %v1449, 1.442695
      %v1556 = vpow.pop %v1555
      %v1557 = vmul.f32 %v1450, 1.442695
      %v1558 = vpow.pop %v1557
      %v1559 = vmul.f32 %v1451, 1.442695
      %v1560 = vpow.pop %v1559
      %v1561 = vmul.f32 %v1452, 1.442695
      %v1562 = vpow.pop %v1561
      %v1563 = vmul.f32 %v1453, 1.442695
      %v1564 = vpow.pop %v1563
      %v1565 = vmul.f32 %v1454, 1.442695
      %v1566 = vpow.pop %v1565
      %v1567 = vmul.f32 %v1455, 1.442695
      %v1568 = vpow.pop %v1567
      %v1569 = vmul.f32 %v1456, 1.442695
      %v1570 = vpow.pop %v1569
      %v1571 = vmul.f32 %v1457, 1.442695
      %v1572 = vpow.pop %v1571
      %v1573 = vmul.f32 %v1458, 1.442695
      %v1574 = vpow.pop %v1573
      %v1575 = vmul.f32 %v1459, 1.442695
      %v1576 = vpow.pop %v1575
      %v1577 = vmul.f32 %v1460, 1.442695
      %v1578 = vpow.pop %v1577
      %v1579 = vmul.f32 %v1461, 1.442695
      %v1580 = vpow.pop %v1579
      %v1581 = vmul.f32 %v1462, 1.442695
      %v1582 = vpow.pop %v1581
      %v1583 = vmul.f32 %v1463, 1.442695
      %v1584 = vpow.pop %v1583
      %v1585 = vmul.f32 %v1464, 1.442695
      %v1586 = vpow.pop %v1585
      %v1587 = vmul.f32 %v1465, 1.442695
      %v1588 = vpow.pop %v1587
      %v1589 = vmul.f32 %v1466, 1.442695
      %v1590 = vpow.pop %v1589
      %v1591 = vmul.f32 %v1467, 1.442695
      %v1592 = vpow.pop %v1591
      %v1593 = vmul.f32 %v1468, 1.442695
      %v1594 = vpow.pop %v1593
      %v1595 = vmul.f32 %v1469, 1.442695
      %v1596 = vpow.pop %v1595
      %v1597 = vmul.f32 %v1470, 1.442695
      %v1598 = vpow.pop %v1597
      %v1599 = vadd.f32 %v1472, 0.001
      %v1600 = vadd.f32 %v1474, 0.001
      %v1601 = vadd.f32 %v1476, 0.001
      %v1602 = vadd.f32 %v1478, 0.001
      %v1603 = vadd.f32 %v1480, 0.001
      %v1604 = vadd.f32 %v1482, 0.001
      %v1605 = vadd.f32 %v1484, 0.001
      %v1606 = vadd.f32 %v1486, 0.001
      %v1607 = vadd.f32 %v1488, 0.001
      %v1608 = vadd.f32 %v1490, 0.001
      %v1609 = vadd.f32 %v1492, 0.001
      %v1610 = vadd.f32 %v1494, 0.001
      %v1611 = vadd.f32 %v1496, 0.001
      %v1612 = vadd.f32 %v1498, 0.001
      %v1613 = vadd.f32 %v1500, 0.001
      %v1614 = vadd.f32 %v1502, 0.001
      %v1615 = vadd.f32 %v1504, 0.001
      %v1616 = vadd.f32 %v1506, 0.001
      %v1617 = vadd.f32 %v1508, 0.001
      %v1618 = vadd.f32 %v1510, 0.001
      %v1619 = vadd.f32 %v1512, 0.001
      %v1620 = vadd.f32 %v1514, 0.001
      %v1621 = vadd.f32 %v1516, 0.001
      %v1622 = vadd.f32 %v1518, 0.001
      %v1623 = vadd.f32 %v1520, 0.001
      %v1624 = vadd.f32 %v1522, 0.001
      %v1625 = vadd.f32 %v1524, 0.001
      %v1626 = vadd.f32 %v1526, 0.001
      %v1627 = vadd.f32 %v1528, 0.001
      %v1628 = vadd.f32 %v1530, 0.001
      %v1629 = vadd.f32 %v1532, 0.001
      %v1630 = vadd.f32 %v1534, 0.001
      %v1631 = vadd.f32 %v1536, 0.001
      %v1632 = vadd.f32 %v1538, 0.001
      %v1633 = vadd.f32 %v1540, 0.001
      %v1634 = vadd.f32 %v1542, 0.001
      %v1635 = vadd.f32 %v1544, 0.001
      %v1636 = vadd.f32 %v1546, 0.001
      %v1637 = vadd.f32 %v1548, 0.001
      %v1638 = vadd.f32 %v1550, 0.001
      %v1639 = vadd.f32 %v1552, 0.001
      %v1640 = vadd.f32 %v1554, 0.001
      %v1641 = vadd.f32 %v1556, 0.001
      %v1642 = vadd.f32 %v1558, 0.001
      %v1643 = vadd.f32 %v1560, 0.001
      %v1644 = vadd.f32 %v1562, 0.001
      %v1645 = vadd.f32 %v1564, 0.001
      %v1646 = vadd.f32 %v1566, 0.001
      %v1647 = vadd.f32 %v1568, 0.001
      %v1648 = vadd.f32 %v1570, 0.001
      %v1649 = vadd.f32 %v1572, 0.001
      %v1650 = vadd.f32 %v1574, 0.001
      %v1651 = vadd.f32 %v1576, 0.001
      %v1652 = vadd.f32 %v1578, 0.001
      %v1653 = vadd.f32 %v1580, 0.001
      %v1654 = vadd.f32 %v1582, 0.001
      %v1655 = vadd.f32 %v1584, 0.001
      %v1656 = vadd.f32 %v1586, 0.001
      %v1657 = vadd.f32 %v1588, 0.001
      %v1658 = vadd.f32 %v1590, 0.001
      %v1659 = vadd.f32 %v1592, 0.001
      %v1660 = vadd.f32 %v1594, 0.001
      %v1661 = vadd.f32 %v1596, 0.001
      %v1662 = vadd.f32 %v1598, 0.001
      %v1663 = vld [vmem:[%s350] sm:$0xff]
      %v1664 = vld [vmem:[%s350 + $0x8] sm:$0xff]
      %v1665 = vld [vmem:[%s350 + $0x10] sm:$0xff]
      %v1666 = vld [vmem:[%s350 + $0x18] sm:$0xff]
      %v1667 = vld [vmem:[%s350 + $0x20] sm:$0xff]
      %v1668 = vld [vmem:[%s350 + $0x28] sm:$0xff]
      %v1669 = vld [vmem:[%s350 + $0x30] sm:$0xff]
      %v1670 = vld [vmem:[%s350 + $0x38] sm:$0xff]
      %v1671 = vld [vmem:[%s350 + $0x40] sm:$0xff]
      %v1672 = vld [vmem:[%s350 + $0x48] sm:$0xff]
      %v1673 = vld [vmem:[%s350 + $0x50] sm:$0xff]
      %v1674 = vld [vmem:[%s350 + $0x58] sm:$0xff]
      %v1675 = vld [vmem:[%s350 + $0x60] sm:$0xff]
      %v1676 = vld [vmem:[%s350 + $0x68] sm:$0xff]
      %v1677 = vld [vmem:[%s350 + $0x70] sm:$0xff]
      %v1678 = vld [vmem:[%s350 + $0x78] sm:$0xff]
      %v1679 = vld [vmem:[%s350 + $0x80] sm:$0xff]
      %v1680 = vld [vmem:[%s350 + $0x88] sm:$0xff]
      %v1681 = vld [vmem:[%s350 + $0x90] sm:$0xff]
      %v1682 = vld [vmem:[%s350 + $0x98] sm:$0xff]
      %v1683 = vld [vmem:[%s350 + $0xa0] sm:$0xff]
      %v1684 = vld [vmem:[%s350 + $0xa8] sm:$0xff]
      %v1685 = vld [vmem:[%s350 + $0xb0] sm:$0xff]
      %v1686 = vld [vmem:[%s350 + $0xb8] sm:$0xff]
      %v1687 = vld [vmem:[%s350 + $0xc0] sm:$0xff]
      %v1688 = vld [vmem:[%s350 + $0xc8] sm:$0xff]
      %v1689 = vld [vmem:[%s350 + $0xd0] sm:$0xff]
      %v1690 = vld [vmem:[%s350 + $0xd8] sm:$0xff]
      %v1691 = vld [vmem:[%s350 + $0xe0] sm:$0xff]
      %v1692 = vld [vmem:[%s350 + $0xe8] sm:$0xff]
      %v1693 = vld [vmem:[%s350 + $0xf0] sm:$0xff]
      %v1694 = vld [vmem:[%s350 + $0xf8] sm:$0xff]
      %v1695 = vld [vmem:[%s350 + $0x100] sm:$0xff]
      %v1696 = vld [vmem:[%s350 + $0x108] sm:$0xff]
      %v1697 = vld [vmem:[%s350 + $0x110] sm:$0xff]
      %v1698 = vld [vmem:[%s350 + $0x118] sm:$0xff]
      %v1699 = vld [vmem:[%s350 + $0x120] sm:$0xff]
      %v1700 = vld [vmem:[%s350 + $0x128] sm:$0xff]
      %v1701 = vld [vmem:[%s350 + $0x130] sm:$0xff]
      %v1702 = vld [vmem:[%s350 + $0x138] sm:$0xff]
      %v1703 = vld [vmem:[%s350 + $0x140] sm:$0xff]
      %v1704 = vld [vmem:[%s350 + $0x148] sm:$0xff]
      %v1705 = vld [vmem:[%s350 + $0x150] sm:$0xff]
      %v1706 = vld [vmem:[%s350 + $0x158] sm:$0xff]
      %v1707 = vld [vmem:[%s350 + $0x160] sm:$0xff]
      %v1708 = vld [vmem:[%s350 + $0x168] sm:$0xff]
      %v1709 = vld [vmem:[%s350 + $0x170] sm:$0xff]
      %v1710 = vld [vmem:[%s350 + $0x178] sm:$0xff]
      %v1711 = vld [vmem:[%s350 + $0x180] sm:$0xff]
      %v1712 = vld [vmem:[%s350 + $0x188] sm:$0xff]
      %v1713 = vld [vmem:[%s350 + $0x190] sm:$0xff]
      %v1714 = vld [vmem:[%s350 + $0x198] sm:$0xff]
      %v1715 = vld [vmem:[%s350 + $0x1a0] sm:$0xff]
      %v1716 = vld [vmem:[%s350 + $0x1a8] sm:$0xff]
      %v1717 = vld [vmem:[%s350 + $0x1b0] sm:$0xff]
      %v1718 = vld [vmem:[%s350 + $0x1b8] sm:$0xff]
      %v1719 = vld [vmem:[%s350 + $0x1c0] sm:$0xff]
      %v1720 = vld [vmem:[%s350 + $0x1c8] sm:$0xff]
      %v1721 = vld [vmem:[%s350 + $0x1d0] sm:$0xff]
      %v1722 = vld [vmem:[%s350 + $0x1d8] sm:$0xff]
      %v1723 = vld [vmem:[%s350 + $0x1e0] sm:$0xff]
      %v1724 = vld [vmem:[%s350 + $0x1e8] sm:$0xff]
      %v1725 = vld [vmem:[%s350 + $0x1f0] sm:$0xff]
      %v1726 = vld [vmem:[%s350 + $0x1f8] sm:$0xff]
      %v1727 = vmul.f32 %v1663, %v1599
      %v1728 = vmul.f32 %v1664, %v1600
      %v1729 = vmul.f32 %v1665, %v1601
      %v1730 = vmul.f32 %v1666, %v1602
      %v1731 = vmul.f32 %v1667, %v1603
      %v1732 = vmul.f32 %v1668, %v1604
      %v1733 = vmul.f32 %v1669, %v1605
      %v1734 = vmul.f32 %v1670, %v1606
      %v1735 = vmul.f32 %v1671, %v1607
      %v1736 = vmul.f32 %v1672, %v1608
      %v1737 = vmul.f32 %v1673, %v1609
      %v1738 = vmul.f32 %v1674, %v1610
      %v1739 = vmul.f32 %v1675, %v1611
      %v1740 = vmul.f32 %v1676, %v1612
      %v1741 = vmul.f32 %v1677, %v1613
      %v1742 = vmul.f32 %v1678, %v1614
      %v1743 = vmul.f32 %v1679, %v1615
      %v1744 = vmul.f32 %v1680, %v1616
      %v1745 = vmul.f32 %v1681, %v1617
      %v1746 = vmul.f32 %v1682, %v1618
      %v1747 = vmul.f32 %v1683, %v1619
      %v1748 = vmul.f32 %v1684, %v1620
      %v1749 = vmul.f32 %v1685, %v1621
      %v1750 = vmul.f32 %v1686, %v1622
      %v1751 = vmul.f32 %v1687, %v1623
      %v1752 = vmul.f32 %v1688, %v1624
      %v1753 = vmul.f32 %v1689, %v1625
      %v1754 = vmul.f32 %v1690, %v1626
      %v1755 = vmul.f32 %v1691, %v1627
      %v1756 = vmul.f32 %v1692, %v1628
      %v1757 = vmul.f32 %v1693, %v1629
      %v1758 = vmul.f32 %v1694, %v1630
      %v1759 = vmul.f32 %v1695, %v1631
      %v1760 = vmul.f32 %v1696, %v1632
      %v1761 = vmul.f32 %v1697, %v1633
      %v1762 = vmul.f32 %v1698, %v1634
      %v1763 = vmul.f32 %v1699, %v1635
      %v1764 = vmul.f32 %v1700, %v1636
      %v1765 = vmul.f32 %v1701, %v1637
      %v1766 = vmul.f32 %v1702, %v1638
      %v1767 = vmul.f32 %v1703, %v1639
      %v1768 = vmul.f32 %v1704, %v1640
      %v1769 = vmul.f32 %v1705, %v1641
      %v1770 = vmul.f32 %v1706, %v1642
      %v1771 = vmul.f32 %v1707, %v1643
      %v1772 = vmul.f32 %v1708, %v1644
      %v1773 = vmul.f32 %v1709, %v1645
      %v1774 = vmul.f32 %v1710, %v1646
      %v1775 = vmul.f32 %v1711, %v1647
      %v1776 = vmul.f32 %v1712, %v1648
      %v1777 = vmul.f32 %v1713, %v1649
      %v1778 = vmul.f32 %v1714, %v1650
      %v1779 = vmul.f32 %v1715, %v1651
      %v1780 = vmul.f32 %v1716, %v1652
      %v1781 = vmul.f32 %v1717, %v1653
      %v1782 = vmul.f32 %v1718, %v1654
      %v1783 = vmul.f32 %v1719, %v1655
      %v1784 = vmul.f32 %v1720, %v1656
      %v1785 = vmul.f32 %v1721, %v1657
      %v1786 = vmul.f32 %v1722, %v1658
      %v1787 = vmul.f32 %v1723, %v1659
      %v1788 = vmul.f32 %v1724, %v1660
      %v1789 = vmul.f32 %v1725, %v1661
      %v1790 = vmul.f32 %v1726, %v1662
      %v1791 = vadd.f32 %v693, %v1727
      %v1792 = vadd.f32 %v698, %v1728
      %v1793 = vadd.f32 %v703, %v1729
      %v1794 = vadd.f32 %v708, %v1730
      %v1795 = vadd.f32 %v713, %v1731
      %v1796 = vadd.f32 %v718, %v1732
      %v1797 = vadd.f32 %v723, %v1733
      %v1798 = vadd.f32 %v728, %v1734
      %v1799 = vadd.f32 %v733, %v1735
      %v1800 = vadd.f32 %v738, %v1736
      %v1801 = vadd.f32 %v743, %v1737
      %v1802 = vadd.f32 %v748, %v1738
      %v1803 = vadd.f32 %v753, %v1739
      %v1804 = vadd.f32 %v758, %v1740
      %v1805 = vadd.f32 %v763, %v1741
      %v1806 = vadd.f32 %v768, %v1742
      %v1807 = vadd.f32 %v773, %v1743
      %v1808 = vadd.f32 %v778, %v1744
      %v1809 = vadd.f32 %v783, %v1745
      %v1810 = vadd.f32 %v788, %v1746
      %v1811 = vadd.f32 %v793, %v1747
      %v1812 = vadd.f32 %v798, %v1748
      %v1813 = vadd.f32 %v803, %v1749
      %v1814 = vadd.f32 %v808, %v1750
      %v1815 = vadd.f32 %v813, %v1751
      %v1816 = vadd.f32 %v818, %v1752
      %v1817 = vadd.f32 %v823, %v1753
      %v1818 = vadd.f32 %v828, %v1754
      %v1819 = vadd.f32 %v833, %v1755
      %v1820 = vadd.f32 %v838, %v1756
      %v1821 = vadd.f32 %v843, %v1757
      %v1822 = vadd.f32 %v848, %v1758
      %v1823 = vadd.f32 %v853, %v1759
      %v1824 = vadd.f32 %v858, %v1760
      %v1825 = vadd.f32 %v863, %v1761
      %v1826 = vadd.f32 %v868, %v1762
      %v1827 = vadd.f32 %v873, %v1763
      %v1828 = vadd.f32 %v878, %v1764
      %v1829 = vadd.f32 %v883, %v1765
      %v1830 = vadd.f32 %v888, %v1766
      %v1831 = vadd.f32 %v893, %v1767
      %v1832 = vadd.f32 %v898, %v1768
      %v1833 = vadd.f32 %v903, %v1769
      %v1834 = vadd.f32 %v908, %v1770
      %v1835 = vadd.f32 %v913, %v1771
      %v1836 = vadd.f32 %v918, %v1772
      %v1837 = vadd.f32 %v923, %v1773
      %v1838 = vadd.f32 %v928, %v1774
      %v1839 = vadd.f32 %v933, %v1775
      %v1840 = vadd.f32 %v938, %v1776
      %v1841 = vadd.f32 %v943, %v1777
      %v1842 = vadd.f32 %v948, %v1778
      %v1843 = vadd.f32 %v953, %v1779
      %v1844 = vadd.f32 %v958, %v1780
      %v1845 = vadd.f32 %v963, %v1781
      %v1846 = vadd.f32 %v968, %v1782
      %v1847 = vadd.f32 %v973, %v1783
      %v1848 = vadd.f32 %v978, %v1784
      %v1849 = vadd.f32 %v983, %v1785
      %v1850 = vadd.f32 %v988, %v1786
      %v1851 = vadd.f32 %v993, %v1787
      %v1852 = vadd.f32 %v998, %v1788
      %v1853 = vadd.f32 %v1003, %v1789
      %v1854 = vadd.f32 %v1008, %v1790
      %v1855 = vld [vmem:[%s6] sm:$0xf]
      %v1856 = vld [vmem:[%s7] sm:$0xff]
      %v1857 = vld [vmem:[%s7 + $0x8] sm:$0xff]
      %v1858 = vld [vmem:[%s7 + $0x10] sm:$0xff]
      %v1859 = vld [vmem:[%s7 + $0x18] sm:$0xff]
      %1860 = vmatprep.subr.mxu0 0.0
      %1861 = vmatpush1.msra.mxu0 %v1856
      %1862 = vmatprep.subr.mxu0 0.0
      %1863 = vmatpush1.msra.mxu0 %v1857
      %1864 = vmatprep.subr.mxu0 0.0
      %1865 = vmatpush1.msra.mxu0 %v1858
      %1866 = vmatprep.subr.mxu0 0.0
      %1867 = vmatpush1.msra.mxu0 %v1859
      %1868 = vmatprep.subr.mxu0 0.0
      %1869 = vmatpush1.msra.mxu0 0.0
      %1870 = vmatprep.subr.mxu0 0.0
      %1871 = vmatpush1.msra.mxu0 0.0
      %1872 = vmatprep.subr.mxu0 0.0
      %1873 = vmatpush1.msra.mxu0 0.0
      %1874 = vmatprep.subr.mxu0 0.0
      %1875 = vmatpush1.msra.mxu0 0.0
      %1876 = vmatprep.subr.mxu0 0.0
      %1877 = vmatpush1.msra.mxu0 0.0
      %1878 = vmatprep.subr.mxu0 0.0
      %1879 = vmatpush1.msra.mxu0 0.0
      %1880 = vmatprep.subr.mxu0 0.0
      %1881 = vmatpush1.msra.mxu0 0.0
      %1882 = vmatprep.subr.mxu0 0.0
      %1883 = vmatpush1.msra.mxu0 0.0
      %1884 = vmatprep.subr.mxu0 0.0
      %1885 = vmatpush1.msra.mxu0 0.0
      %1886 = vmatprep.subr.mxu0 0.0
      %1887 = vmatpush1.msra.mxu0 0.0
      %1888 = vmatprep.subr.mxu0 0.0
      %1889 = vmatpush1.msra.mxu0 0.0
      %1890 = vmatprep.subr.mxu0 0.0
      %1891 = vmatpush1.msra.mxu0 0.0
      %1892 = vmatprep.subr.mxu0 0.0
      %1893 = vmatpush1.msra.mxu0 0.0
      %1894 = vmatprep.subr.mxu0 0.0
      %1895 = vmatpush1.msra.mxu0 0.0
      %1896 = vmatprep.subr.mxu0 0.0
      %1897 = vmatpush1.msra.mxu0 0.0
      %1898 = vmatprep.subr.mxu0 0.0
      %1899 = vmatpush1.msra.mxu0 0.0
      %1900 = vmatprep.subr.mxu0 0.0
      %1901 = vmatpush1.msra.mxu0 0.0
      %1902 = vmatprep.subr.mxu0 0.0
      %1903 = vmatpush1.msra.mxu0 0.0
      %1904 = vmatprep.subr.mxu0 0.0
      %1905 = vmatpush1.msra.mxu0 0.0
      %1906 = vmatprep.subr.mxu0 0.0
      %1907 = vmatpush1.msra.mxu0 0.0
      %1908 = vmatprep.subr.mxu0 0.0
      %1909 = vmatpush1.msra.mxu0 0.0
      %1910 = vmatprep.subr.mxu0 0.0
      %1911 = vmatpush1.msra.mxu0 0.0
      %1912 = vmatprep.subr.mxu0 0.0
      %1913 = vmatpush1.msra.mxu0 0.0
      %1914 = vmatprep.subr.mxu0 0.0
      %1915 = vmatpush1.msra.mxu0 0.0
      %1916 = vmatprep.subr.mxu0 0.0
      %1917 = vmatpush1.msra.mxu0 0.0
      %1918 = vmatprep.subr.mxu0 0.0
      %1919 = vmatpush1.msra.mxu0 0.0
      %1920 = vmatprep.subr.mxu0 0.0
      %1921 = vmatpush1.msra.mxu0 0.0
      %1922 = vmatprep.subr.mxu0 0.0
      %1923 = vmatpush1.msra.mxu0 0.0
      %1924 = vmatprep.mubr.f32.mxu0 0.0
      %1925 = vmatmul.mubr.f32.gmra.mrb[0].mxu0 %v435
      %v1926 = vpop.f32.mrb[0].mxu0
      %v1927 = vadd.f32 0.0, %v1926
      %v1928 = vpop.f32.mrb[0].mxu0
      %1929 = vmatprep.mubr.f32.mxu0 0.0
      %1930 = vmatmul.mubr.f32.gmra.mrb[0].mxu0 %v438
      %v1931 = vpop.f32.mrb[0].mxu0
      %v1932 = vadd.f32 0.0, %v1931
      %v1933 = vpop.f32.mrb[0].mxu0
      %1934 = vmatprep.mubr.f32.mxu0 0.0
      %1935 = vmatmul.mubr.f32.gmra.mrb[0].mxu0 %v441
      %v1936 = vpop.f32.mrb[0].mxu0
      %v1937 = vadd.f32 0.0, %v1936
      %v1938 = vpop.f32.mrb[0].mxu0
      %1939 = vmatprep.mubr.f32.mxu0 0.0
      %1940 = vmatmul.mubr.f32.gmra.mrb[0].mxu0 %v444
      %v1941 = vpop.f32.mrb[0].mxu0
      %v1942 = vadd.f32 0.0, %v1941
      %v1943 = vpop.f32.mrb[0].mxu0
      %1944 = vmatprep.mubr.f32.mxu0 0.0
      %1945 = vmatmul.mubr.f32.gmra.mrb[0].mxu0 %v447
      %v1946 = vpop.f32.mrb[0].mxu0
      %v1947 = vadd.f32 0.0, %v1946
      %v1948 = vpop.f32.mrb[0].mxu0
      %1949 = vmatprep.mubr.f32.mxu0 0.0
      %1950 = vmatmul.mubr.f32.gmra.mrb[0].mxu0 %v450
      %v1951 = vpop.f32.mrb[0].mxu0
      %v1952 = vadd.f32 0.0, %v1951
      %v1953 = vpop.f32.mrb[0].mxu0
      %1954 = vmatprep.mubr.f32.mxu0 0.0
      %1955 = vmatmul.mubr.f32.gmra.mrb[0].mxu0 %v453
      %v1956 = vpop.f32.mrb[0].mxu0
      %v1957 = vadd.f32 0.0, %v1956
      %v1958 = vpop.f32.mrb[0].mxu0
      %1959 = vmatprep.mubr.f32.mxu0 0.0
      %1960 = vmatmul.mubr.f32.gmra.mrb[0].mxu0 %v456
      %v1961 = vpop.f32.mrb[0].mxu0
      %v1962 = vadd.f32 0.0, %v1961
      %v1963 = vpop.f32.mrb[0].mxu0
      %1964 = vmatprep.mubr.f32.mxu0 0.0
      %1965 = vmatmul.mubr.f32.gmra.mrb[0].mxu0 %v459
      %v1966 = vpop.f32.mrb[0].mxu0
      %v1967 = vadd.f32 0.0, %v1966
      %v1968 = vpop.f32.mrb[0].mxu0
      %1969 = vmatprep.mubr.f32.mxu0 0.0
      %1970 = vmatmul.mubr.f32.gmra.mrb[0].mxu0 %v462
      %v1971 = vpop.f32.mrb[0].mxu0
      %v1972 = vadd.f32 0.0, %v1971
      %v1973 = vpop.f32.mrb[0].mxu0
      %1974 = vmatprep.mubr.f32.mxu0 0.0
      %1975 = vmatmul.mubr.f32.gmra.mrb[0].mxu0 %v465
      %v1976 = vpop.f32.mrb[0].mxu0
      %v1977 = vadd.f32 0.0, %v1976
      %v1978 = vpop.f32.mrb[0].mxu0
      %1979 = vmatprep.mubr.f32.mxu0 0.0
      %1980 = vmatmul.mubr.f32.gmra.mrb[0].mxu0 %v468
      %v1981 = vpop.f32.mrb[0].mxu0
      %v1982 = vadd.f32 0.0, %v1981
      %v1983 = vpop.f32.mrb[0].mxu0
      %1984 = vmatprep.mubr.f32.mxu0 0.0
      %1985 = vmatmul.mubr.f32.gmra.mrb[0].mxu0 %v471
      %v1986 = vpop.f32.mrb[0].mxu0
      %v1987 = vadd.f32 0.0, %v1986
      %v1988 = vpop.f32.mrb[0].mxu0
      %1989 = vmatprep.mubr.f32.mxu0 0.0
      %1990 = vmatmul.mubr.f32.gmra.mrb[0].mxu0 %v474
      %v1991 = vpop.f32.mrb[0].mxu0
      %v1992 = vadd.f32 0.0, %v1991
      %v1993 = vpop.f32.mrb[0].mxu0
      %1994 = vmatprep.mubr.f32.mxu0 0.0
      %1995 = vmatmul.mubr.f32.gmra.mrb[0].mxu0 %v477
      %v1996 = vpop.f32.mrb[0].mxu0
      %v1997 = vadd.f32 0.0, %v1996
      %v1998 = vpop.f32.mrb[0].mxu0
      %1999 = vmatprep.mubr.f32.mxu0 0.0
      %2000 = vmatmul.mubr.f32.gmra.mrb[0].mxu0 %v480
      %v2001 = vpop.f32.mrb[0].mxu0
      %v2002 = vadd.f32 0.0, %v2001
      %v2003 = vpop.f32.mrb[0].mxu0
      %2004 = vmatprep.mubr.f32.mxu0 0.0
      %2005 = vmatmul.mubr.f32.gmra.mrb[0].mxu0 %v483
      %v2006 = vpop.f32.mrb[0].mxu0
      %v2007 = vadd.f32 0.0, %v2006
      %v2008 = vpop.f32.mrb[0].mxu0
      %2009 = vmatprep.mubr.f32.mxu0 0.0
      %2010 = vmatmul.mubr.f32.gmra.mrb[0].mxu0 %v486
      %v2011 = vpop.f32.mrb[0].mxu0
      %v2012 = vadd.f32 0.0, %v2011
      %v2013 = vpop.f32.mrb[0].mxu0
      %2014 = vmatprep.mubr.f32.mxu0 0.0
      %2015 = vmatmul.mubr.f32.gmra.mrb[0].mxu0 %v489
      %v2016 = vpop.f32.mrb[0].mxu0
      %v2017 = vadd.f32 0.0, %v2016
      %v2018 = vpop.f32.mrb[0].mxu0
      %2019 = vmatprep.mubr.f32.mxu0 0.0
      %2020 = vmatmul.mubr.f32.gmra.mrb[0].mxu0 %v492
      %v2021 = vpop.f32.mrb[0].mxu0
      %v2022 = vadd.f32 0.0, %v2021
      %v2023 = vpop.f32.mrb[0].mxu0
      %2024 = vmatprep.mubr.f32.mxu0 0.0
      %2025 = vmatmul.mubr.f32.gmra.mrb[0].mxu0 %v495
      %v2026 = vpop.f32.mrb[0].mxu0
      %v2027 = vadd.f32 0.0, %v2026
      %v2028 = vpop.f32.mrb[0].mxu0
      %2029 = vmatprep.mubr.f32.mxu0 0.0
      %2030 = vmatmul.mubr.f32.gmra.mrb[0].mxu0 %v498
      %v2031 = vpop.f32.mrb[0].mxu0
      %v2032 = vadd.f32 0.0, %v2031
      %v2033 = vpop.f32.mrb[0].mxu0
      %2034 = vmatprep.mubr.f32.mxu0 0.0
      %2035 = vmatmul.mubr.f32.gmra.mrb[0].mxu0 %v501
      %v2036 = vpop.f32.mrb[0].mxu0
      %v2037 = vadd.f32 0.0, %v2036
      %v2038 = vpop.f32.mrb[0].mxu0
      %2039 = vmatprep.mubr.f32.mxu0 0.0
      %2040 = vmatmul.mubr.f32.gmra.mrb[0].mxu0 %v504
      %v2041 = vpop.f32.mrb[0].mxu0
      %v2042 = vadd.f32 0.0, %v2041
      %v2043 = vpop.f32.mrb[0].mxu0
      %2044 = vmatprep.mubr.f32.mxu0 0.0
      %2045 = vmatmul.mubr.f32.gmra.mrb[0].mxu0 %v507
      %v2046 = vpop.f32.mrb[0].mxu0
      %v2047 = vadd.f32 0.0, %v2046
      %v2048 = vpop.f32.mrb[0].mxu0
      %2049 = vmatprep.mubr.f32.mxu0 0.0
      %2050 = vmatmul.mubr.f32.gmra.mrb[0].mxu0 %v510
      %v2051 = vpop.f32.mrb[0].mxu0
      %v2052 = vadd.f32 0.0, %v2051
      %v2053 = vpop.f32.mrb[0].mxu0
      %2054 = vmatprep.mubr.f32.mxu0 0.0
      %2055 = vmatmul.mubr.f32.gmra.mrb[0].mxu0 %v513
      %v2056 = vpop.f32.mrb[0].mxu0
      %v2057 = vadd.f32 0.0, %v2056
      %v2058 = vpop.f32.mrb[0].mxu0
      %2059 = vmatprep.mubr.f32.mxu0 0.0
      %2060 = vmatmul.mubr.f32.gmra.mrb[0].mxu0 %v516
      %v2061 = vpop.f32.mrb[0].mxu0
      %v2062 = vadd.f32 0.0, %v2061
      %v2063 = vpop.f32.mrb[0].mxu0
      %2064 = vmatprep.mubr.f32.mxu0 0.0
      %2065 = vmatmul.mubr.f32.gmra.mrb[0].mxu0 %v519
      %v2066 = vpop.f32.mrb[0].mxu0
      %v2067 = vadd.f32 0.0, %v2066
      %v2068 = vpop.f32.mrb[0].mxu0
      %2069 = vmatprep.mubr.f32.mxu0 0.0
      %2070 = vmatmul.mubr.f32.gmra.mrb[0].mxu0 %v522
      %v2071 = vpop.f32.mrb[0].mxu0
      %v2072 = vadd.f32 0.0, %v2071
      %v2073 = vpop.f32.mrb[0].mxu0
      %2074 = vmatprep.mubr.f32.mxu0 0.0
      %2075 = vmatmul.mubr.f32.gmra.mrb[0].mxu0 %v525
      %v2076 = vpop.f32.mrb[0].mxu0
      %v2077 = vadd.f32 0.0, %v2076
      %v2078 = vpop.f32.mrb[0].mxu0
      %2079 = vmatprep.mubr.f32.mxu0 0.0
      %2080 = vmatmul.mubr.f32.gmra.mrb[0].mxu0 %v528
      %v2081 = vpop.f32.mrb[0].mxu0
      %v2082 = vadd.f32 0.0, %v2081
      %v2083 = vpop.f32.mrb[0].mxu0
      %2084 = vmatprep.mubr.f32.mxu0 0.0
      %2085 = vmatmul.mubr.f32.gmra.mrb[0].mxu0 %v531
      %v2086 = vpop.f32.mrb[0].mxu0
      %v2087 = vadd.f32 0.0, %v2086
      %v2088 = vpop.f32.mrb[0].mxu0
      %2089 = vmatprep.mubr.f32.mxu0 0.0
      %2090 = vmatmul.mubr.f32.gmra.mrb[0].mxu0 %v534
      %v2091 = vpop.f32.mrb[0].mxu0
      %v2092 = vadd.f32 0.0, %v2091
      %v2093 = vpop.f32.mrb[0].mxu0
      %2094 = vmatprep.mubr.f32.mxu0 0.0
      %2095 = vmatmul.mubr.f32.gmra.mrb[0].mxu0 %v537
      %v2096 = vpop.f32.mrb[0].mxu0
      %v2097 = vadd.f32 0.0, %v2096
      %v2098 = vpop.f32.mrb[0].mxu0
      %2099 = vmatprep.mubr.f32.mxu0 0.0
      %2100 = vmatmul.mubr.f32.gmra.mrb[0].mxu0 %v540
      %v2101 = vpop.f32.mrb[0].mxu0
      %v2102 = vadd.f32 0.0, %v2101
      %v2103 = vpop.f32.mrb[0].mxu0
      %2104 = vmatprep.mubr.f32.mxu0 0.0
      %2105 = vmatmul.mubr.f32.gmra.mrb[0].mxu0 %v543
      %v2106 = vpop.f32.mrb[0].mxu0
      %v2107 = vadd.f32 0.0, %v2106
      %v2108 = vpop.f32.mrb[0].mxu0
      %2109 = vmatprep.mubr.f32.mxu0 0.0
      %2110 = vmatmul.mubr.f32.gmra.mrb[0].mxu0 %v546
      %v2111 = vpop.f32.mrb[0].mxu0
      %v2112 = vadd.f32 0.0, %v2111
      %v2113 = vpop.f32.mrb[0].mxu0
      %2114 = vmatprep.mubr.f32.mxu0 0.0
      %2115 = vmatmul.mubr.f32.gmra.mrb[0].mxu0 %v549
      %v2116 = vpop.f32.mrb[0].mxu0
      %v2117 = vadd.f32 0.0, %v2116
      %v2118 = vpop.f32.mrb[0].mxu0
      %2119 = vmatprep.mubr.f32.mxu0 0.0
      %2120 = vmatmul.mubr.f32.gmra.mrb[0].mxu0 %v552
      %v2121 = vpop.f32.mrb[0].mxu0
      %v2122 = vadd.f32 0.0, %v2121
      %v2123 = vpop.f32.mrb[0].mxu0
      %2124 = vmatprep.mubr.f32.mxu0 0.0
      %2125 = vmatmul.mubr.f32.gmra.mrb[0].mxu0 %v555
      %v2126 = vpop.f32.mrb[0].mxu0
      %v2127 = vadd.f32 0.0, %v2126
      %v2128 = vpop.f32.mrb[0].mxu0
      %2129 = vmatprep.mubr.f32.mxu0 0.0
      %2130 = vmatmul.mubr.f32.gmra.mrb[0].mxu0 %v558
      %v2131 = vpop.f32.mrb[0].mxu0
      %v2132 = vadd.f32 0.0, %v2131
      %v2133 = vpop.f32.mrb[0].mxu0
      %2134 = vmatprep.mubr.f32.mxu0 0.0
      %2135 = vmatmul.mubr.f32.gmra.mrb[0].mxu0 %v561
      %v2136 = vpop.f32.mrb[0].mxu0
      %v2137 = vadd.f32 0.0, %v2136
      %v2138 = vpop.f32.mrb[0].mxu0
      %2139 = vmatprep.mubr.f32.mxu0 0.0
      %2140 = vmatmul.mubr.f32.gmra.mrb[0].mxu0 %v564
      %v2141 = vpop.f32.mrb[0].mxu0
      %v2142 = vadd.f32 0.0, %v2141
      %v2143 = vpop.f32.mrb[0].mxu0
      %2144 = vmatprep.mubr.f32.mxu0 0.0
      %2145 = vmatmul.mubr.f32.gmra.mrb[0].mxu0 %v567
      %v2146 = vpop.f32.mrb[0].mxu0
      %v2147 = vadd.f32 0.0, %v2146
      %v2148 = vpop.f32.mrb[0].mxu0
      %2149 = vmatprep.mubr.f32.mxu0 0.0
      %2150 = vmatmul.mubr.f32.gmra.mrb[0].mxu0 %v570
      %v2151 = vpop.f32.mrb[0].mxu0
      %v2152 = vadd.f32 0.0, %v2151
      %v2153 = vpop.f32.mrb[0].mxu0
      %2154 = vmatprep.mubr.f32.mxu0 0.0
      %2155 = vmatmul.mubr.f32.gmra.mrb[0].mxu0 %v573
      %v2156 = vpop.f32.mrb[0].mxu0
      %v2157 = vadd.f32 0.0, %v2156
      %v2158 = vpop.f32.mrb[0].mxu0
      %2159 = vmatprep.mubr.f32.mxu0 0.0
      %2160 = vmatmul.mubr.f32.gmra.mrb[0].mxu0 %v576
      %v2161 = vpop.f32.mrb[0].mxu0
      %v2162 = vadd.f32 0.0, %v2161
      %v2163 = vpop.f32.mrb[0].mxu0
      %2164 = vmatprep.mubr.f32.mxu0 0.0
      %2165 = vmatmul.mubr.f32.gmra.mrb[0].mxu0 %v579
      %v2166 = vpop.f32.mrb[0].mxu0
      %v2167 = vadd.f32 0.0, %v2166
      %v2168 = vpop.f32.mrb[0].mxu0
      %2169 = vmatprep.mubr.f32.mxu0 0.0
      %2170 = vmatmul.mubr.f32.gmra.mrb[0].mxu0 %v582
      %v2171 = vpop.f32.mrb[0].mxu0
      %v2172 = vadd.f32 0.0, %v2171
      %v2173 = vpop.f32.mrb[0].mxu0
      %2174 = vmatprep.mubr.f32.mxu0 0.0
      %2175 = vmatmul.mubr.f32.gmra.mrb[0].mxu0 %v585
      %v2176 = vpop.f32.mrb[0].mxu0
      %v2177 = vadd.f32 0.0, %v2176
      %v2178 = vpop.f32.mrb[0].mxu0
      %2179 = vmatprep.mubr.f32.mxu0 0.0
      %2180 = vmatmul.mubr.f32.gmra.mrb[0].mxu0 %v588
      %v2181 = vpop.f32.mrb[0].mxu0
      %v2182 = vadd.f32 0.0, %v2181
      %v2183 = vpop.f32.mrb[0].mxu0
      %2184 = vmatprep.mubr.f32.mxu0 0.0
      %2185 = vmatmul.mubr.f32.gmra.mrb[0].mxu0 %v591
      %v2186 = vpop.f32.mrb[0].mxu0
      %v2187 = vadd.f32 0.0, %v2186
      %v2188 = vpop.f32.mrb[0].mxu0
      %2189 = vmatprep.mubr.f32.mxu0 0.0
      %2190 = vmatmul.mubr.f32.gmra.mrb[0].mxu0 %v594
      %v2191 = vpop.f32.mrb[0].mxu0
      %v2192 = vadd.f32 0.0, %v2191
      %v2193 = vpop.f32.mrb[0].mxu0
      %2194 = vmatprep.mubr.f32.mxu0 0.0
      %2195 = vmatmul.mubr.f32.gmra.mrb[0].mxu0 %v597
      %v2196 = vpop.f32.mrb[0].mxu0
      %v2197 = vadd.f32 0.0, %v2196
      %v2198 = vpop.f32.mrb[0].mxu0
      %2199 = vmatprep.mubr.f32.mxu0 0.0
      %2200 = vmatmul.mubr.f32.gmra.mrb[0].mxu0 %v600
      %v2201 = vpop.f32.mrb[0].mxu0
      %v2202 = vadd.f32 0.0, %v2201
      %v2203 = vpop.f32.mrb[0].mxu0
      %2204 = vmatprep.mubr.f32.mxu0 0.0
      %2205 = vmatmul.mubr.f32.gmra.mrb[0].mxu0 %v603
      %v2206 = vpop.f32.mrb[0].mxu0
      %v2207 = vadd.f32 0.0, %v2206
      %v2208 = vpop.f32.mrb[0].mxu0
      %2209 = vmatprep.mubr.f32.mxu0 0.0
      %2210 = vmatmul.mubr.f32.gmra.mrb[0].mxu0 %v606
      %v2211 = vpop.f32.mrb[0].mxu0
      %v2212 = vadd.f32 0.0, %v2211
      %v2213 = vpop.f32.mrb[0].mxu0
      %2214 = vmatprep.mubr.f32.mxu0 0.0
      %2215 = vmatmul.mubr.f32.gmra.mrb[0].mxu0 %v609
      %v2216 = vpop.f32.mrb[0].mxu0
      %v2217 = vadd.f32 0.0, %v2216
      %v2218 = vpop.f32.mrb[0].mxu0
      %2219 = vmatprep.mubr.f32.mxu0 0.0
      %2220 = vmatmul.mubr.f32.gmra.mrb[0].mxu0 %v612
      %v2221 = vpop.f32.mrb[0].mxu0
      %v2222 = vadd.f32 0.0, %v2221
      %v2223 = vpop.f32.mrb[0].mxu0
      %2224 = vmatprep.mubr.f32.mxu0 0.0
      %2225 = vmatmul.mubr.f32.gmra.mrb[0].mxu0 %v615
      %v2226 = vpop.f32.mrb[0].mxu0
      %v2227 = vadd.f32 0.0, %v2226
      %v2228 = vpop.f32.mrb[0].mxu0
      %2229 = vmatprep.mubr.f32.mxu0 0.0
      %2230 = vmatmul.mubr.f32.gmra.mrb[0].mxu0 %v618
      %v2231 = vpop.f32.mrb[0].mxu0
      %v2232 = vadd.f32 0.0, %v2231
      %v2233 = vpop.f32.mrb[0].mxu0
      %2234 = vmatprep.mubr.f32.mxu0 0.0
      %2235 = vmatmul.mubr.f32.gmra.mrb[0].mxu0 %v621
      %v2236 = vpop.f32.mrb[0].mxu0
      %v2237 = vadd.f32 0.0, %v2236
      %v2238 = vpop.f32.mrb[0].mxu0
      %2239 = vmatprep.mubr.f32.mxu0 0.0
      %2240 = vmatmul.mubr.f32.gmra.mrb[0].mxu0 %v624
      %v2241 = vpop.f32.mrb[0].mxu0
      %v2242 = vadd.f32 0.0, %v2241
      %v2243 = vpop.f32.mrb[0].mxu0
      %2244 = vdwg.mxu0
      %vm2245 = vcmask 31744
      %v2247 = vsel %vm2245, %v1791, 0
      %v2250 = vsel %vm2245, %v1792, 0
      %v2253 = vsel %vm2245, %v1793, 0
      %v2256 = vsel %vm2245, %v1794, 0
      %v2259 = vsel %vm2245, %v1795, 0
      %v2262 = vsel %vm2245, %v1796, 0
      %v2265 = vsel %vm2245, %v1797, 0
      %v2268 = vsel %vm2245, %v1798, 0
      %v2271 = vsel %vm2245, %v1799, 0
      %v2274 = vsel %vm2245, %v1800, 0
      %v2277 = vsel %vm2245, %v1801, 0
      %v2280 = vsel %vm2245, %v1802, 0
      %v2283 = vsel %vm2245, %v1803, 0
      %v2286 = vsel %vm2245, %v1804, 0
      %v2289 = vsel %vm2245, %v1805, 0
      %v2292 = vsel %vm2245, %v1806, 0
      %v2295 = vsel %vm2245, %v1807, 0
      %v2298 = vsel %vm2245, %v1808, 0
      %v2301 = vsel %vm2245, %v1809, 0
      %v2304 = vsel %vm2245, %v1810, 0
      %v2307 = vsel %vm2245, %v1811, 0
      %v2310 = vsel %vm2245, %v1812, 0
      %v2313 = vsel %vm2245, %v1813, 0
      %v2316 = vsel %vm2245, %v1814, 0
      %v2319 = vsel %vm2245, %v1815, 0
      %v2322 = vsel %vm2245, %v1816, 0
      %v2325 = vsel %vm2245, %v1817, 0
      %v2328 = vsel %vm2245, %v1818, 0
      %v2331 = vsel %vm2245, %v1819, 0
      %v2334 = vsel %vm2245, %v1820, 0
      %v2337 = vsel %vm2245, %v1821, 0
      %v2340 = vsel %vm2245, %v1822, 0
      %v2343 = vsel %vm2245, %v1823, 0
      %v2346 = vsel %vm2245, %v1824, 0
      %v2349 = vsel %vm2245, %v1825, 0
      %v2352 = vsel %vm2245, %v1826, 0
      %v2355 = vsel %vm2245, %v1827, 0
      %v2358 = vsel %vm2245, %v1828, 0
      %v2361 = vsel %vm2245, %v1829, 0
      %v2364 = vsel %vm2245, %v1830, 0
      %v2367 = vsel %vm2245, %v1831, 0
      %v2370 = vsel %vm2245, %v1832, 0
      %v2373 = vsel %vm2245, %v1833, 0
      %v2376 = vsel %vm2245, %v1834, 0
      %v2379 = vsel %vm2245, %v1835, 0
      %v2382 = vsel %vm2245, %v1836, 0
      %v2385 = vsel %vm2245, %v1837, 0
      %v2388 = vsel %vm2245, %v1838, 0
      %v2391 = vsel %vm2245, %v1839, 0
      %v2394 = vsel %vm2245, %v1840, 0
      %v2397 = vsel %vm2245, %v1841, 0
      %v2400 = vsel %vm2245, %v1842, 0
      %v2403 = vsel %vm2245, %v1843, 0
      %v2406 = vsel %vm2245, %v1844, 0
      %v2409 = vsel %vm2245, %v1845, 0
      %v2412 = vsel %vm2245, %v1846, 0
      %v2415 = vsel %vm2245, %v1847, 0
      %v2418 = vsel %vm2245, %v1848, 0
      %v2421 = vsel %vm2245, %v1849, 0
      %v2424 = vsel %vm2245, %v1850, 0
      %v2427 = vsel %vm2245, %v1851, 0
      %v2430 = vsel %vm2245, %v1852, 0
      %v2433 = vsel %vm2245, %v1853, 0
      %v2436 = vsel %vm2245, %v1854, 0
      %vm2438 = vcmask 1043456
      %v2440 = vsel %vm2438, %v1855, 0
      %2442 = vmatprep.subr.mxu0 0.0
      %2443 = vmatpush1.msra.mxu0 %v2440
      %2444 = vmatprep.subr.mxu0 0.0
      %2445 = vmatpush1.msra.mxu0 0.0
      %2446 = vmatprep.subr.mxu0 0.0
      %2447 = vmatpush1.msra.mxu0 0.0
      %2448 = vmatprep.subr.mxu0 0.0
      %2449 = vmatpush1.msra.mxu0 0.0
      %2450 = vmatprep.subr.mxu0 0.0
      %2451 = vmatpush1.msra.mxu0 0.0
      %2452 = vmatprep.subr.mxu0 0.0
      %2453 = vmatpush1.msra.mxu0 0.0
      %2454 = vmatprep.subr.mxu0 0.0
      %2455 = vmatpush1.msra.mxu0 0.0
      %2456 = vmatprep.subr.mxu0 0.0
      %2457 = vmatpush1.msra.mxu0 0.0
      %2458 = vmatprep.subr.mxu0 0.0
      %2459 = vmatpush1.msra.mxu0 0.0
      %2460 = vmatprep.subr.mxu0 0.0
      %2461 = vmatpush1.msra.mxu0 0.0
      %2462 = vmatprep.subr.mxu0 0.0
      %2463 = vmatpush1.msra.mxu0 0.0
      %2464 = vmatprep.subr.mxu0 0.0
      %2465 = vmatpush1.msra.mxu0 0.0
      %2466 = vmatprep.subr.mxu0 0.0
      %2467 = vmatpush1.msra.mxu0 0.0
      %2468 = vmatprep.subr.mxu0 0.0
      %2469 = vmatpush1.msra.mxu0 0.0
      %2470 = vmatprep.subr.mxu0 0.0
      %2471 = vmatpush1.msra.mxu0 0.0
      %2472 = vmatprep.subr.mxu0 0.0
      %2473 = vmatpush1.msra.mxu0 0.0
      %2474 = vmatprep.subr.mxu0 0.0
      %2475 = vmatpush1.msra.mxu0 0.0
      %2476 = vmatprep.subr.mxu0 0.0
      %2477 = vmatpush1.msra.mxu0 0.0
      %2478 = vmatprep.subr.mxu0 0.0
      %2479 = vmatpush1.msra.mxu0 0.0
      %2480 = vmatprep.subr.mxu0 0.0
      %2481 = vmatpush1.msra.mxu0 0.0
      %2482 = vmatprep.subr.mxu0 0.0
      %2483 = vmatpush1.msra.mxu0 0.0
      %2484 = vmatprep.subr.mxu0 0.0
      %2485 = vmatpush1.msra.mxu0 0.0
      %2486 = vmatprep.subr.mxu0 0.0
      %2487 = vmatpush1.msra.mxu0 0.0
      %2488 = vmatprep.subr.mxu0 0.0
      %2489 = vmatpush1.msra.mxu0 0.0
      %2490 = vmatprep.subr.mxu0 0.0
      %2491 = vmatpush1.msra.mxu0 0.0
      %2492 = vmatprep.subr.mxu0 0.0
      %2493 = vmatpush1.msra.mxu0 0.0
      %2494 = vmatprep.subr.mxu0 0.0
      %2495 = vmatpush1.msra.mxu0 0.0
      %2496 = vmatprep.subr.mxu0 0.0
      %2497 = vmatpush1.msra.mxu0 0.0
      %2498 = vmatprep.subr.mxu0 0.0
      %2499 = vmatpush1.msra.mxu0 0.0
      %2500 = vmatprep.subr.mxu0 0.0
      %2501 = vmatpush1.msra.mxu0 0.0
      %2502 = vmatprep.subr.mxu0 0.0
      %2503 = vmatpush1.msra.mxu0 0.0
      %2504 = vmatprep.subr.mxu0 0.0
      %2505 = vmatpush1.msra.mxu0 0.0
      %2506 = vmatprep.mubr.f32.mxu0 0.0
      %2507 = vmatmul.mubr.f32.gmra.mrb[0].mxu0 %v2247
      %v2508 = vpop.f32.mrb[0].mxu0
      %v2509 = vadd.f32 %v1927, %v2508
      %v2510 = vpop.f32.mrb[0].mxu0
      %2511 = vmatprep.mubr.f32.mxu0 0.0
      %2512 = vmatmul.mubr.f32.gmra.mrb[0].mxu0 %v2250
      %v2513 = vpop.f32.mrb[0].mxu0
      %v2514 = vadd.f32 %v1932, %v2513
      %v2515 = vpop.f32.mrb[0].mxu0
      %2516 = vmatprep.mubr.f32.mxu0 0.0
      %2517 = vmatmul.mubr.f32.gmra.mrb[0].mxu0 %v2253
      %v2518 = vpop.f32.mrb[0].mxu0
      %v2519 = vadd.f32 %v1937, %v2518
      %v2520 = vpop.f32.mrb[0].mxu0
      %2521 = vmatprep.mubr.f32.mxu0 0.0
      %2522 = vmatmul.mubr.f32.gmra.mrb[0].mxu0 %v2256
      %v2523 = vpop.f32.mrb[0].mxu0
      %v2524 = vadd.f32 %v1942, %v2523
      %v2525 = vpop.f32.mrb[0].mxu0
      %2526 = vmatprep.mubr.f32.mxu0 0.0
      %2527 = vmatmul.mubr.f32.gmra.mrb[0].mxu0 %v2259
      %v2528 = vpop.f32.mrb[0].mxu0
      %v2529 = vadd.f32 %v1947, %v2528
      %v2530 = vpop.f32.mrb[0].mxu0
      %2531 = vmatprep.mubr.f32.mxu0 0.0
      %2532 = vmatmul.mubr.f32.gmra.mrb[0].mxu0 %v2262
      %v2533 = vpop.f32.mrb[0].mxu0
      %v2534 = vadd.f32 %v1952, %v2533
      %v2535 = vpop.f32.mrb[0].mxu0
      %2536 = vmatprep.mubr.f32.mxu0 0.0
      %2537 = vmatmul.mubr.f32.gmra.mrb[0].mxu0 %v2265
      %v2538 = vpop.f32.mrb[0].mxu0
      %v2539 = vadd.f32 %v1957, %v2538
      %v2540 = vpop.f32.mrb[0].mxu0
      %2541 = vmatprep.mubr.f32.mxu0 0.0
      %2542 = vmatmul.mubr.f32.gmra.mrb[0].mxu0 %v2268
      %v2543 = vpop.f32.mrb[0].mxu0
      %v2544 = vadd.f32 %v1962, %v2543
      %v2545 = vpop.f32.mrb[0].mxu0
      %2546 = vmatprep.mubr.f32.mxu0 0.0
      %2547 = vmatmul.mubr.f32.gmra.mrb[0].mxu0 %v2271
      %v2548 = vpop.f32.mrb[0].mxu0
      %v2549 = vadd.f32 %v1967, %v2548
      %v2550 = vpop.f32.mrb[0].mxu0
      %2551 = vmatprep.mubr.f32.mxu0 0.0
      %2552 = vmatmul.mubr.f32.gmra.mrb[0].mxu0 %v2274
      %v2553 = vpop.f32.mrb[0].mxu0
      %v2554 = vadd.f32 %v1972, %v2553
      %v2555 = vpop.f32.mrb[0].mxu0
      %2556 = vmatprep.mubr.f32.mxu0 0.0
      %2557 = vmatmul.mubr.f32.gmra.mrb[0].mxu0 %v2277
      %v2558 = vpop.f32.mrb[0].mxu0
      %v2559 = vadd.f32 %v1977, %v2558
      %v2560 = vpop.f32.mrb[0].mxu0
      %2561 = vmatprep.mubr.f32.mxu0 0.0
      %2562 = vmatmul.mubr.f32.gmra.mrb[0].mxu0 %v2280
      %v2563 = vpop.f32.mrb[0].mxu0
      %v2564 = vadd.f32 %v1982, %v2563
      %v2565 = vpop.f32.mrb[0].mxu0
      %2566 = vmatprep.mubr.f32.mxu0 0.0
      %2567 = vmatmul.mubr.f32.gmra.mrb[0].mxu0 %v2283
      %v2568 = vpop.f32.mrb[0].mxu0
      %v2569 = vadd.f32 %v1987, %v2568
      %v2570 = vpop.f32.mrb[0].mxu0
      %2571 = vmatprep.mubr.f32.mxu0 0.0
      %2572 = vmatmul.mubr.f32.gmra.mrb[0].mxu0 %v2286
      %v2573 = vpop.f32.mrb[0].mxu0
      %v2574 = vadd.f32 %v1992, %v2573
      %v2575 = vpop.f32.mrb[0].mxu0
      %2576 = vmatprep.mubr.f32.mxu0 0.0
      %2577 = vmatmul.mubr.f32.gmra.mrb[0].mxu0 %v2289
      %v2578 = vpop.f32.mrb[0].mxu0
      %v2579 = vadd.f32 %v1997, %v2578
      %v2580 = vpop.f32.mrb[0].mxu0
      %2581 = vmatprep.mubr.f32.mxu0 0.0
      %2582 = vmatmul.mubr.f32.gmra.mrb[0].mxu0 %v2292
      %v2583 = vpop.f32.mrb[0].mxu0
      %v2584 = vadd.f32 %v2002, %v2583
      %v2585 = vpop.f32.mrb[0].mxu0
      %2586 = vmatprep.mubr.f32.mxu0 0.0
      %2587 = vmatmul.mubr.f32.gmra.mrb[0].mxu0 %v2295
      %v2588 = vpop.f32.mrb[0].mxu0
      %v2589 = vadd.f32 %v2007, %v2588
      %v2590 = vpop.f32.mrb[0].mxu0
      %2591 = vmatprep.mubr.f32.mxu0 0.0
      %2592 = vmatmul.mubr.f32.gmra.mrb[0].mxu0 %v2298
      %v2593 = vpop.f32.mrb[0].mxu0
      %v2594 = vadd.f32 %v2012, %v2593
      %v2595 = vpop.f32.mrb[0].mxu0
      %2596 = vmatprep.mubr.f32.mxu0 0.0
      %2597 = vmatmul.mubr.f32.gmra.mrb[0].mxu0 %v2301
      %v2598 = vpop.f32.mrb[0].mxu0
      %v2599 = vadd.f32 %v2017, %v2598
      %v2600 = vpop.f32.mrb[0].mxu0
      %2601 = vmatprep.mubr.f32.mxu0 0.0
      %2602 = vmatmul.mubr.f32.gmra.mrb[0].mxu0 %v2304
      %v2603 = vpop.f32.mrb[0].mxu0
      %v2604 = vadd.f32 %v2022, %v2603
      %v2605 = vpop.f32.mrb[0].mxu0
      %2606 = vmatprep.mubr.f32.mxu0 0.0
      %2607 = vmatmul.mubr.f32.gmra.mrb[0].mxu0 %v2307
      %v2608 = vpop.f32.mrb[0].mxu0
      %v2609 = vadd.f32 %v2027, %v2608
      %v2610 = vpop.f32.mrb[0].mxu0
      %2611 = vmatprep.mubr.f32.mxu0 0.0
      %2612 = vmatmul.mubr.f32.gmra.mrb[0].mxu0 %v2310
      %v2613 = vpop.f32.mrb[0].mxu0
      %v2614 = vadd.f32 %v2032, %v2613
      %v2615 = vpop.f32.mrb[0].mxu0
      %2616 = vmatprep.mubr.f32.mxu0 0.0
      %2617 = vmatmul.mubr.f32.gmra.mrb[0].mxu0 %v2313
      %v2618 = vpop.f32.mrb[0].mxu0
      %v2619 = vadd.f32 %v2037, %v2618
      %v2620 = vpop.f32.mrb[0].mxu0
      %2621 = vmatprep.mubr.f32.mxu0 0.0
      %2622 = vmatmul.mubr.f32.gmra.mrb[0].mxu0 %v2316
      %v2623 = vpop.f32.mrb[0].mxu0
      %v2624 = vadd.f32 %v2042, %v2623
      %v2625 = vpop.f32.mrb[0].mxu0
      %2626 = vmatprep.mubr.f32.mxu0 0.0
      %2627 = vmatmul.mubr.f32.gmra.mrb[0].mxu0 %v2319
      %v2628 = vpop.f32.mrb[0].mxu0
      %v2629 = vadd.f32 %v2047, %v2628
      %v2630 = vpop.f32.mrb[0].mxu0
      %2631 = vmatprep.mubr.f32.mxu0 0.0
      %2632 = vmatmul.mubr.f32.gmra.mrb[0].mxu0 %v2322
      %v2633 = vpop.f32.mrb[0].mxu0
      %v2634 = vadd.f32 %v2052, %v2633
      %v2635 = vpop.f32.mrb[0].mxu0
      %2636 = vmatprep.mubr.f32.mxu0 0.0
      %2637 = vmatmul.mubr.f32.gmra.mrb[0].mxu0 %v2325
      %v2638 = vpop.f32.mrb[0].mxu0
      %v2639 = vadd.f32 %v2057, %v2638
      %v2640 = vpop.f32.mrb[0].mxu0
      %2641 = vmatprep.mubr.f32.mxu0 0.0
      %2642 = vmatmul.mubr.f32.gmra.mrb[0].mxu0 %v2328
      %v2643 = vpop.f32.mrb[0].mxu0
      %v2644 = vadd.f32 %v2062, %v2643
      %v2645 = vpop.f32.mrb[0].mxu0
      %2646 = vmatprep.mubr.f32.mxu0 0.0
      %2647 = vmatmul.mubr.f32.gmra.mrb[0].mxu0 %v2331
      %v2648 = vpop.f32.mrb[0].mxu0
      %v2649 = vadd.f32 %v2067, %v2648
      %v2650 = vpop.f32.mrb[0].mxu0
      %2651 = vmatprep.mubr.f32.mxu0 0.0
      %2652 = vmatmul.mubr.f32.gmra.mrb[0].mxu0 %v2334
      %v2653 = vpop.f32.mrb[0].mxu0
      %v2654 = vadd.f32 %v2072, %v2653
      %v2655 = vpop.f32.mrb[0].mxu0
      %2656 = vmatprep.mubr.f32.mxu0 0.0
      %2657 = vmatmul.mubr.f32.gmra.mrb[0].mxu0 %v2337
      %v2658 = vpop.f32.mrb[0].mxu0
      %v2659 = vadd.f32 %v2077, %v2658
      %v2660 = vpop.f32.mrb[0].mxu0
      %2661 = vmatprep.mubr.f32.mxu0 0.0
      %2662 = vmatmul.mubr.f32.gmra.mrb[0].mxu0 %v2340
      %v2663 = vpop.f32.mrb[0].mxu0
      %v2664 = vadd.f32 %v2082, %v2663
      %v2665 = vpop.f32.mrb[0].mxu0
      %2666 = vmatprep.mubr.f32.mxu0 0.0
      %2667 = vmatmul.mubr.f32.gmra.mrb[0].mxu0 %v2343
      %v2668 = vpop.f32.mrb[0].mxu0
      %v2669 = vadd.f32 %v2087, %v2668
      %v2670 = vpop.f32.mrb[0].mxu0
      %2671 = vmatprep.mubr.f32.mxu0 0.0
      %2672 = vmatmul.mubr.f32.gmra.mrb[0].mxu0 %v2346
      %v2673 = vpop.f32.mrb[0].mxu0
      %v2674 = vadd.f32 %v2092, %v2673
      %v2675 = vpop.f32.mrb[0].mxu0
      %2676 = vmatprep.mubr.f32.mxu0 0.0
      %2677 = vmatmul.mubr.f32.gmra.mrb[0].mxu0 %v2349
      %v2678 = vpop.f32.mrb[0].mxu0
      %v2679 = vadd.f32 %v2097, %v2678
      %v2680 = vpop.f32.mrb[0].mxu0
      %2681 = vmatprep.mubr.f32.mxu0 0.0
      %2682 = vmatmul.mubr.f32.gmra.mrb[0].mxu0 %v2352
      %v2683 = vpop.f32.mrb[0].mxu0
      %v2684 = vadd.f32 %v2102, %v2683
      %v2685 = vpop.f32.mrb[0].mxu0
      %2686 = vmatprep.mubr.f32.mxu0 0.0
      %2687 = vmatmul.mubr.f32.gmra.mrb[0].mxu0 %v2355
      %v2688 = vpop.f32.mrb[0].mxu0
      %v2689 = vadd.f32 %v2107, %v2688
      %v2690 = vpop.f32.mrb[0].mxu0
      %2691 = vmatprep.mubr.f32.mxu0 0.0
      %2692 = vmatmul.mubr.f32.gmra.mrb[0].mxu0 %v2358
      %v2693 = vpop.f32.mrb[0].mxu0
      %v2694 = vadd.f32 %v2112, %v2693
      %v2695 = vpop.f32.mrb[0].mxu0
      %2696 = vmatprep.mubr.f32.mxu0 0.0
      %2697 = vmatmul.mubr.f32.gmra.mrb[0].mxu0 %v2361
      %v2698 = vpop.f32.mrb[0].mxu0
      %v2699 = vadd.f32 %v2117, %v2698
      %v2700 = vpop.f32.mrb[0].mxu0
      %2701 = vmatprep.mubr.f32.mxu0 0.0
      %2702 = vmatmul.mubr.f32.gmra.mrb[0].mxu0 %v2364
      %v2703 = vpop.f32.mrb[0].mxu0
      %v2704 = vadd.f32 %v2122, %v2703
      %v2705 = vpop.f32.mrb[0].mxu0
      %2706 = vmatprep.mubr.f32.mxu0 0.0
      %2707 = vmatmul.mubr.f32.gmra.mrb[0].mxu0 %v2367
      %v2708 = vpop.f32.mrb[0].mxu0
      %v2709 = vadd.f32 %v2127, %v2708
      %v2710 = vpop.f32.mrb[0].mxu0
      %2711 = vmatprep.mubr.f32.mxu0 0.0
      %2712 = vmatmul.mubr.f32.gmra.mrb[0].mxu0 %v2370
      %v2713 = vpop.f32.mrb[0].mxu0
      %v2714 = vadd.f32 %v2132, %v2713
      %v2715 = vpop.f32.mrb[0].mxu0
      %2716 = vmatprep.mubr.f32.mxu0 0.0
      %2717 = vmatmul.mubr.f32.gmra.mrb[0].mxu0 %v2373
      %v2718 = vpop.f32.mrb[0].mxu0
      %v2719 = vadd.f32 %v2137, %v2718
      %v2720 = vpop.f32.mrb[0].mxu0
      %2721 = vmatprep.mubr.f32.mxu0 0.0
      %2722 = vmatmul.mubr.f32.gmra.mrb[0].mxu0 %v2376
      %v2723 = vpop.f32.mrb[0].mxu0
      %v2724 = vadd.f32 %v2142, %v2723
      %v2725 = vpop.f32.mrb[0].mxu0
      %2726 = vmatprep.mubr.f32.mxu0 0.0
      %2727 = vmatmul.mubr.f32.gmra.mrb[0].mxu0 %v2379
      %v2728 = vpop.f32.mrb[0].mxu0
      %v2729 = vadd.f32 %v2147, %v2728
      %v2730 = vpop.f32.mrb[0].mxu0
      %2731 = vmatprep.mubr.f32.mxu0 0.0
      %2732 = vmatmul.mubr.f32.gmra.mrb[0].mxu0 %v2382
      %v2733 = vpop.f32.mrb[0].mxu0
      %v2734 = vadd.f32 %v2152, %v2733
      %v2735 = vpop.f32.mrb[0].mxu0
      %2736 = vmatprep.mubr.f32.mxu0 0.0
      %2737 = vmatmul.mubr.f32.gmra.mrb[0].mxu0 %v2385
      %v2738 = vpop.f32.mrb[0].mxu0
      %v2739 = vadd.f32 %v2157, %v2738
      %v2740 = vpop.f32.mrb[0].mxu0
      %2741 = vmatprep.mubr.f32.mxu0 0.0
      %2742 = vmatmul.mubr.f32.gmra.mrb[0].mxu0 %v2388
      %v2743 = vpop.f32.mrb[0].mxu0
      %v2744 = vadd.f32 %v2162, %v2743
      %v2745 = vpop.f32.mrb[0].mxu0
      %2746 = vmatprep.mubr.f32.mxu0 0.0
      %2747 = vmatmul.mubr.f32.gmra.mrb[0].mxu0 %v2391
      %v2748 = vpop.f32.mrb[0].mxu0
      %v2749 = vadd.f32 %v2167, %v2748
      %v2750 = vpop.f32.mrb[0].mxu0
      %2751 = vmatprep.mubr.f32.mxu0 0.0
      %2752 = vmatmul.mubr.f32.gmra.mrb[0].mxu0 %v2394
      %v2753 = vpop.f32.mrb[0].mxu0
      %v2754 = vadd.f32 %v2172, %v2753
      %v2755 = vpop.f32.mrb[0].mxu0
      %2756 = vmatprep.mubr.f32.mxu0 0.0
      %2757 = vmatmul.mubr.f32.gmra.mrb[0].mxu0 %v2397
      %v2758 = vpop.f32.mrb[0].mxu0
      %v2759 = vadd.f32 %v2177, %v2758
      %v2760 = vpop.f32.mrb[0].mxu0
      %2761 = vmatprep.mubr.f32.mxu0 0.0
      %2762 = vmatmul.mubr.f32.gmra.mrb[0].mxu0 %v2400
      %v2763 = vpop.f32.mrb[0].mxu0
      %v2764 = vadd.f32 %v2182, %v2763
      %v2765 = vpop.f32.mrb[0].mxu0
      %2766 = vmatprep.mubr.f32.mxu0 0.0
      %2767 = vmatmul.mubr.f32.gmra.mrb[0].mxu0 %v2403
      %v2768 = vpop.f32.mrb[0].mxu0
      %v2769 = vadd.f32 %v2187, %v2768
      %v2770 = vpop.f32.mrb[0].mxu0
      %2771 = vmatprep.mubr.f32.mxu0 0.0
      %2772 = vmatmul.mubr.f32.gmra.mrb[0].mxu0 %v2406
      %v2773 = vpop.f32.mrb[0].mxu0
      %v2774 = vadd.f32 %v2192, %v2773
      %v2775 = vpop.f32.mrb[0].mxu0
      %2776 = vmatprep.mubr.f32.mxu0 0.0
      %2777 = vmatmul.mubr.f32.gmra.mrb[0].mxu0 %v2409
      %v2778 = vpop.f32.mrb[0].mxu0
      %v2779 = vadd.f32 %v2197, %v2778
      %v2780 = vpop.f32.mrb[0].mxu0
      %2781 = vmatprep.mubr.f32.mxu0 0.0
      %2782 = vmatmul.mubr.f32.gmra.mrb[0].mxu0 %v2412
      %v2783 = vpop.f32.mrb[0].mxu0
      %v2784 = vadd.f32 %v2202, %v2783
      %v2785 = vpop.f32.mrb[0].mxu0
      %2786 = vmatprep.mubr.f32.mxu0 0.0
      %2787 = vmatmul.mubr.f32.gmra.mrb[0].mxu0 %v2415
      %v2788 = vpop.f32.mrb[0].mxu0
      %v2789 = vadd.f32 %v2207, %v2788
      %v2790 = vpop.f32.mrb[0].mxu0
      %2791 = vmatprep.mubr.f32.mxu0 0.0
      %2792 = vmatmul.mubr.f32.gmra.mrb[0].mxu0 %v2418
      %v2793 = vpop.f32.mrb[0].mxu0
      %v2794 = vadd.f32 %v2212, %v2793
      %v2795 = vpop.f32.mrb[0].mxu0
      %2796 = vmatprep.mubr.f32.mxu0 0.0
      %2797 = vmatmul.mubr.f32.gmra.mrb[0].mxu0 %v2421
      %v2798 = vpop.f32.mrb[0].mxu0
      %v2799 = vadd.f32 %v2217, %v2798
      %v2800 = vpop.f32.mrb[0].mxu0
      %2801 = vmatprep.mubr.f32.mxu0 0.0
      %2802 = vmatmul.mubr.f32.gmra.mrb[0].mxu0 %v2424
      %v2803 = vpop.f32.mrb[0].mxu0
      %v2804 = vadd.f32 %v2222, %v2803
      %v2805 = vpop.f32.mrb[0].mxu0
      %2806 = vmatprep.mubr.f32.mxu0 0.0
      %2807 = vmatmul.mubr.f32.gmra.mrb[0].mxu0 %v2427
      %v2808 = vpop.f32.mrb[0].mxu0
      %v2809 = vadd.f32 %v2227, %v2808
      %v2810 = vpop.f32.mrb[0].mxu0
      %2811 = vmatprep.mubr.f32.mxu0 0.0
      %2812 = vmatmul.mubr.f32.gmra.mrb[0].mxu0 %v2430
      %v2813 = vpop.f32.mrb[0].mxu0
      %v2814 = vadd.f32 %v2232, %v2813
      %v2815 = vpop.f32.mrb[0].mxu0
      %2816 = vmatprep.mubr.f32.mxu0 0.0
      %2817 = vmatmul.mubr.f32.gmra.mrb[0].mxu0 %v2433
      %v2818 = vpop.f32.mrb[0].mxu0
      %v2819 = vadd.f32 %v2237, %v2818
      %v2820 = vpop.f32.mrb[0].mxu0
      %2821 = vmatprep.mubr.f32.mxu0 0.0
      %2822 = vmatmul.mubr.f32.gmra.mrb[0].mxu0 %v2436
      %v2823 = vpop.f32.mrb[0].mxu0
      %v2824 = vadd.f32 %v2242, %v2823
      %v2825 = vpop.f32.mrb[0].mxu0
      %2826 = vdwg.mxu0
      %v2827 = vld [vmem:[%s8] sm:$0x1]
      %v2829 = vlaneseq
      %v2830 = vshrl.u32 %v2829, 7
      %v2831 = vsub.s32 0, %v2830
      %v2832 = vrot.slane %v2827, %v2831
      %v2834 = vadd.f32 %v2509, %v2832
      %v2835 = vadd.f32 %v2514, %v2832
      %v2836 = vadd.f32 %v2519, %v2832
      %v2837 = vadd.f32 %v2524, %v2832
      %v2838 = vadd.f32 %v2529, %v2832
      %v2839 = vadd.f32 %v2534, %v2832
      %v2840 = vadd.f32 %v2539, %v2832
      %v2841 = vadd.f32 %v2544, %v2832
      %v2842 = vadd.f32 %v2549, %v2832
      %v2843 = vadd.f32 %v2554, %v2832
      %v2844 = vadd.f32 %v2559, %v2832
      %v2845 = vadd.f32 %v2564, %v2832
      %v2846 = vadd.f32 %v2569, %v2832
      %v2847 = vadd.f32 %v2574, %v2832
      %v2848 = vadd.f32 %v2579, %v2832
      %v2849 = vadd.f32 %v2584, %v2832
      %v2850 = vadd.f32 %v2589, %v2832
      %v2851 = vadd.f32 %v2594, %v2832
      %v2852 = vadd.f32 %v2599, %v2832
      %v2853 = vadd.f32 %v2604, %v2832
      %v2854 = vadd.f32 %v2609, %v2832
      %v2855 = vadd.f32 %v2614, %v2832
      %v2856 = vadd.f32 %v2619, %v2832
      %v2857 = vadd.f32 %v2624, %v2832
      %v2858 = vadd.f32 %v2629, %v2832
      %v2859 = vadd.f32 %v2634, %v2832
      %v2860 = vadd.f32 %v2639, %v2832
      %v2861 = vadd.f32 %v2644, %v2832
      %v2862 = vadd.f32 %v2649, %v2832
      %v2863 = vadd.f32 %v2654, %v2832
      %v2864 = vadd.f32 %v2659, %v2832
      %v2865 = vadd.f32 %v2664, %v2832
      %v2866 = vadd.f32 %v2669, %v2832
      %v2867 = vadd.f32 %v2674, %v2832
      %v2868 = vadd.f32 %v2679, %v2832
      %v2869 = vadd.f32 %v2684, %v2832
      %v2870 = vadd.f32 %v2689, %v2832
      %v2871 = vadd.f32 %v2694, %v2832
      %v2872 = vadd.f32 %v2699, %v2832
      %v2873 = vadd.f32 %v2704, %v2832
      %v2874 = vadd.f32 %v2709, %v2832
      %v2875 = vadd.f32 %v2714, %v2832
      %v2876 = vadd.f32 %v2719, %v2832
      %v2877 = vadd.f32 %v2724, %v2832
      %v2878 = vadd.f32 %v2729, %v2832
      %v2879 = vadd.f32 %v2734, %v2832
      %v2880 = vadd.f32 %v2739, %v2832
      %v2881 = vadd.f32 %v2744, %v2832
      %v2882 = vadd.f32 %v2749, %v2832
      %v2883 = vadd.f32 %v2754, %v2832
      %v2884 = vadd.f32 %v2759, %v2832
      %v2885 = vadd.f32 %v2764, %v2832
      %v2886 = vadd.f32 %v2769, %v2832
      %v2887 = vadd.f32 %v2774, %v2832
      %v2888 = vadd.f32 %v2779, %v2832
      %v2889 = vadd.f32 %v2784, %v2832
      %v2890 = vadd.f32 %v2789, %v2832
      %v2891 = vadd.f32 %v2794, %v2832
      %v2892 = vadd.f32 %v2799, %v2832
      %v2893 = vadd.f32 %v2804, %v2832
      %v2894 = vadd.f32 %v2809, %v2832
      %v2895 = vadd.f32 %v2814, %v2832
      %v2896 = vadd.f32 %v2819, %v2832
      %v2897 = vadd.f32 %v2824, %v2832
      %vm2898 = vcmask 130048
      %2899 = vst.msk [vmem:[%s356] sm:$0xff] %vm2898, %v2834
      %2900 = vst.msk [vmem:[%s356 + $0x8] sm:$0xff] %vm2898, %v2835
      %2901 = vst.msk [vmem:[%s356 + $0x10] sm:$0xff] %vm2898, %v2836
      %2902 = vst.msk [vmem:[%s356 + $0x18] sm:$0xff] %vm2898, %v2837
      %2903 = vst.msk [vmem:[%s356 + $0x20] sm:$0xff] %vm2898, %v2838
      %2904 = vst.msk [vmem:[%s356 + $0x28] sm:$0xff] %vm2898, %v2839
      %2905 = vst.msk [vmem:[%s356 + $0x30] sm:$0xff] %vm2898, %v2840
      %2906 = vst.msk [vmem:[%s356 + $0x38] sm:$0xff] %vm2898, %v2841
      %2907 = vst.msk [vmem:[%s356 + $0x40] sm:$0xff] %vm2898, %v2842
      %2908 = vst.msk [vmem:[%s356 + $0x48] sm:$0xff] %vm2898, %v2843
      %2909 = vst.msk [vmem:[%s356 + $0x50] sm:$0xff] %vm2898, %v2844
      %2910 = vst.msk [vmem:[%s356 + $0x58] sm:$0xff] %vm2898, %v2845
      %2911 = vst.msk [vmem:[%s356 + $0x60] sm:$0xff] %vm2898, %v2846
      %2912 = vst.msk [vmem:[%s356 + $0x68] sm:$0xff] %vm2898, %v2847
      %2913 = vst.msk [vmem:[%s356 + $0x70] sm:$0xff] %vm2898, %v2848
      %2914 = vst.msk [vmem:[%s356 + $0x78] sm:$0xff] %vm2898, %v2849
      %2915 = vst.msk [vmem:[%s356 + $0x80] sm:$0xff] %vm2898, %v2850
      %2916 = vst.msk [vmem:[%s356 + $0x88] sm:$0xff] %vm2898, %v2851
      %2917 = vst.msk [vmem:[%s356 + $0x90] sm:$0xff] %vm2898, %v2852
      %2918 = vst.msk [vmem:[%s356 + $0x98] sm:$0xff] %vm2898, %v2853
      %2919 = vst.msk [vmem:[%s356 + $0xa0] sm:$0xff] %vm2898, %v2854
      %2920 = vst.msk [vmem:[%s356 + $0xa8] sm:$0xff] %vm2898, %v2855
      %2921 = vst.msk [vmem:[%s356 + $0xb0] sm:$0xff] %vm2898, %v2856
      %2922 = vst.msk [vmem:[%s356 + $0xb8] sm:$0xff] %vm2898, %v2857
      %2923 = vst.msk [vmem:[%s356 + $0xc0] sm:$0xff] %vm2898, %v2858
      %2924 = vst.msk [vmem:[%s356 + $0xc8] sm:$0xff] %vm2898, %v2859
      %2925 = vst.msk [vmem:[%s356 + $0xd0] sm:$0xff] %vm2898, %v2860
      %2926 = vst.msk [vmem:[%s356 + $0xd8] sm:$0xff] %vm2898, %v2861
      %2927 = vst.msk [vmem:[%s356 + $0xe0] sm:$0xff] %vm2898, %v2862
      %2928 = vst.msk [vmem:[%s356 + $0xe8] sm:$0xff] %vm2898, %v2863
      %2929 = vst.msk [vmem:[%s356 + $0xf0] sm:$0xff] %vm2898, %v2864
      %2930 = vst.msk [vmem:[%s356 + $0xf8] sm:$0xff] %vm2898, %v2865
      %2931 = vst.msk [vmem:[%s356 + $0x100] sm:$0xff] %vm2898, %v2866
      %2932 = vst.msk [vmem:[%s356 + $0x108] sm:$0xff] %vm2898, %v2867
      %2933 = vst.msk [vmem:[%s356 + $0x110] sm:$0xff] %vm2898, %v2868
      %2934 = vst.msk [vmem:[%s356 + $0x118] sm:$0xff] %vm2898, %v2869
      %2935 = vst.msk [vmem:[%s356 + $0x120] sm:$0xff] %vm2898, %v2870
      %2936 = vst.msk [vmem:[%s356 + $0x128] sm:$0xff] %vm2898, %v2871
      %2937 = vst.msk [vmem:[%s356 + $0x130] sm:$0xff] %vm2898, %v2872
      %2938 = vst.msk [vmem:[%s356 + $0x138] sm:$0xff] %vm2898, %v2873
      %2939 = vst.msk [vmem:[%s356 + $0x140] sm:$0xff] %vm2898, %v2874
      %2940 = vst.msk [vmem:[%s356 + $0x148] sm:$0xff] %vm2898, %v2875
      %2941 = vst.msk [vmem:[%s356 + $0x150] sm:$0xff] %vm2898, %v2876
      %2942 = vst.msk [vmem:[%s356 + $0x158] sm:$0xff] %vm2898, %v2877
      %2943 = vst.msk [vmem:[%s356 + $0x160] sm:$0xff] %vm2898, %v2878
      %2944 = vst.msk [vmem:[%s356 + $0x168] sm:$0xff] %vm2898, %v2879
      %2945 = vst.msk [vmem:[%s356 + $0x170] sm:$0xff] %vm2898, %v2880
      %2946 = vst.msk [vmem:[%s356 + $0x178] sm:$0xff] %vm2898, %v2881
      %2947 = vst.msk [vmem:[%s356 + $0x180] sm:$0xff] %vm2898, %v2882
      %2948 = vst.msk [vmem:[%s356 + $0x188] sm:$0xff] %vm2898, %v2883
      %2949 = vst.msk [vmem:[%s356 + $0x190] sm:$0xff] %vm2898, %v2884
      %2950 = vst.msk [vmem:[%s356 + $0x198] sm:$0xff] %vm2898, %v2885
      %2951 = vst.msk [vmem:[%s356 + $0x1a0] sm:$0xff] %vm2898, %v2886
      %2952 = vst.msk [vmem:[%s356 + $0x1a8] sm:$0xff] %vm2898, %v2887
      %2953 = vst.msk [vmem:[%s356 + $0x1b0] sm:$0xff] %vm2898, %v2888
      %2954 = vst.msk [vmem:[%s356 + $0x1b8] sm:$0xff] %vm2898, %v2889
      %2955 = vst.msk [vmem:[%s356 + $0x1c0] sm:$0xff] %vm2898, %v2890
      %2956 = vst.msk [vmem:[%s356 + $0x1c8] sm:$0xff] %vm2898, %v2891
      %2957 = vst.msk [vmem:[%s356 + $0x1d0] sm:$0xff] %vm2898, %v2892
      %2958 = vst.msk [vmem:[%s356 + $0x1d8] sm:$0xff] %vm2898, %v2893
      %2959 = vst.msk [vmem:[%s356 + $0x1e0] sm:$0xff] %vm2898, %v2894
      %2960 = vst.msk [vmem:[%s356 + $0x1e8] sm:$0xff] %vm2898, %v2895
      %2961 = vst.msk [vmem:[%s356 + $0x1f0] sm:$0xff] %vm2898, %v2896
      %2962 = vst.msk [vmem:[%s356 + $0x1f8] sm:$0xff] %vm2898, %v2897
      %3027 = vrot.lane.b32.xlu0 %v693, 16
      %v3028 = vpop.permute.xlu0 %3027
      %3029 = vrot.lane.b32.xlu0 %v698, 16
      %v3030 = vpop.permute.xlu0 %3029
      %3031 = vrot.lane.b32.xlu0 %v703, 16
      %v3032 = vpop.permute.xlu0 %3031
      %3033 = vrot.lane.b32.xlu0 %v708, 16
      %v3034 = vpop.permute.xlu0 %3033
      %3035 = vrot.lane.b32.xlu0 %v713, 16
      %v3036 = vpop.permute.xlu0 %3035
      %3037 = vrot.lane.b32.xlu0 %v718, 16
      %v3038 = vpop.permute.xlu0 %3037
      %3039 = vrot.lane.b32.xlu0 %v723, 16
      %v3040 = vpop.permute.xlu0 %3039
      %3041 = vrot.lane.b32.xlu0 %v728, 16
      %v3042 = vpop.permute.xlu0 %3041
      %3043 = vrot.lane.b32.xlu0 %v733, 16
      %v3044 = vpop.permute.xlu0 %3043
      %3045 = vrot.lane.b32.xlu0 %v738, 16
      %v3046 = vpop.permute.xlu0 %3045
      %3047 = vrot.lane.b32.xlu0 %v743, 16
      %v3048 = vpop.permute.xlu0 %3047
      %3049 = vrot.lane.b32.xlu0 %v748, 16
      %v3050 = vpop.permute.xlu0 %3049
      %3051 = vrot.lane.b32.xlu0 %v753, 16
      %v3052 = vpop.permute.xlu0 %3051
      %3053 = vrot.lane.b32.xlu0 %v758, 16
      %v3054 = vpop.permute.xlu0 %3053
      %3055 = vrot.lane.b32.xlu0 %v763, 16
      %v3056 = vpop.permute.xlu0 %3055
      %3057 = vrot.lane.b32.xlu0 %v768, 16
      %v3058 = vpop.permute.xlu0 %3057
      %3059 = vrot.lane.b32.xlu0 %v773, 16
      %v3060 = vpop.permute.xlu0 %3059
      %3061 = vrot.lane.b32.xlu0 %v778, 16
      %v3062 = vpop.permute.xlu0 %3061
      %3063 = vrot.lane.b32.xlu0 %v783, 16
      %v3064 = vpop.permute.xlu0 %3063
      %3065 = vrot.lane.b32.xlu0 %v788, 16
      %v3066 = vpop.permute.xlu0 %3065
      %3067 = vrot.lane.b32.xlu0 %v793, 16
      %v3068 = vpop.permute.xlu0 %3067
      %3069 = vrot.lane.b32.xlu0 %v798, 16
      %v3070 = vpop.permute.xlu0 %3069
      %3071 = vrot.lane.b32.xlu0 %v803, 16
      %v3072 = vpop.permute.xlu0 %3071
      %3073 = vrot.lane.b32.xlu0 %v808, 16
      %v3074 = vpop.permute.xlu0 %3073
      %3075 = vrot.lane.b32.xlu0 %v813, 16
      %v3076 = vpop.permute.xlu0 %3075
      %3077 = vrot.lane.b32.xlu0 %v818, 16
      %v3078 = vpop.permute.xlu0 %3077
      %3079 = vrot.lane.b32.xlu0 %v823, 16
      %v3080 = vpop.permute.xlu0 %3079
      %3081 = vrot.lane.b32.xlu0 %v828, 16
      %v3082 = vpop.permute.xlu0 %3081
      %3083 = vrot.lane.b32.xlu0 %v833, 16
      %v3084 = vpop.permute.xlu0 %3083
      %3085 = vrot.lane.b32.xlu0 %v838, 16
      %v3086 = vpop.permute.xlu0 %3085
      %3087 = vrot.lane.b32.xlu0 %v843, 16
      %v3088 = vpop.permute.xlu0 %3087
      %3089 = vrot.lane.b32.xlu0 %v848, 16
      %v3090 = vpop.permute.xlu0 %3089
      %3091 = vrot.lane.b32.xlu0 %v853, 16
      %v3092 = vpop.permute.xlu0 %3091
      %3093 = vrot.lane.b32.xlu0 %v858, 16
      %v3094 = vpop.permute.xlu0 %3093
      %3095 = vrot.lane.b32.xlu0 %v863, 16
      %v3096 = vpop.permute.xlu0 %3095
      %3097 = vrot.lane.b32.xlu0 %v868, 16
      %v3098 = vpop.permute.xlu0 %3097
      %3099 = vrot.lane.b32.xlu0 %v873, 16
      %v3100 = vpop.permute.xlu0 %3099
      %3101 = vrot.lane.b32.xlu0 %v878, 16
      %v3102 = vpop.permute.xlu0 %3101
      %3103 = vrot.lane.b32.xlu0 %v883, 16
      %v3104 = vpop.permute.xlu0 %3103
      %3105 = vrot.lane.b32.xlu0 %v888, 16
      %v3106 = vpop.permute.xlu0 %3105
      %3107 = vrot.lane.b32.xlu0 %v893, 16
      %v3108 = vpop.permute.xlu0 %3107
      %3109 = vrot.lane.b32.xlu0 %v898, 16
      %v3110 = vpop.permute.xlu0 %3109
      %3111 = vrot.lane.b32.xlu0 %v903, 16
      %v3112 = vpop.permute.xlu0 %3111
      %3113 = vrot.lane.b32.xlu0 %v908, 16
      %v3114 = vpop.permute.xlu0 %3113
      %3115 = vrot.lane.b32.xlu0 %v913, 16
      %v3116 = vpop.permute.xlu0 %3115
      %3117 = vrot.lane.b32.xlu0 %v918, 16
      %v3118 = vpop.permute.xlu0 %3117
      %3119 = vrot.lane.b32.xlu0 %v923, 16
      %v3120 = vpop.permute.xlu0 %3119
      %3121 = vrot.lane.b32.xlu0 %v928, 16
      %v3122 = vpop.permute.xlu0 %3121
      %3123 = vrot.lane.b32.xlu0 %v933, 16
      %v3124 = vpop.permute.xlu0 %3123
      %3125 = vrot.lane.b32.xlu0 %v938, 16
      %v3126 = vpop.permute.xlu0 %3125
      %3127 = vrot.lane.b32.xlu0 %v943, 16
      %v3128 = vpop.permute.xlu0 %3127
      %3129 = vrot.lane.b32.xlu0 %v948, 16
      %v3130 = vpop.permute.xlu0 %3129
      %3131 = vrot.lane.b32.xlu0 %v953, 16
      %v3132 = vpop.permute.xlu0 %3131
      %3133 = vrot.lane.b32.xlu0 %v958, 16
      %v3134 = vpop.permute.xlu0 %3133
      %3135 = vrot.lane.b32.xlu0 %v963, 16
      %v3136 = vpop.permute.xlu0 %3135
      %3137 = vrot.lane.b32.xlu0 %v968, 16
      %v3138 = vpop.permute.xlu0 %3137
      %3139 = vrot.lane.b32.xlu0 %v973, 16
      %v3140 = vpop.permute.xlu0 %3139
      %3141 = vrot.lane.b32.xlu0 %v978, 16
      %v3142 = vpop.permute.xlu0 %3141
      %3143 = vrot.lane.b32.xlu0 %v983, 16
      %v3144 = vpop.permute.xlu0 %3143
      %3145 = vrot.lane.b32.xlu0 %v988, 16
      %v3146 = vpop.permute.xlu0 %3145
      %3147 = vrot.lane.b32.xlu0 %v993, 16
      %v3148 = vpop.permute.xlu0 %3147
      %3149 = vrot.lane.b32.xlu0 %v998, 16
      %v3150 = vpop.permute.xlu0 %3149
      %3151 = vrot.lane.b32.xlu0 %v1003, 16
      %v3152 = vpop.permute.xlu0 %3151
      %3153 = vrot.lane.b32.xlu0 %v1008, 16
      %v3154 = vpop.permute.xlu0 %3153
      %vm3219 = vcmask 162944
      %3220 = vst.msk [vmem:[%s356] sm:$0xff] %vm3219, %v3028
      %3221 = vst.msk [vmem:[%s356 + $0x8] sm:$0xff] %vm3219, %v3030
      %3222 = vst.msk [vmem:[%s356 + $0x10] sm:$0xff] %vm3219, %v3032
      %3223 = vst.msk [vmem:[%s356 + $0x18] sm:$0xff] %vm3219, %v3034
      %3224 = vst.msk [vmem:[%s356 + $0x20] sm:$0xff] %vm3219, %v3036
      %3225 = vst.msk [vmem:[%s356 + $0x28] sm:$0xff] %vm3219, %v3038
      %3226 = vst.msk [vmem:[%s356 + $0x30] sm:$0xff] %vm3219, %v3040
      %3227 = vst.msk [vmem:[%s356 + $0x38] sm:$0xff] %vm3219, %v3042
      %3228 = vst.msk [vmem:[%s356 + $0x40] sm:$0xff] %vm3219, %v3044
      %3229 = vst.msk [vmem:[%s356 + $0x48] sm:$0xff] %vm3219, %v3046
      %3230 = vst.msk [vmem:[%s356 + $0x50] sm:$0xff] %vm3219, %v3048
      %3231 = vst.msk [vmem:[%s356 + $0x58] sm:$0xff] %vm3219, %v3050
      %3232 = vst.msk [vmem:[%s356 + $0x60] sm:$0xff] %vm3219, %v3052
      %3233 = vst.msk [vmem:[%s356 + $0x68] sm:$0xff] %vm3219, %v3054
      %3234 = vst.msk [vmem:[%s356 + $0x70] sm:$0xff] %vm3219, %v3056
      %3235 = vst.msk [vmem:[%s356 + $0x78] sm:$0xff] %vm3219, %v3058
      %3236 = vst.msk [vmem:[%s356 + $0x80] sm:$0xff] %vm3219, %v3060
      %3237 = vst.msk [vmem:[%s356 + $0x88] sm:$0xff] %vm3219, %v3062
      %3238 = vst.msk [vmem:[%s356 + $0x90] sm:$0xff] %vm3219, %v3064
      %3239 = vst.msk [vmem:[%s356 + $0x98] sm:$0xff] %vm3219, %v3066
      %3240 = vst.msk [vmem:[%s356 + $0xa0] sm:$0xff] %vm3219, %v3068
      %3241 = vst.msk [vmem:[%s356 + $0xa8] sm:$0xff] %vm3219, %v3070
      %3242 = vst.msk [vmem:[%s356 + $0xb0] sm:$0xff] %vm3219, %v3072
      %3243 = vst.msk [vmem:[%s356 + $0xb8] sm:$0xff] %vm3219, %v3074
      %3244 = vst.msk [vmem:[%s356 + $0xc0] sm:$0xff] %vm3219, %v3076
      %3245 = vst.msk [vmem:[%s356 + $0xc8] sm:$0xff] %vm3219, %v3078
      %3246 = vst.msk [vmem:[%s356 + $0xd0] sm:$0xff] %vm3219, %v3080
      %3247 = vst.msk [vmem:[%s356 + $0xd8] sm:$0xff] %vm3219, %v3082
      %3248 = vst.msk [vmem:[%s356 + $0xe0] sm:$0xff] %vm3219, %v3084
      %3249 = vst.msk [vmem:[%s356 + $0xe8] sm:$0xff] %vm3219, %v3086
      %3250 = vst.msk [vmem:[%s356 + $0xf0] sm:$0xff] %vm3219, %v3088
      %3251 = vst.msk [vmem:[%s356 + $0xf8] sm:$0xff] %vm3219, %v3090
      %3252 = vst.msk [vmem:[%s356 + $0x100] sm:$0xff] %vm3219, %v3092
      %3253 = vst.msk [vmem:[%s356 + $0x108] sm:$0xff] %vm3219, %v3094
      %3254 = vst.msk [vmem:[%s356 + $0x110] sm:$0xff] %vm3219, %v3096
      %3255 = vst.msk [vmem:[%s356 + $0x118] sm:$0xff] %vm3219, %v3098
      %3256 = vst.msk [vmem:[%s356 + $0x120] sm:$0xff] %vm3219, %v3100
      %3257 = vst.msk [vmem:[%s356 + $0x128] sm:$0xff] %vm3219, %v3102
      %3258 = vst.msk [vmem:[%s356 + $0x130] sm:$0xff] %vm3219, %v3104
      %3259 = vst.msk [vmem:[%s356 + $0x138] sm:$0xff] %vm3219, %v3106
      %3260 = vst.msk [vmem:[%s356 + $0x140] sm:$0xff] %vm3219, %v3108
      %3261 = vst.msk [vmem:[%s356 + $0x148] sm:$0xff] %vm3219, %v3110
      %3262 = vst.msk [vmem:[%s356 + $0x150] sm:$0xff] %vm3219, %v3112
      %3263 = vst.msk [vmem:[%s356 + $0x158] sm:$0xff] %vm3219, %v3114
      %3264 = vst.msk [vmem:[%s356 + $0x160] sm:$0xff] %vm3219, %v3116
      %3265 = vst.msk [vmem:[%s356 + $0x168] sm:$0xff] %vm3219, %v3118
      %3266 = vst.msk [vmem:[%s356 + $0x170] sm:$0xff] %vm3219, %v3120
      %3267 = vst.msk [vmem:[%s356 + $0x178] sm:$0xff] %vm3219, %v3122
      %3268 = vst.msk [vmem:[%s356 + $0x180] sm:$0xff] %vm3219, %v3124
      %3269 = vst.msk [vmem:[%s356 + $0x188] sm:$0xff] %vm3219, %v3126
      %3270 = vst.msk [vmem:[%s356 + $0x190] sm:$0xff] %vm3219, %v3128
      %3271 = vst.msk [vmem:[%s356 + $0x198] sm:$0xff] %vm3219, %v3130
      %3272 = vst.msk [vmem:[%s356 + $0x1a0] sm:$0xff] %vm3219, %v3132
      %3273 = vst.msk [vmem:[%s356 + $0x1a8] sm:$0xff] %vm3219, %v3134
      %3274 = vst.msk [vmem:[%s356 + $0x1b0] sm:$0xff] %vm3219, %v3136
      %3275 = vst.msk [vmem:[%s356 + $0x1b8] sm:$0xff] %vm3219, %v3138
      %3276 = vst.msk [vmem:[%s356 + $0x1c0] sm:$0xff] %vm3219, %v3140
      %3277 = vst.msk [vmem:[%s356 + $0x1c8] sm:$0xff] %vm3219, %v3142
      %3278 = vst.msk [vmem:[%s356 + $0x1d0] sm:$0xff] %vm3219, %v3144
      %3279 = vst.msk [vmem:[%s356 + $0x1d8] sm:$0xff] %vm3219, %v3146
      %3280 = vst.msk [vmem:[%s356 + $0x1e0] sm:$0xff] %vm3219, %v3148
      %3281 = vst.msk [vmem:[%s356 + $0x1e8] sm:$0xff] %vm3219, %v3150
      %3282 = vst.msk [vmem:[%s356 + $0x1f0] sm:$0xff] %vm3219, %v3152
      %3283 = vst.msk [vmem:[%s356 + $0x1f8] sm:$0xff] %vm3219, %v3154
      %3348 = vrot.lane.b32.xlu0 %v1089, 20
      %v3349 = vpop.permute.xlu0 %3348
      %3350 = vrot.lane.b32.xlu0 %v1094, 20
      %v3351 = vpop.permute.xlu0 %3350
      %3352 = vrot.lane.b32.xlu0 %v1099, 20
      %v3353 = vpop.permute.xlu0 %3352
      %3354 = vrot.lane.b32.xlu0 %v1104, 20
      %v3355 = vpop.permute.xlu0 %3354
      %3356 = vrot.lane.b32.xlu0 %v1109, 20
      %v3357 = vpop.permute.xlu0 %3356
      %3358 = vrot.lane.b32.xlu0 %v1114, 20
      %v3359 = vpop.permute.xlu0 %3358
      %3360 = vrot.lane.b32.xlu0 %v1119, 20
      %v3361 = vpop.permute.xlu0 %3360
      %3362 = vrot.lane.b32.xlu0 %v1124, 20
      %v3363 = vpop.permute.xlu0 %3362
      %3364 = vrot.lane.b32.xlu0 %v1129, 20
      %v3365 = vpop.permute.xlu0 %3364
      %3366 = vrot.lane.b32.xlu0 %v1134, 20
      %v3367 = vpop.permute.xlu0 %3366
      %3368 = vrot.lane.b32.xlu0 %v1139, 20
      %v3369 = vpop.permute.xlu0 %3368
      %3370 = vrot.lane.b32.xlu0 %v1144, 20
      %v3371 = vpop.permute.xlu0 %3370
      %3372 = vrot.lane.b32.xlu0 %v1149, 20
      %v3373 = vpop.permute.xlu0 %3372
      %3374 = vrot.lane.b32.xlu0 %v1154, 20
      %v3375 = vpop.permute.xlu0 %3374
      %3376 = vrot.lane.b32.xlu0 %v1159, 20
      %v3377 = vpop.permute.xlu0 %3376
      %3378 = vrot.lane.b32.xlu0 %v1164, 20
      %v3379 = vpop.permute.xlu0 %3378
      %3380 = vrot.lane.b32.xlu0 %v1169, 20
      %v3381 = vpop.permute.xlu0 %3380
      %3382 = vrot.lane.b32.xlu0 %v1174, 20
      %v3383 = vpop.permute.xlu0 %3382
      %3384 = vrot.lane.b32.xlu0 %v1179, 20
      %v3385 = vpop.permute.xlu0 %3384
      %3386 = vrot.lane.b32.xlu0 %v1184, 20
      %v3387 = vpop.permute.xlu0 %3386
      %3388 = vrot.lane.b32.xlu0 %v1189, 20
      %v3389 = vpop.permute.xlu0 %3388
      %3390 = vrot.lane.b32.xlu0 %v1194, 20
      %v3391 = vpop.permute.xlu0 %3390
      %3392 = vrot.lane.b32.xlu0 %v1199, 20
      %v3393 = vpop.permute.xlu0 %3392
      %3394 = vrot.lane.b32.xlu0 %v1204, 20
      %v3395 = vpop.permute.xlu0 %3394
      %3396 = vrot.lane.b32.xlu0 %v1209, 20
      %v3397 = vpop.permute.xlu0 %3396
      %3398 = vrot.lane.b32.xlu0 %v1214, 20
      %v3399 = vpop.permute.xlu0 %3398
      %3400 = vrot.lane.b32.xlu0 %v1219, 20
      %v3401 = vpop.permute.xlu0 %3400
      %3402 = vrot.lane.b32.xlu0 %v1224, 20
      %v3403 = vpop.permute.xlu0 %3402
      %3404 = vrot.lane.b32.xlu0 %v1229, 20
      %v3405 = vpop.permute.xlu0 %3404
      %3406 = vrot.lane.b32.xlu0 %v1234, 20
      %v3407 = vpop.permute.xlu0 %3406
      %3408 = vrot.lane.b32.xlu0 %v1239, 20
      %v3409 = vpop.permute.xlu0 %3408
      %3410 = vrot.lane.b32.xlu0 %v1244, 20
      %v3411 = vpop.permute.xlu0 %3410
      %3412 = vrot.lane.b32.xlu0 %v1249, 20
      %v3413 = vpop.permute.xlu0 %3412
      %3414 = vrot.lane.b32.xlu0 %v1254, 20
      %v3415 = vpop.permute.xlu0 %3414
      %3416 = vrot.lane.b32.xlu0 %v1259, 20
      %v3417 = vpop.permute.xlu0 %3416
      %3418 = vrot.lane.b32.xlu0 %v1264, 20
      %v3419 = vpop.permute.xlu0 %3418
      %3420 = vrot.lane.b32.xlu0 %v1269, 20
      %v3421 = vpop.permute.xlu0 %3420
      %3422 = vrot.lane.b32.xlu0 %v1274, 20
      %v3423 = vpop.permute.xlu0 %3422
      %3424 = vrot.lane.b32.xlu0 %v1279, 20
      %v3425 = vpop.permute.xlu0 %3424
      %3426 = vrot.lane.b32.xlu0 %v1284, 20
      %v3427 = vpop.permute.xlu0 %3426
      %3428 = vrot.lane.b32.xlu0 %v1289, 20
      %v3429 = vpop.permute.xlu0 %3428
      %3430 = vrot.lane.b32.xlu0 %v1294, 20
      %v3431 = vpop.permute.xlu0 %3430
      %3432 = vrot.lane.b32.xlu0 %v1299, 20
      %v3433 = vpop.permute.xlu0 %3432
      %3434 = vrot.lane.b32.xlu0 %v1304, 20
      %v3435 = vpop.permute.xlu0 %3434
      %3436 = vrot.lane.b32.xlu0 %v1309, 20
      %v3437 = vpop.permute.xlu0 %3436
      %3438 = vrot.lane.b32.xlu0 %v1314, 20
      %v3439 = vpop.permute.xlu0 %3438
      %3440 = vrot.lane.b32.xlu0 %v1319, 20
      %v3441 = vpop.permute.xlu0 %3440
      %3442 = vrot.lane.b32.xlu0 %v1324, 20
      %v3443 = vpop.permute.xlu0 %3442
      %3444 = vrot.lane.b32.xlu0 %v1329, 20
      %v3445 = vpop.permute.xlu0 %3444
      %3446 = vrot.lane.b32.xlu0 %v1334, 20
      %v3447 = vpop.permute.xlu0 %3446
      %3448 = vrot.lane.b32.xlu0 %v1339, 20
      %v3449 = vpop.permute.xlu0 %3448
      %3450 = vrot.lane.b32.xlu0 %v1344, 20
      %v3451 = vpop.permute.xlu0 %3450
      %3452 = vrot.lane.b32.xlu0 %v1349, 20
      %v3453 = vpop.permute.xlu0 %3452
      %3454 = vrot.lane.b32.xlu0 %v1354, 20
      %v3455 = vpop.permute.xlu0 %3454
      %3456 = vrot.lane.b32.xlu0 %v1359, 20
      %v3457 = vpop.permute.xlu0 %3456
      %3458 = vrot.lane.b32.xlu0 %v1364, 20
      %v3459 = vpop.permute.xlu0 %3458
      %3460 = vrot.lane.b32.xlu0 %v1369, 20
      %v3461 = vpop.permute.xlu0 %3460
      %3462 = vrot.lane.b32.xlu0 %v1374, 20
      %v3463 = vpop.permute.xlu0 %3462
      %3464 = vrot.lane.b32.xlu0 %v1379, 20
      %v3465 = vpop.permute.xlu0 %3464
      %3466 = vrot.lane.b32.xlu0 %v1384, 20
      %v3467 = vpop.permute.xlu0 %3466
      %3468 = vrot.lane.b32.xlu0 %v1389, 20
      %v3469 = vpop.permute.xlu0 %3468
      %3470 = vrot.lane.b32.xlu0 %v1394, 20
      %v3471 = vpop.permute.xlu0 %3470
      %3472 = vrot.lane.b32.xlu0 %v1399, 20
      %v3473 = vpop.permute.xlu0 %3472
      %3474 = vrot.lane.b32.xlu0 %v1404, 20
      %v3475 = vpop.permute.xlu0 %3474
      %vm3540 = vcmask 195744
      %3541 = vst.msk [vmem:[%s356] sm:$0xff] %vm3540, %v3349
      %3542 = vst.msk [vmem:[%s356 + $0x8] sm:$0xff] %vm3540, %v3351
      %3543 = vst.msk [vmem:[%s356 + $0x10] sm:$0xff] %vm3540, %v3353
      %3544 = vst.msk [vmem:[%s356 + $0x18] sm:$0xff] %vm3540, %v3355
      %3545 = vst.msk [vmem:[%s356 + $0x20] sm:$0xff] %vm3540, %v3357
      %3546 = vst.msk [vmem:[%s356 + $0x28] sm:$0xff] %vm3540, %v3359
      %3547 = vst.msk [vmem:[%s356 + $0x30] sm:$0xff] %vm3540, %v3361
      %3548 = vst.msk [vmem:[%s356 + $0x38] sm:$0xff] %vm3540, %v3363
      %3549 = vst.msk [vmem:[%s356 + $0x40] sm:$0xff] %vm3540, %v3365
      %3550 = vst.msk [vmem:[%s356 + $0x48] sm:$0xff] %vm3540, %v3367
      %3551 = vst.msk [vmem:[%s356 + $0x50] sm:$0xff] %vm3540, %v3369
      %3552 = vst.msk [vmem:[%s356 + $0x58] sm:$0xff] %vm3540, %v3371
      %3553 = vst.msk [vmem:[%s356 + $0x60] sm:$0xff] %vm3540, %v3373
      %3554 = vst.msk [vmem:[%s356 + $0x68] sm:$0xff] %vm3540, %v3375
      %3555 = vst.msk [vmem:[%s356 + $0x70] sm:$0xff] %vm3540, %v3377
      %3556 = vst.msk [vmem:[%s356 + $0x78] sm:$0xff] %vm3540, %v3379
      %3557 = vst.msk [vmem:[%s356 + $0x80] sm:$0xff] %vm3540, %v3381
      %3558 = vst.msk [vmem:[%s356 + $0x88] sm:$0xff] %vm3540, %v3383
      %3559 = vst.msk [vmem:[%s356 + $0x90] sm:$0xff] %vm3540, %v3385
      %3560 = vst.msk [vmem:[%s356 + $0x98] sm:$0xff] %vm3540, %v3387
      %3561 = vst.msk [vmem:[%s356 + $0xa0] sm:$0xff] %vm3540, %v3389
      %3562 = vst.msk [vmem:[%s356 + $0xa8] sm:$0xff] %vm3540, %v3391
      %3563 = vst.msk [vmem:[%s356 + $0xb0] sm:$0xff] %vm3540, %v3393
      %3564 = vst.msk [vmem:[%s356 + $0xb8] sm:$0xff] %vm3540, %v3395
      %3565 = vst.msk [vmem:[%s356 + $0xc0] sm:$0xff] %vm3540, %v3397
      %3566 = vst.msk [vmem:[%s356 + $0xc8] sm:$0xff] %vm3540, %v3399
      %3567 = vst.msk [vmem:[%s356 + $0xd0] sm:$0xff] %vm3540, %v3401
      %3568 = vst.msk [vmem:[%s356 + $0xd8] sm:$0xff] %vm3540, %v3403
      %3569 = vst.msk [vmem:[%s356 + $0xe0] sm:$0xff] %vm3540, %v3405
      %3570 = vst.msk [vmem:[%s356 + $0xe8] sm:$0xff] %vm3540, %v3407
      %3571 = vst.msk [vmem:[%s356 + $0xf0] sm:$0xff] %vm3540, %v3409
      %3572 = vst.msk [vmem:[%s356 + $0xf8] sm:$0xff] %vm3540, %v3411
      %3573 = vst.msk [vmem:[%s356 + $0x100] sm:$0xff] %vm3540, %v3413
      %3574 = vst.msk [vmem:[%s356 + $0x108] sm:$0xff] %vm3540, %v3415
      %3575 = vst.msk [vmem:[%s356 + $0x110] sm:$0xff] %vm3540, %v3417
      %3576 = vst.msk [vmem:[%s356 + $0x118] sm:$0xff] %vm3540, %v3419
      %3577 = vst.msk [vmem:[%s356 + $0x120] sm:$0xff] %vm3540, %v3421
      %3578 = vst.msk [vmem:[%s356 + $0x128] sm:$0xff] %vm3540, %v3423
      %3579 = vst.msk [vmem:[%s356 + $0x130] sm:$0xff] %vm3540, %v3425
      %3580 = vst.msk [vmem:[%s356 + $0x138] sm:$0xff] %vm3540, %v3427
      %3581 = vst.msk [vmem:[%s356 + $0x140] sm:$0xff] %vm3540, %v3429
      %3582 = vst.msk [vmem:[%s356 + $0x148] sm:$0xff] %vm3540, %v3431
      %3583 = vst.msk [vmem:[%s356 + $0x150] sm:$0xff] %vm3540, %v3433
      %3584 = vst.msk [vmem:[%s356 + $0x158] sm:$0xff] %vm3540, %v3435
      %3585 = vst.msk [vmem:[%s356 + $0x160] sm:$0xff] %vm3540, %v3437
      %3586 = vst.msk [vmem:[%s356 + $0x168] sm:$0xff] %vm3540, %v3439
      %3587 = vst.msk [vmem:[%s356 + $0x170] sm:$0xff] %vm3540, %v3441
      %3588 = vst.msk [vmem:[%s356 + $0x178] sm:$0xff] %vm3540, %v3443
      %3589 = vst.msk [vmem:[%s356 + $0x180] sm:$0xff] %vm3540, %v3445
      %3590 = vst.msk [vmem:[%s356 + $0x188] sm:$0xff] %vm3540, %v3447
      %3591 = vst.msk [vmem:[%s356 + $0x190] sm:$0xff] %vm3540, %v3449
      %3592 = vst.msk [vmem:[%s356 + $0x198] sm:$0xff] %vm3540, %v3451
      %3593 = vst.msk [vmem:[%s356 + $0x1a0] sm:$0xff] %vm3540, %v3453
      %3594 = vst.msk [vmem:[%s356 + $0x1a8] sm:$0xff] %vm3540, %v3455
      %3595 = vst.msk [vmem:[%s356 + $0x1b0] sm:$0xff] %vm3540, %v3457
      %3596 = vst.msk [vmem:[%s356 + $0x1b8] sm:$0xff] %vm3540, %v3459
      %3597 = vst.msk [vmem:[%s356 + $0x1c0] sm:$0xff] %vm3540, %v3461
      %3598 = vst.msk [vmem:[%s356 + $0x1c8] sm:$0xff] %vm3540, %v3463
      %3599 = vst.msk [vmem:[%s356 + $0x1d0] sm:$0xff] %vm3540, %v3465
      %3600 = vst.msk [vmem:[%s356 + $0x1d8] sm:$0xff] %vm3540, %v3467
      %3601 = vst.msk [vmem:[%s356 + $0x1e0] sm:$0xff] %vm3540, %v3469
      %3602 = vst.msk [vmem:[%s356 + $0x1e8] sm:$0xff] %vm3540, %v3471
      %3603 = vst.msk [vmem:[%s356 + $0x1f0] sm:$0xff] %vm3540, %v3473
      %3604 = vst.msk [vmem:[%s356 + $0x1f8] sm:$0xff] %vm3540, %v3475
      %3605 = vrot.lane.b32.xlu0 %v1791, 24
      %v3606 = vpop.permute.xlu0 %3605
      %3607 = vrot.lane.b32.xlu0 %v1792, 24
      %v3608 = vpop.permute.xlu0 %3607
      %3609 = vrot.lane.b32.xlu0 %v1793, 24
      %v3610 = vpop.permute.xlu0 %3609
      %3611 = vrot.lane.b32.xlu0 %v1794, 24
      %v3612 = vpop.permute.xlu0 %3611
      %3613 = vrot.lane.b32.xlu0 %v1795, 24
      %v3614 = vpop.permute.xlu0 %3613
      %3615 = vrot.lane.b32.xlu0 %v1796, 24
      %v3616 = vpop.permute.xlu0 %3615
      %3617 = vrot.lane.b32.xlu0 %v1797, 24
      %v3618 = vpop.permute.xlu0 %3617
      %3619 = vrot.lane.b32.xlu0 %v1798, 24
      %v3620 = vpop.permute.xlu0 %3619
      %3621 = vrot.lane.b32.xlu0 %v1799, 24
      %v3622 = vpop.permute.xlu0 %3621
      %3623 = vrot.lane.b32.xlu0 %v1800, 24
      %v3624 = vpop.permute.xlu0 %3623
      %3625 = vrot.lane.b32.xlu0 %v1801, 24
      %v3626 = vpop.permute.xlu0 %3625
      %3627 = vrot.lane.b32.xlu0 %v1802, 24
      %v3628 = vpop.permute.xlu0 %3627
      %3629 = vrot.lane.b32.xlu0 %v1803, 24
      %v3630 = vpop.permute.xlu0 %3629
      %3631 = vrot.lane.b32.xlu0 %v1804, 24
      %v3632 = vpop.permute.xlu0 %3631
      %3633 = vrot.lane.b32.xlu0 %v1805, 24
      %v3634 = vpop.permute.xlu0 %3633
      %3635 = vrot.lane.b32.xlu0 %v1806, 24
      %v3636 = vpop.permute.xlu0 %3635
      %3637 = vrot.lane.b32.xlu0 %v1807, 24
      %v3638 = vpop.permute.xlu0 %3637
      %3639 = vrot.lane.b32.xlu0 %v1808, 24
      %v3640 = vpop.permute.xlu0 %3639
      %3641 = vrot.lane.b32.xlu0 %v1809, 24
      %v3642 = vpop.permute.xlu0 %3641
      %3643 = vrot.lane.b32.xlu0 %v1810, 24
      %v3644 = vpop.permute.xlu0 %3643
      %3645 = vrot.lane.b32.xlu0 %v1811, 24
      %v3646 = vpop.permute.xlu0 %3645
      %3647 = vrot.lane.b32.xlu0 %v1812, 24
      %v3648 = vpop.permute.xlu0 %3647
      %3649 = vrot.lane.b32.xlu0 %v1813, 24
      %v3650 = vpop.permute.xlu0 %3649
      %3651 = vrot.lane.b32.xlu0 %v1814, 24
      %v3652 = vpop.permute.xlu0 %3651
      %3653 = vrot.lane.b32.xlu0 %v1815, 24
      %v3654 = vpop.permute.xlu0 %3653
      %3655 = vrot.lane.b32.xlu0 %v1816, 24
      %v3656 = vpop.permute.xlu0 %3655
      %3657 = vrot.lane.b32.xlu0 %v1817, 24
      %v3658 = vpop.permute.xlu0 %3657
      %3659 = vrot.lane.b32.xlu0 %v1818, 24
      %v3660 = vpop.permute.xlu0 %3659
      %3661 = vrot.lane.b32.xlu0 %v1819, 24
      %v3662 = vpop.permute.xlu0 %3661
      %3663 = vrot.lane.b32.xlu0 %v1820, 24
      %v3664 = vpop.permute.xlu0 %3663
      %3665 = vrot.lane.b32.xlu0 %v1821, 24
      %v3666 = vpop.permute.xlu0 %3665
      %3667 = vrot.lane.b32.xlu0 %v1822, 24
      %v3668 = vpop.permute.xlu0 %3667
      %3669 = vrot.lane.b32.xlu0 %v1823, 24
      %v3670 = vpop.permute.xlu0 %3669
      %3671 = vrot.lane.b32.xlu0 %v1824, 24
      %v3672 = vpop.permute.xlu0 %3671
      %3673 = vrot.lane.b32.xlu0 %v1825, 24
      %v3674 = vpop.permute.xlu0 %3673
      %3675 = vrot.lane.b32.xlu0 %v1826, 24
      %v3676 = vpop.permute.xlu0 %3675
      %3677 = vrot.lane.b32.xlu0 %v1827, 24
      %v3678 = vpop.permute.xlu0 %3677
      %3679 = vrot.lane.b32.xlu0 %v1828, 24
      %v3680 = vpop.permute.xlu0 %3679
      %3681 = vrot.lane.b32.xlu0 %v1829, 24
      %v3682 = vpop.permute.xlu0 %3681
      %3683 = vrot.lane.b32.xlu0 %v1830, 24
      %v3684 = vpop.permute.xlu0 %3683
      %3685 = vrot.lane.b32.xlu0 %v1831, 24
      %v3686 = vpop.permute.xlu0 %3685
      %3687 = vrot.lane.b32.xlu0 %v1832, 24
      %v3688 = vpop.permute.xlu0 %3687
      %3689 = vrot.lane.b32.xlu0 %v1833, 24
      %v3690 = vpop.permute.xlu0 %3689
      %3691 = vrot.lane.b32.xlu0 %v1834, 24
      %v3692 = vpop.permute.xlu0 %3691
      %3693 = vrot.lane.b32.xlu0 %v1835, 24
      %v3694 = vpop.permute.xlu0 %3693
      %3695 = vrot.lane.b32.xlu0 %v1836, 24
      %v3696 = vpop.permute.xlu0 %3695
      %3697 = vrot.lane.b32.xlu0 %v1837, 24
      %v3698 = vpop.permute.xlu0 %3697
      %3699 = vrot.lane.b32.xlu0 %v1838, 24
      %v3700 = vpop.permute.xlu0 %3699
      %3701 = vrot.lane.b32.xlu0 %v1839, 24
      %v3702 = vpop.permute.xlu0 %3701
      %3703 = vrot.lane.b32.xlu0 %v1840, 24
      %v3704 = vpop.permute.xlu0 %3703
      %3705 = vrot.lane.b32.xlu0 %v1841, 24
      %v3706 = vpop.permute.xlu0 %3705
      %3707 = vrot.lane.b32.xlu0 %v1842, 24
      %v3708 = vpop.permute.xlu0 %3707
      %3709 = vrot.lane.b32.xlu0 %v1843, 24
      %v3710 = vpop.permute.xlu0 %3709
      %3711 = vrot.lane.b32.xlu0 %v1844, 24
      %v3712 = vpop.permute.xlu0 %3711
      %3713 = vrot.lane.b32.xlu0 %v1845, 24
      %v3714 = vpop.permute.xlu0 %3713
      %3715 = vrot.lane.b32.xlu0 %v1846, 24
      %v3716 = vpop.permute.xlu0 %3715
      %3717 = vrot.lane.b32.xlu0 %v1847, 24
      %v3718 = vpop.permute.xlu0 %3717
      %3719 = vrot.lane.b32.xlu0 %v1848, 24
      %v3720 = vpop.permute.xlu0 %3719
      %3721 = vrot.lane.b32.xlu0 %v1849, 24
      %v3722 = vpop.permute.xlu0 %3721
      %3723 = vrot.lane.b32.xlu0 %v1850, 24
      %v3724 = vpop.permute.xlu0 %3723
      %3725 = vrot.lane.b32.xlu0 %v1851, 24
      %v3726 = vpop.permute.xlu0 %3725
      %3727 = vrot.lane.b32.xlu0 %v1852, 24
      %v3728 = vpop.permute.xlu0 %3727
      %3729 = vrot.lane.b32.xlu0 %v1853, 24
      %v3730 = vpop.permute.xlu0 %3729
      %3731 = vrot.lane.b32.xlu0 %v1854, 24
      %v3732 = vpop.permute.xlu0 %3731
      %vm3797 = vcmask 228544
      %3798 = vst.msk [vmem:[%s356] sm:$0xff] %vm3797, %v3606
      %3799 = vst.msk [vmem:[%s356 + $0x8] sm:$0xff] %vm3797, %v3608
      %3800 = vst.msk [vmem:[%s356 + $0x10] sm:$0xff] %vm3797, %v3610
      %3801 = vst.msk [vmem:[%s356 + $0x18] sm:$0xff] %vm3797, %v3612
      %3802 = vst.msk [vmem:[%s356 + $0x20] sm:$0xff] %vm3797, %v3614
      %3803 = vst.msk [vmem:[%s356 + $0x28] sm:$0xff] %vm3797, %v3616
      %3804 = vst.msk [vmem:[%s356 + $0x30] sm:$0xff] %vm3797, %v3618
      %3805 = vst.msk [vmem:[%s356 + $0x38] sm:$0xff] %vm3797, %v3620
      %3806 = vst.msk [vmem:[%s356 + $0x40] sm:$0xff] %vm3797, %v3622
      %3807 = vst.msk [vmem:[%s356 + $0x48] sm:$0xff] %vm3797, %v3624
      %3808 = vst.msk [vmem:[%s356 + $0x50] sm:$0xff] %vm3797, %v3626
      %3809 = vst.msk [vmem:[%s356 + $0x58] sm:$0xff] %vm3797, %v3628
      %3810 = vst.msk [vmem:[%s356 + $0x60] sm:$0xff] %vm3797, %v3630
      %3811 = vst.msk [vmem:[%s356 + $0x68] sm:$0xff] %vm3797, %v3632
      %3812 = vst.msk [vmem:[%s356 + $0x70] sm:$0xff] %vm3797, %v3634
      %3813 = vst.msk [vmem:[%s356 + $0x78] sm:$0xff] %vm3797, %v3636
      %3814 = vst.msk [vmem:[%s356 + $0x80] sm:$0xff] %vm3797, %v3638
      %3815 = vst.msk [vmem:[%s356 + $0x88] sm:$0xff] %vm3797, %v3640
      %3816 = vst.msk [vmem:[%s356 + $0x90] sm:$0xff] %vm3797, %v3642
      %3817 = vst.msk [vmem:[%s356 + $0x98] sm:$0xff] %vm3797, %v3644
      %3818 = vst.msk [vmem:[%s356 + $0xa0] sm:$0xff] %vm3797, %v3646
      %3819 = vst.msk [vmem:[%s356 + $0xa8] sm:$0xff] %vm3797, %v3648
      %3820 = vst.msk [vmem:[%s356 + $0xb0] sm:$0xff] %vm3797, %v3650
      %3821 = vst.msk [vmem:[%s356 + $0xb8] sm:$0xff] %vm3797, %v3652
      %3822 = vst.msk [vmem:[%s356 + $0xc0] sm:$0xff] %vm3797, %v3654
      %3823 = vst.msk [vmem:[%s356 + $0xc8] sm:$0xff] %vm3797, %v3656
      %3824 = vst.msk [vmem:[%s356 + $0xd0] sm:$0xff] %vm3797, %v3658
      %3825 = vst.msk [vmem:[%s356 + $0xd8] sm:$0xff] %vm3797, %v3660
      %3826 = vst.msk [vmem:[%s356 + $0xe0] sm:$0xff] %vm3797, %v3662
      %3827 = vst.msk [vmem:[%s356 + $0xe8] sm:$0xff] %vm3797, %v3664
      %3828 = vst.msk [vmem:[%s356 + $0xf0] sm:$0xff] %vm3797, %v3666
      %3829 = vst.msk [vmem:[%s356 + $0xf8] sm:$0xff] %vm3797, %v3668
      %3830 = vst.msk [vmem:[%s356 + $0x100] sm:$0xff] %vm3797, %v3670
      %3831 = vst.msk [vmem:[%s356 + $0x108] sm:$0xff] %vm3797, %v3672
      %3832 = vst.msk [vmem:[%s356 + $0x110] sm:$0xff] %vm3797, %v3674
      %3833 = vst.msk [vmem:[%s356 + $0x118] sm:$0xff] %vm3797, %v3676
      %3834 = vst.msk [vmem:[%s356 + $0x120] sm:$0xff] %vm3797, %v3678
      %3835 = vst.msk [vmem:[%s356 + $0x128] sm:$0xff] %vm3797, %v3680
      %3836 = vst.msk [vmem:[%s356 + $0x130] sm:$0xff] %vm3797, %v3682
      %3837 = vst.msk [vmem:[%s356 + $0x138] sm:$0xff] %vm3797, %v3684
      %3838 = vst.msk [vmem:[%s356 + $0x140] sm:$0xff] %vm3797, %v3686
      %3839 = vst.msk [vmem:[%s356 + $0x148] sm:$0xff] %vm3797, %v3688
      %3840 = vst.msk [vmem:[%s356 + $0x150] sm:$0xff] %vm3797, %v3690
      %3841 = vst.msk [vmem:[%s356 + $0x158] sm:$0xff] %vm3797, %v3692
      %3842 = vst.msk [vmem:[%s356 + $0x160] sm:$0xff] %vm3797, %v3694
      %3843 = vst.msk [vmem:[%s356 + $0x168] sm:$0xff] %vm3797, %v3696
      %3844 = vst.msk [vmem:[%s356 + $0x170] sm:$0xff] %vm3797, %v3698
      %3845 = vst.msk [vmem:[%s356 + $0x178] sm:$0xff] %vm3797, %v3700
      %3846 = vst.msk [vmem:[%s356 + $0x180] sm:$0xff] %vm3797, %v3702
      %3847 = vst.msk [vmem:[%s356 + $0x188] sm:$0xff] %vm3797, %v3704
      %3848 = vst.msk [vmem:[%s356 + $0x190] sm:$0xff] %vm3797, %v3706
      %3849 = vst.msk [vmem:[%s356 + $0x198] sm:$0xff] %vm3797, %v3708
      %3850 = vst.msk [vmem:[%s356 + $0x1a0] sm:$0xff] %vm3797, %v3710
      %3851 = vst.msk [vmem:[%s356 + $0x1a8] sm:$0xff] %vm3797, %v3712
      %3852 = vst.msk [vmem:[%s356 + $0x1b0] sm:$0xff] %vm3797, %v3714
      %3853 = vst.msk [vmem:[%s356 + $0x1b8] sm:$0xff] %vm3797, %v3716
      %3854 = vst.msk [vmem:[%s356 + $0x1c0] sm:$0xff] %vm3797, %v3718
      %3855 = vst.msk [vmem:[%s356 + $0x1c8] sm:$0xff] %vm3797, %v3720
      %3856 = vst.msk [vmem:[%s356 + $0x1d0] sm:$0xff] %vm3797, %v3722
      %3857 = vst.msk [vmem:[%s356 + $0x1d8] sm:$0xff] %vm3797, %v3724
      %3858 = vst.msk [vmem:[%s356 + $0x1e0] sm:$0xff] %vm3797, %v3726
      %3859 = vst.msk [vmem:[%s356 + $0x1e8] sm:$0xff] %vm3797, %v3728
      %3860 = vst.msk [vmem:[%s356 + $0x1f0] sm:$0xff] %vm3797, %v3730
      %3861 = vst.msk [vmem:[%s356 + $0x1f8] sm:$0xff] %vm3797, %v3732
      %s3862 = smul.u32 64, %s20
      %p3863 = scmp.lt.s32.totalorder %s3862, 255
      %s3864 = scalar_select %p3863, %s3862, 255
      %s3865 = smul.addr %s3864, 8
      %s3866 = scalar_lea.vmem %s9, %s3865
      // Predicated region
      $region57: #{glvm_vae_forward.1} parent=55 // pred_check
        %p3867 = pneg %p237
      $region58: #{glvm_vae_forward.1} parent=55 // pred_check_branch
        %3869 = sbr.rel (%p3867) target = $region60
      $region59: #{glvm_vae_forward.1} parent=55 // pred_region
        %s3870 = smul.u32 64, %s20
      $region60: #{glvm_vae_forward.1} parent=55 // pred_fallthru
        _
    $region56: #{glvm_vae_forward.1} parent=5 // pred_fallthru
      _
    %p3871 = scmp.le.s32.totalorder 2, %s15
    // Predicated region
    $region61: #{glvm_vae_forward.1} parent=5 // pred_check
      %p3872 = pneg %p3871
    $region62: #{glvm_vae_forward.1} parent=5 // pred_check_branch
      %3874 = sbr.rel (%p3872) target = $region64
    $region63: #{glvm_vae_forward.1} parent=5 // pred_region
      %s3875 = ssub.s32 %s15, 2
      // Predicated region
      $region65: #{glvm_vae_forward.1} parent=63 // pred_check
        %p3876 = pneg %p243
      $region66: #{glvm_vae_forward.1} parent=63 // pred_check_branch
        %3878 = sbr.rel (%p3876) target = $region68
      $region67: #{glvm_vae_forward.1} parent=63 // pred_region
        %s3879 = smul.u32 64, %s21
        %p3880 = scmp.lt.s32.totalorder %s3879, 255
        %s3881 = scalar_select %p3880, %s3879, 255
        %s3882 = smul.addr %s3881, 8
        %s3883 = scalar_lea.vmem %s9, %s3882
      $region68: #{glvm_vae_forward.1} parent=63 // pred_fallthru
        _
    $region64: #{glvm_vae_forward.1} parent=5 // pred_fallthru
      _
  $region6: #{glvm_vae_forward.1} parent=0 // loop_footer
    %s19 = sadd.s32 1, %s15
  $region7: #{glvm_vae_forward.1} parent=0 // loop_footer_branch
    %14 = sbr.rel target = $region3
  $region8: #{glvm_vae_forward.1} parent=0 // loop_exit
    _

</llo_original>
